<compile_context>
chip_gen: v7x
topology: tpu7x:2x2x1
jax: 0.10.0
libtpu: 0.0.40
codegen_flags: <defaults>
</compile_context>

<pallas_src>
import functools

import jax
import jax.numpy as jnp
from jax.experimental import pallas as pl
from jax.experimental.pallas import tpu as pltpu


def _conv2d_fused_kernel(w_ref, b_ref, x_ref, o_ref, *,
                         cin, cout, kh, kw, toh, ow, stride):
    """One grid step: all output channels for `toh` output rows of one image.

    w_ref: SMEM (Cout*Cin*KH*KW,)  flattened filters, row-major [co, ci, i, j]
    b_ref: SMEM (Cout,)            bias
    x_ref: VMEM (Cin, Hp, Wp)      whole padded input image (resident across row tiles)
    o_ref: VMEM (Cout, TOH, OW)    output row tile (NCHW block)
    """
    r = pl.program_id(1)
    row0 = pl.multiple_of(r * (toh * stride), toh * stride)

    # Per-output-channel register accumulators, seeded with the bias.
    accs = [jnp.full((toh, ow), b_ref[co], jnp.float32) for co in range(cout)]

    for i in range(kh):
        for j in range(kw):
            if stride == 1:
                win = x_ref[:, pl.ds(row0 + i, toh), pl.ds(j, ow)]          # (Cin, TOH, OW)
            else:
                # TODO(synk): strided-window path; not exercised by the demo (stride=1).
                win = x_ref[:, pl.ds(row0 + i, toh, stride),
                            pl.ds(j, ow, stride)]
            for ci in range(cin):
                xc = win[ci]                                                # (TOH, OW)
                for co in range(cout):
                    wv = w_ref[((co * cin + ci) * kh + i) * kw + j]         # SMEM scalar
                    accs[co] = accs[co] + wv * xc

    for co in range(cout):
        o_ref[co] = accs[co]


@functools.partial(jax.jit, static_argnames=("stride", "padding"))
def convolution2d_forward(x, filters, bias, *, stride=1, padding=0):
    """x: (N, Cin, H, W); filters: (Cout, Cin, KH, KW); bias: (Cout,) or None.
    Returns (N, Cout, OH, OW) float32 (NCHW, like the PyTorch module)."""
    n, cin, h, w = x.shape
    cout, cin_f, kh, kw = filters.shape
    assert cin_f == cin

    # Same output-size validity rule as the PyTorch module.
    assert (h - kh + 2 * padding) % stride == 0, "Convolution output height is invalid"
    assert (w - kw + 2 * padding) % stride == 0, "Convolution output width is invalid"
    out_h = (h - kh + 2 * padding) // stride + 1
    out_w = (w - kw + 2 * padding) // stride + 1

    if bias is None:
        bias = jnp.zeros((cout,), jnp.float32)

    x = x.astype(jnp.float32)
    if padding > 0:
        # Only the spatial zero-pad runs in XLA (one small pass over x); the
        # im2col expansion itself is fused into the kernel.
        x = jnp.pad(x, ((0, 0), (0, 0), (padding, padding), (padding, padding)))
    hp, wp = h + 2 * padding, w + 2 * padding

    w_flat = filters.astype(jnp.float32).reshape(-1)   # [co, ci, i, j] row-major
    b_flat = bias.astype(jnp.float32).reshape(-1)

    # ---- Row-tile (TOH) selection ------------------------------------------
    # Row tiles other than the full output height must be multiples of 8
    # (sublane rule); full-extent blocks are always legal.
    cands = sorted((t for t in range(8, out_h, 8) if out_h % t == 0), reverse=True)
    toh = out_h
    max_out_tile_bytes = 4 << 20
    if 4 * cout * toh * out_w > max_out_tile_bytes:
        for t in cands:
            if 4 * cout * t * out_w <= max_out_tile_bytes:
                toh = t
                break
    if n == 1 and cands:
        # v7x megacore: keep >= 2 "parallel" grid steps even for a single image.
        toh = min(toh, cands[0])
    n_row_tiles = out_h // toh
    grid = (n, n_row_tiles)

    # ---- VMEM budget ---------------------------------------------------------
    step_bytes = 4 * (cin * hp * wp + cout * toh * out_w)   # per-step working set
    try:
        vmem_cap = pltpu.get_tpu_info().vmem_capacity_bytes  # 64 MiB v7x, 128 MiB v5e/v6e
    except Exception:
        vmem_cap = 64 * 1024 * 1024
    vmem_limit = int(min(3 * vmem_cap // 4, max(32 * 1024 * 1024, 4 * step_bytes)))

    kernel = functools.partial(
        _conv2d_fused_kernel, cin=cin, cout=cout, kh=kh, kw=kw,
        toh=toh, ow=out_w, stride=stride)

    cost = pl.CostEstimate(
        flops=2 * n * cout * cin * kh * kw * out_h * out_w,
        transcendentals=0,
        bytes_accessed=4 * (n * cin * hp * wp + cout * cin * kh * kw + cout
                            + n * cout * out_h * out_w),
    )

    out = pl.pallas_call(
        kernel,
        out_shape=jax.ShapeDtypeStruct((n, cout, out_h, out_w), jnp.float32),
        grid_spec=pltpu.PrefetchScalarGridSpec(
            num_scalar_prefetch=0,
            grid=grid,
            in_specs=[
                pl.BlockSpec(memory_space=pltpu.MemorySpace.SMEM),   # filters (flat)
                pl.BlockSpec(memory_space=pltpu.MemorySpace.SMEM),   # bias
                # Whole padded image per n; index depends only on n, so the DMA
                # is not re-issued across row tiles of the same image.
                pl.BlockSpec((None, cin, hp, wp), lambda ni, ri: (ni, 0, 0, 0)),
            ],
            out_specs=pl.BlockSpec((None, cout, toh, out_w),
                                   lambda ni, ri: (ni, 0, ri, 0)),
        ),
        compiler_params=pltpu.CompilerParams(
            dimension_semantics=("parallel", "parallel"),
            vmem_limit_bytes=vmem_limit,
        ),
        cost_estimate=cost,
    )(w_flat, b_flat, x)
    return out


if __name__ == "__main__":
    # Module config: convolution2d(in_channels=4, out_channels=8,
    #                              kernel_size=(3, 3), stride=1, padding=1, bias=True)
    in_channels, out_channels = 4, 8
    kernel_size = (3, 3)
    stride, padding = 1, 1

    key = jax.random.PRNGKey(0)
    kx, kf, kb = jax.random.split(key, 3)

    x = jax.random.normal(kx, (2, in_channels, 16, 16), dtype=jnp.float32)
    filters = jax.random.normal(kf, (out_channels, in_channels, *kernel_size),
                                dtype=jnp.float32)            # ~ torch.randn
    bias = jax.random.normal(kb, (out_channels,), dtype=jnp.float32)

    out = convolution2d_forward(x, filters, bias, stride=stride, padding=padding)
    out = jax.block_until_ready(out)

    # Reference: XLA conv in full f32 (kernel accumulates in exact f32 on the VPU).
    ref = jax.lax.conv_general_dilated(
        x, filters, window_strides=(stride, stride),
        padding=[(padding, padding), (padding, padding)],
        dimension_numbers=("NCHW", "OIHW", "NCHW"),
        precision=jax.lax.Precision.HIGHEST,
    ) + bias.reshape(1, out_channels, 1, 1)

    assert out.shape == (2, out_channels, 16, 16)
    assert jnp.allclose(out, ref, atol=1e-3, rtol=1e-3), \
        float(jnp.max(jnp.abs(out - ref)))

    print("KERNEL_OK")
</pallas_src>

<mosaic_0001>
module attributes {stable_mosaic.version = 11 : i64} {
  func.func @_conv2d_fused_kernel(%arg0: i32, %arg1: i32, %arg2: memref<288xf32, #tpu.memory_space<smem>>, %arg3: memref<8xf32, #tpu.memory_space<smem>>, %arg4: memref<1x4x18x18xf32, #tpu.memory_space<vmem>>, %arg5: memref<1x8x16x16xf32, #tpu.memory_space<vmem>>) attributes {dimension_semantics = [#tpu.dimension_semantics<parallel>, #tpu.dimension_semantics<parallel>], iteration_bounds = array<i64: 2, 1>, scalar_prefetch = 0 : i64, scratch_operands = 0 : i64, tpu.core_type = #tpu.core_type<tc>, window_params = [{transform_indices = @transform_0, window_bounds = array<i64: 288>}, {transform_indices = @transform_1, window_bounds = array<i64: 8>}, {transform_indices = @transform_2, window_bounds = array<i64: 1, 4, 18, 18>}, {transform_indices = @transform_3, window_bounds = array<i64: 1, 8, 16, 16>}]} {
    %c16_i32 = arith.constant 16 : i32
    %0 = arith.muli %arg1, %c16_i32 : i32
    %1 = tpu.assume_multiple %0, 16 : i32
    %c0 = arith.constant 0 : index
    %2 = memref.load %arg3[%c0] : memref<8xf32, #tpu.memory_space<smem>>
    %3 = vector.broadcast %2 : f32 to vector<16x16xf32>
    %c1 = arith.constant 1 : index
    %4 = memref.load %arg3[%c1] : memref<8xf32, #tpu.memory_space<smem>>
    %5 = vector.broadcast %4 : f32 to vector<16x16xf32>
    %c2 = arith.constant 2 : index
    %6 = memref.load %arg3[%c2] : memref<8xf32, #tpu.memory_space<smem>>
    %7 = vector.broadcast %6 : f32 to vector<16x16xf32>
    %c3 = arith.constant 3 : index
    %8 = memref.load %arg3[%c3] : memref<8xf32, #tpu.memory_space<smem>>
    %9 = vector.broadcast %8 : f32 to vector<16x16xf32>
    %c4 = arith.constant 4 : index
    %10 = memref.load %arg3[%c4] : memref<8xf32, #tpu.memory_space<smem>>
    %11 = vector.broadcast %10 : f32 to vector<16x16xf32>
    %c5 = arith.constant 5 : index
    %12 = memref.load %arg3[%c5] : memref<8xf32, #tpu.memory_space<smem>>
    %13 = vector.broadcast %12 : f32 to vector<16x16xf32>
    %c6 = arith.constant 6 : index
    %14 = memref.load %arg3[%c6] : memref<8xf32, #tpu.memory_space<smem>>
    %15 = vector.broadcast %14 : f32 to vector<16x16xf32>
    %c7 = arith.constant 7 : index
    %16 = memref.load %arg3[%c7] : memref<8xf32, #tpu.memory_space<smem>>
    %17 = vector.broadcast %16 : f32 to vector<16x16xf32>
    %c0_i32 = arith.constant 0 : i32
    %18 = arith.addi %1, %c0_i32 : i32
    %c0_0 = arith.constant 0 : index
    %c0_1 = arith.constant 0 : index
    %19 = arith.index_cast %18 : i32 to index
    %c0_2 = arith.constant 0 : index
    %20 = vector.load %arg4[%c0_0, %c0_1, %19, %c0_2] : memref<1x4x18x18xf32, #tpu.memory_space<vmem>>, vector<1x4x16x16xf32>
    %21 = vector.shape_cast %20 : vector<1x4x16x16xf32> to vector<4x16x16xf32>
    %22 = vector.extract_strided_slice %21 {offsets = [0, 0, 0], sizes = [1, 16, 16], strides = [1, 1, 1]} : vector<4x16x16xf32> to vector<1x16x16xf32>
    %23 = vector.shape_cast %22 : vector<1x16x16xf32> to vector<16x16xf32>
    %c0_3 = arith.constant 0 : index
    %24 = memref.load %arg2[%c0_3] : memref<288xf32, #tpu.memory_space<smem>>
    %25 = vector.broadcast %24 : f32 to vector<16x16xf32>
    %26 = arith.mulf %25, %23 : vector<16x16xf32>
    %27 = arith.addf %3, %26 : vector<16x16xf32>
    %c36 = arith.constant 36 : index
    %28 = memref.load %arg2[%c36] : memref<288xf32, #tpu.memory_space<smem>>
    %29 = vector.broadcast %28 : f32 to vector<16x16xf32>
    %30 = arith.mulf %29, %23 : vector<16x16xf32>
    %31 = arith.addf %5, %30 : vector<16x16xf32>
    %c72 = arith.constant 72 : index
    %32 = memref.load %arg2[%c72] : memref<288xf32, #tpu.memory_space<smem>>
    %33 = vector.broadcast %32 : f32 to vector<16x16xf32>
    %34 = arith.mulf %33, %23 : vector<16x16xf32>
    %35 = arith.addf %7, %34 : vector<16x16xf32>
    %c108 = arith.constant 108 : index
    %36 = memref.load %arg2[%c108] : memref<288xf32, #tpu.memory_space<smem>>
    %37 = vector.broadcast %36 : f32 to vector<16x16xf32>
    %38 = arith.mulf %37, %23 : vector<16x16xf32>
    %39 = arith.addf %9, %38 : vector<16x16xf32>
    %c144 = arith.constant 144 : index
    %40 = memref.load %arg2[%c144] : memref<288xf32, #tpu.memory_space<smem>>
    %41 = vector.broadcast %40 : f32 to vector<16x16xf32>
    %42 = arith.mulf %41, %23 : vector<16x16xf32>
    %43 = arith.addf %11, %42 : vector<16x16xf32>
    %c180 = arith.constant 180 : index
    %44 = memref.load %arg2[%c180] : memref<288xf32, #tpu.memory_space<smem>>
    %45 = vector.broadcast %44 : f32 to vector<16x16xf32>
    %46 = arith.mulf %45, %23 : vector<16x16xf32>
    %47 = arith.addf %13, %46 : vector<16x16xf32>
    %c216 = arith.constant 216 : index
    %48 = memref.load %arg2[%c216] : memref<288xf32, #tpu.memory_space<smem>>
    %49 = vector.broadcast %48 : f32 to vector<16x16xf32>
    %50 = arith.mulf %49, %23 : vector<16x16xf32>
    %51 = arith.addf %15, %50 : vector<16x16xf32>
    %c252 = arith.constant 252 : index
    %52 = memref.load %arg2[%c252] : memref<288xf32, #tpu.memory_space<smem>>
    %53 = vector.broadcast %52 : f32 to vector<16x16xf32>
    %54 = arith.mulf %53, %23 : vector<16x16xf32>
    %55 = arith.addf %17, %54 : vector<16x16xf32>
    %56 = vector.extract_strided_slice %21 {offsets = [1, 0, 0], sizes = [1, 16, 16], strides = [1, 1, 1]} : vector<4x16x16xf32> to vector<1x16x16xf32>
    %57 = vector.shape_cast %56 : vector<1x16x16xf32> to vector<16x16xf32>
    %c9 = arith.constant 9 : index
    %58 = memref.load %arg2[%c9] : memref<288xf32, #tpu.memory_space<smem>>
    %59 = vector.broadcast %58 : f32 to vector<16x16xf32>
    %60 = arith.mulf %59, %57 : vector<16x16xf32>
    %61 = arith.addf %27, %60 : vector<16x16xf32>
    %c45 = arith.constant 45 : index
    %62 = memref.load %arg2[%c45] : memref<288xf32, #tpu.memory_space<smem>>
    %63 = vector.broadcast %62 : f32 to vector<16x16xf32>
    %64 = arith.mulf %63, %57 : vector<16x16xf32>
    %65 = arith.addf %31, %64 : vector<16x16xf32>
    %c81 = arith.constant 81 : index
    %66 = memref.load %arg2[%c81] : memref<288xf32, #tpu.memory_space<smem>>
    %67 = vector.broadcast %66 : f32 to vector<16x16xf32>
    %68 = arith.mulf %67, %57 : vector<16x16xf32>
    %69 = arith.addf %35, %68 : vector<16x16xf32>
    %c117 = arith.constant 117 : index
    %70 = memref.load %arg2[%c117] : memref<288xf32, #tpu.memory_space<smem>>
    %71 = vector.broadcast %70 : f32 to vector<16x16xf32>
    %72 = arith.mulf %71, %57 : vector<16x16xf32>
    %73 = arith.addf %39, %72 : vector<16x16xf32>
    %c153 = arith.constant 153 : index
    %74 = memref.load %arg2[%c153] : memref<288xf32, #tpu.memory_space<smem>>
    %75 = vector.broadcast %74 : f32 to vector<16x16xf32>
    %76 = arith.mulf %75, %57 : vector<16x16xf32>
    %77 = arith.addf %43, %76 : vector<16x16xf32>
    %c189 = arith.constant 189 : index
    %78 = memref.load %arg2[%c189] : memref<288xf32, #tpu.memory_space<smem>>
    %79 = vector.broadcast %78 : f32 to vector<16x16xf32>
    %80 = arith.mulf %79, %57 : vector<16x16xf32>
    %81 = arith.addf %47, %80 : vector<16x16xf32>
    %c225 = arith.constant 225 : index
    %82 = memref.load %arg2[%c225] : memref<288xf32, #tpu.memory_space<smem>>
    %83 = vector.broadcast %82 : f32 to vector<16x16xf32>
    %84 = arith.mulf %83, %57 : vector<16x16xf32>
    %85 = arith.addf %51, %84 : vector<16x16xf32>
    %c261 = arith.constant 261 : index
    %86 = memref.load %arg2[%c261] : memref<288xf32, #tpu.memory_space<smem>>
    %87 = vector.broadcast %86 : f32 to vector<16x16xf32>
    %88 = arith.mulf %87, %57 : vector<16x16xf32>
    %89 = arith.addf %55, %88 : vector<16x16xf32>
    %90 = vector.extract_strided_slice %21 {offsets = [2, 0, 0], sizes = [1, 16, 16], strides = [1, 1, 1]} : vector<4x16x16xf32> to vector<1x16x16xf32>
    %91 = vector.shape_cast %90 : vector<1x16x16xf32> to vector<16x16xf32>
    %c18 = arith.constant 18 : index
    %92 = memref.load %arg2[%c18] : memref<288xf32, #tpu.memory_space<smem>>
    %93 = vector.broadcast %92 : f32 to vector<16x16xf32>
    %94 = arith.mulf %93, %91 : vector<16x16xf32>
    %95 = arith.addf %61, %94 : vector<16x16xf32>
    %c54 = arith.constant 54 : index
    %96 = memref.load %arg2[%c54] : memref<288xf32, #tpu.memory_space<smem>>
    %97 = vector.broadcast %96 : f32 to vector<16x16xf32>
    %98 = arith.mulf %97, %91 : vector<16x16xf32>
    %99 = arith.addf %65, %98 : vector<16x16xf32>
    %c90 = arith.constant 90 : index
    %100 = memref.load %arg2[%c90] : memref<288xf32, #tpu.memory_space<smem>>
    %101 = vector.broadcast %100 : f32 to vector<16x16xf32>
    %102 = arith.mulf %101, %91 : vector<16x16xf32>
    %103 = arith.addf %69, %102 : vector<16x16xf32>
    %c126 = arith.constant 126 : index
    %104 = memref.load %arg2[%c126] : memref<288xf32, #tpu.memory_space<smem>>
    %105 = vector.broadcast %104 : f32 to vector<16x16xf32>
    %106 = arith.mulf %105, %91 : vector<16x16xf32>
    %107 = arith.addf %73, %106 : vector<16x16xf32>
    %c162 = arith.constant 162 : index
    %108 = memref.load %arg2[%c162] : memref<288xf32, #tpu.memory_space<smem>>
    %109 = vector.broadcast %108 : f32 to vector<16x16xf32>
    %110 = arith.mulf %109, %91 : vector<16x16xf32>
    %111 = arith.addf %77, %110 : vector<16x16xf32>
    %c198 = arith.constant 198 : index
    %112 = memref.load %arg2[%c198] : memref<288xf32, #tpu.memory_space<smem>>
    %113 = vector.broadcast %112 : f32 to vector<16x16xf32>
    %114 = arith.mulf %113, %91 : vector<16x16xf32>
    %115 = arith.addf %81, %114 : vector<16x16xf32>
    %c234 = arith.constant 234 : index
    %116 = memref.load %arg2[%c234] : memref<288xf32, #tpu.memory_space<smem>>
    %117 = vector.broadcast %116 : f32 to vector<16x16xf32>
    %118 = arith.mulf %117, %91 : vector<16x16xf32>
    %119 = arith.addf %85, %118 : vector<16x16xf32>
    %c270 = arith.constant 270 : index
    %120 = memref.load %arg2[%c270] : memref<288xf32, #tpu.memory_space<smem>>
    %121 = vector.broadcast %120 : f32 to vector<16x16xf32>
    %122 = arith.mulf %121, %91 : vector<16x16xf32>
    %123 = arith.addf %89, %122 : vector<16x16xf32>
    %124 = vector.extract_strided_slice %21 {offsets = [3, 0, 0], sizes = [1, 16, 16], strides = [1, 1, 1]} : vector<4x16x16xf32> to vector<1x16x16xf32>
    %125 = vector.shape_cast %124 : vector<1x16x16xf32> to vector<16x16xf32>
    %c27 = arith.constant 27 : index
    %126 = memref.load %arg2[%c27] : memref<288xf32, #tpu.memory_space<smem>>
    %127 = vector.broadcast %126 : f32 to vector<16x16xf32>
    %128 = arith.mulf %127, %125 : vector<16x16xf32>
    %129 = arith.addf %95, %128 : vector<16x16xf32>
    %c63 = arith.constant 63 : index
    %130 = memref.load %arg2[%c63] : memref<288xf32, #tpu.memory_space<smem>>
    %131 = vector.broadcast %130 : f32 to vector<16x16xf32>
    %132 = arith.mulf %131, %125 : vector<16x16xf32>
    %133 = arith.addf %99, %132 : vector<16x16xf32>
    %c99 = arith.constant 99 : index
    %134 = memref.load %arg2[%c99] : memref<288xf32, #tpu.memory_space<smem>>
    %135 = vector.broadcast %134 : f32 to vector<16x16xf32>
    %136 = arith.mulf %135, %125 : vector<16x16xf32>
    %137 = arith.addf %103, %136 : vector<16x16xf32>
    %c135 = arith.constant 135 : index
    %138 = memref.load %arg2[%c135] : memref<288xf32, #tpu.memory_space<smem>>
    %139 = vector.broadcast %138 : f32 to vector<16x16xf32>
    %140 = arith.mulf %139, %125 : vector<16x16xf32>
    %141 = arith.addf %107, %140 : vector<16x16xf32>
    %c171 = arith.constant 171 : index
    %142 = memref.load %arg2[%c171] : memref<288xf32, #tpu.memory_space<smem>>
    %143 = vector.broadcast %142 : f32 to vector<16x16xf32>
    %144 = arith.mulf %143, %125 : vector<16x16xf32>
    %145 = arith.addf %111, %144 : vector<16x16xf32>
    %c207 = arith.constant 207 : index
    %146 = memref.load %arg2[%c207] : memref<288xf32, #tpu.memory_space<smem>>
    %147 = vector.broadcast %146 : f32 to vector<16x16xf32>
    %148 = arith.mulf %147, %125 : vector<16x16xf32>
    %149 = arith.addf %115, %148 : vector<16x16xf32>
    %c243 = arith.constant 243 : index
    %150 = memref.load %arg2[%c243] : memref<288xf32, #tpu.memory_space<smem>>
    %151 = vector.broadcast %150 : f32 to vector<16x16xf32>
    %152 = arith.mulf %151, %125 : vector<16x16xf32>
    %153 = arith.addf %119, %152 : vector<16x16xf32>
    %c279 = arith.constant 279 : index
    %154 = memref.load %arg2[%c279] : memref<288xf32, #tpu.memory_space<smem>>
    %155 = vector.broadcast %154 : f32 to vector<16x16xf32>
    %156 = arith.mulf %155, %125 : vector<16x16xf32>
    %157 = arith.addf %123, %156 : vector<16x16xf32>
    %c0_i32_4 = arith.constant 0 : i32
    %158 = arith.addi %1, %c0_i32_4 : i32
    %c0_5 = arith.constant 0 : index
    %c0_6 = arith.constant 0 : index
    %159 = arith.index_cast %158 : i32 to index
    %c1_7 = arith.constant 1 : index
    %160 = vector.load %arg4[%c0_5, %c0_6, %159, %c1_7] : memref<1x4x18x18xf32, #tpu.memory_space<vmem>>, vector<1x4x16x16xf32>
    %161 = vector.shape_cast %160 : vector<1x4x16x16xf32> to vector<4x16x16xf32>
    %162 = vector.extract_strided_slice %161 {offsets = [0, 0, 0], sizes = [1, 16, 16], strides = [1, 1, 1]} : vector<4x16x16xf32> to vector<1x16x16xf32>
    %163 = vector.shape_cast %162 : vector<1x16x16xf32> to vector<16x16xf32>
    %c1_8 = arith.constant 1 : index
    %164 = memref.load %arg2[%c1_8] : memref<288xf32, #tpu.memory_space<smem>>
    %165 = vector.broadcast %164 : f32 to vector<16x16xf32>
    %166 = arith.mulf %165, %163 : vector<16x16xf32>
    %167 = arith.addf %129, %166 : vector<16x16xf32>
    %c37 = arith.constant 37 : index
    %168 = memref.load %arg2[%c37] : memref<288xf32, #tpu.memory_space<smem>>
    %169 = vector.broadcast %168 : f32 to vector<16x16xf32>
    %170 = arith.mulf %169, %163 : vector<16x16xf32>
    %171 = arith.addf %133, %170 : vector<16x16xf32>
    %c73 = arith.constant 73 : index
    %172 = memref.load %arg2[%c73] : memref<288xf32, #tpu.memory_space<smem>>
    %173 = vector.broadcast %172 : f32 to vector<16x16xf32>
    %174 = arith.mulf %173, %163 : vector<16x16xf32>
    %175 = arith.addf %137, %174 : vector<16x16xf32>
    %c109 = arith.constant 109 : index
    %176 = memref.load %arg2[%c109] : memref<288xf32, #tpu.memory_space<smem>>
    %177 = vector.broadcast %176 : f32 to vector<16x16xf32>
    %178 = arith.mulf %177, %163 : vector<16x16xf32>
    %179 = arith.addf %141, %178 : vector<16x16xf32>
    %c145 = arith.constant 145 : index
    %180 = memref.load %arg2[%c145] : memref<288xf32, #tpu.memory_space<smem>>
    %181 = vector.broadcast %180 : f32 to vector<16x16xf32>
    %182 = arith.mulf %181, %163 : vector<16x16xf32>
    %183 = arith.addf %145, %182 : vector<16x16xf32>
    %c181 = arith.constant 181 : index
    %184 = memref.load %arg2[%c181] : memref<288xf32, #tpu.memory_space<smem>>
    %185 = vector.broadcast %184 : f32 to vector<16x16xf32>
    %186 = arith.mulf %185, %163 : vector<16x16xf32>
    %187 = arith.addf %149, %186 : vector<16x16xf32>
    %c217 = arith.constant 217 : index
    %188 = memref.load %arg2[%c217] : memref<288xf32, #tpu.memory_space<smem>>
    %189 = vector.broadcast %188 : f32 to vector<16x16xf32>
    %190 = arith.mulf %189, %163 : vector<16x16xf32>
    %191 = arith.addf %153, %190 : vector<16x16xf32>
    %c253 = arith.constant 253 : index
    %192 = memref.load %arg2[%c253] : memref<288xf32, #tpu.memory_space<smem>>
    %193 = vector.broadcast %192 : f32 to vector<16x16xf32>
    %194 = arith.mulf %193, %163 : vector<16x16xf32>
    %195 = arith.addf %157, %194 : vector<16x16xf32>
    %196 = vector.extract_strided_slice %161 {offsets = [1, 0, 0], sizes = [1, 16, 16], strides = [1, 1, 1]} : vector<4x16x16xf32> to vector<1x16x16xf32>
    %197 = vector.shape_cast %196 : vector<1x16x16xf32> to vector<16x16xf32>
    %c10 = arith.constant 10 : index
    %198 = memref.load %arg2[%c10] : memref<288xf32, #tpu.memory_space<smem>>
    %199 = vector.broadcast %198 : f32 to vector<16x16xf32>
    %200 = arith.mulf %199, %197 : vector<16x16xf32>
    %201 = arith.addf %167, %200 : vector<16x16xf32>
    %c46 = arith.constant 46 : index
    %202 = memref.load %arg2[%c46] : memref<288xf32, #tpu.memory_space<smem>>
    %203 = vector.broadcast %202 : f32 to vector<16x16xf32>
    %204 = arith.mulf %203, %197 : vector<16x16xf32>
    %205 = arith.addf %171, %204 : vector<16x16xf32>
    %c82 = arith.constant 82 : index
    %206 = memref.load %arg2[%c82] : memref<288xf32, #tpu.memory_space<smem>>
    %207 = vector.broadcast %206 : f32 to vector<16x16xf32>
    %208 = arith.mulf %207, %197 : vector<16x16xf32>
    %209 = arith.addf %175, %208 : vector<16x16xf32>
    %c118 = arith.constant 118 : index
    %210 = memref.load %arg2[%c118] : memref<288xf32, #tpu.memory_space<smem>>
    %211 = vector.broadcast %210 : f32 to vector<16x16xf32>
    %212 = arith.mulf %211, %197 : vector<16x16xf32>
    %213 = arith.addf %179, %212 : vector<16x16xf32>
    %c154 = arith.constant 154 : index
    %214 = memref.load %arg2[%c154] : memref<288xf32, #tpu.memory_space<smem>>
    %215 = vector.broadcast %214 : f32 to vector<16x16xf32>
    %216 = arith.mulf %215, %197 : vector<16x16xf32>
    %217 = arith.addf %183, %216 : vector<16x16xf32>
    %c190 = arith.constant 190 : index
    %218 = memref.load %arg2[%c190] : memref<288xf32, #tpu.memory_space<smem>>
    %219 = vector.broadcast %218 : f32 to vector<16x16xf32>
    %220 = arith.mulf %219, %197 : vector<16x16xf32>
    %221 = arith.addf %187, %220 : vector<16x16xf32>
    %c226 = arith.constant 226 : index
    %222 = memref.load %arg2[%c226] : memref<288xf32, #tpu.memory_space<smem>>
    %223 = vector.broadcast %222 : f32 to vector<16x16xf32>
    %224 = arith.mulf %223, %197 : vector<16x16xf32>
    %225 = arith.addf %191, %224 : vector<16x16xf32>
    %c262 = arith.constant 262 : index
    %226 = memref.load %arg2[%c262] : memref<288xf32, #tpu.memory_space<smem>>
    %227 = vector.broadcast %226 : f32 to vector<16x16xf32>
    %228 = arith.mulf %227, %197 : vector<16x16xf32>
    %229 = arith.addf %195, %228 : vector<16x16xf32>
    %230 = vector.extract_strided_slice %161 {offsets = [2, 0, 0], sizes = [1, 16, 16], strides = [1, 1, 1]} : vector<4x16x16xf32> to vector<1x16x16xf32>
    %231 = vector.shape_cast %230 : vector<1x16x16xf32> to vector<16x16xf32>
    %c19 = arith.constant 19 : index
    %232 = memref.load %arg2[%c19] : memref<288xf32, #tpu.memory_space<smem>>
    %233 = vector.broadcast %232 : f32 to vector<16x16xf32>
    %234 = arith.mulf %233, %231 : vector<16x16xf32>
    %235 = arith.addf %201, %234 : vector<16x16xf32>
    %c55 = arith.constant 55 : index
    %236 = memref.load %arg2[%c55] : memref<288xf32, #tpu.memory_space<smem>>
    %237 = vector.broadcast %236 : f32 to vector<16x16xf32>
    %238 = arith.mulf %237, %231 : vector<16x16xf32>
    %239 = arith.addf %205, %238 : vector<16x16xf32>
    %c91 = arith.constant 91 : index
    %240 = memref.load %arg2[%c91] : memref<288xf32, #tpu.memory_space<smem>>
    %241 = vector.broadcast %240 : f32 to vector<16x16xf32>
    %242 = arith.mulf %241, %231 : vector<16x16xf32>
    %243 = arith.addf %209, %242 : vector<16x16xf32>
    %c127 = arith.constant 127 : index
    %244 = memref.load %arg2[%c127] : memref<288xf32, #tpu.memory_space<smem>>
    %245 = vector.broadcast %244 : f32 to vector<16x16xf32>
    %246 = arith.mulf %245, %231 : vector<16x16xf32>
    %247 = arith.addf %213, %246 : vector<16x16xf32>
    %c163 = arith.constant 163 : index
    %248 = memref.load %arg2[%c163] : memref<288xf32, #tpu.memory_space<smem>>
    %249 = vector.broadcast %248 : f32 to vector<16x16xf32>
    %250 = arith.mulf %249, %231 : vector<16x16xf32>
    %251 = arith.addf %217, %250 : vector<16x16xf32>
    %c199 = arith.constant 199 : index
    %252 = memref.load %arg2[%c199] : memref<288xf32, #tpu.memory_space<smem>>
    %253 = vector.broadcast %252 : f32 to vector<16x16xf32>
    %254 = arith.mulf %253, %231 : vector<16x16xf32>
    %255 = arith.addf %221, %254 : vector<16x16xf32>
    %c235 = arith.constant 235 : index
    %256 = memref.load %arg2[%c235] : memref<288xf32, #tpu.memory_space<smem>>
    %257 = vector.broadcast %256 : f32 to vector<16x16xf32>
    %258 = arith.mulf %257, %231 : vector<16x16xf32>
    %259 = arith.addf %225, %258 : vector<16x16xf32>
    %c271 = arith.constant 271 : index
    %260 = memref.load %arg2[%c271] : memref<288xf32, #tpu.memory_space<smem>>
    %261 = vector.broadcast %260 : f32 to vector<16x16xf32>
    %262 = arith.mulf %261, %231 : vector<16x16xf32>
    %263 = arith.addf %229, %262 : vector<16x16xf32>
    %264 = vector.extract_strided_slice %161 {offsets = [3, 0, 0], sizes = [1, 16, 16], strides = [1, 1, 1]} : vector<4x16x16xf32> to vector<1x16x16xf32>
    %265 = vector.shape_cast %264 : vector<1x16x16xf32> to vector<16x16xf32>
    %c28 = arith.constant 28 : index
    %266 = memref.load %arg2[%c28] : memref<288xf32, #tpu.memory_space<smem>>
    %267 = vector.broadcast %266 : f32 to vector<16x16xf32>
    %268 = arith.mulf %267, %265 : vector<16x16xf32>
    %269 = arith.addf %235, %268 : vector<16x16xf32>
    %c64 = arith.constant 64 : index
    %270 = memref.load %arg2[%c64] : memref<288xf32, #tpu.memory_space<smem>>
    %271 = vector.broadcast %270 : f32 to vector<16x16xf32>
    %272 = arith.mulf %271, %265 : vector<16x16xf32>
    %273 = arith.addf %239, %272 : vector<16x16xf32>
    %c100 = arith.constant 100 : index
    %274 = memref.load %arg2[%c100] : memref<288xf32, #tpu.memory_space<smem>>
    %275 = vector.broadcast %274 : f32 to vector<16x16xf32>
    %276 = arith.mulf %275, %265 : vector<16x16xf32>
    %277 = arith.addf %243, %276 : vector<16x16xf32>
    %c136 = arith.constant 136 : index
    %278 = memref.load %arg2[%c136] : memref<288xf32, #tpu.memory_space<smem>>
    %279 = vector.broadcast %278 : f32 to vector<16x16xf32>
    %280 = arith.mulf %279, %265 : vector<16x16xf32>
    %281 = arith.addf %247, %280 : vector<16x16xf32>
    %c172 = arith.constant 172 : index
    %282 = memref.load %arg2[%c172] : memref<288xf32, #tpu.memory_space<smem>>
    %283 = vector.broadcast %282 : f32 to vector<16x16xf32>
    %284 = arith.mulf %283, %265 : vector<16x16xf32>
    %285 = arith.addf %251, %284 : vector<16x16xf32>
    %c208 = arith.constant 208 : index
    %286 = memref.load %arg2[%c208] : memref<288xf32, #tpu.memory_space<smem>>
    %287 = vector.broadcast %286 : f32 to vector<16x16xf32>
    %288 = arith.mulf %287, %265 : vector<16x16xf32>
    %289 = arith.addf %255, %288 : vector<16x16xf32>
    %c244 = arith.constant 244 : index
    %290 = memref.load %arg2[%c244] : memref<288xf32, #tpu.memory_space<smem>>
    %291 = vector.broadcast %290 : f32 to vector<16x16xf32>
    %292 = arith.mulf %291, %265 : vector<16x16xf32>
    %293 = arith.addf %259, %292 : vector<16x16xf32>
    %c280 = arith.constant 280 : index
    %294 = memref.load %arg2[%c280] : memref<288xf32, #tpu.memory_space<smem>>
    %295 = vector.broadcast %294 : f32 to vector<16x16xf32>
    %296 = arith.mulf %295, %265 : vector<16x16xf32>
    %297 = arith.addf %263, %296 : vector<16x16xf32>
    %c0_i32_9 = arith.constant 0 : i32
    %298 = arith.addi %1, %c0_i32_9 : i32
    %c0_10 = arith.constant 0 : index
    %c0_11 = arith.constant 0 : index
    %299 = arith.index_cast %298 : i32 to index
    %c2_12 = arith.constant 2 : index
    %300 = vector.load %arg4[%c0_10, %c0_11, %299, %c2_12] : memref<1x4x18x18xf32, #tpu.memory_space<vmem>>, vector<1x4x16x16xf32>
    %301 = vector.shape_cast %300 : vector<1x4x16x16xf32> to vector<4x16x16xf32>
    %302 = vector.extract_strided_slice %301 {offsets = [0, 0, 0], sizes = [1, 16, 16], strides = [1, 1, 1]} : vector<4x16x16xf32> to vector<1x16x16xf32>
    %303 = vector.shape_cast %302 : vector<1x16x16xf32> to vector<16x16xf32>
    %c2_13 = arith.constant 2 : index
    %304 = memref.load %arg2[%c2_13] : memref<288xf32, #tpu.memory_space<smem>>
    %305 = vector.broadcast %304 : f32 to vector<16x16xf32>
    %306 = arith.mulf %305, %303 : vector<16x16xf32>
    %307 = arith.addf %269, %306 : vector<16x16xf32>
    %c38 = arith.constant 38 : index
    %308 = memref.load %arg2[%c38] : memref<288xf32, #tpu.memory_space<smem>>
    %309 = vector.broadcast %308 : f32 to vector<16x16xf32>
    %310 = arith.mulf %309, %303 : vector<16x16xf32>
    %311 = arith.addf %273, %310 : vector<16x16xf32>
    %c74 = arith.constant 74 : index
    %312 = memref.load %arg2[%c74] : memref<288xf32, #tpu.memory_space<smem>>
    %313 = vector.broadcast %312 : f32 to vector<16x16xf32>
    %314 = arith.mulf %313, %303 : vector<16x16xf32>
    %315 = arith.addf %277, %314 : vector<16x16xf32>
    %c110 = arith.constant 110 : index
    %316 = memref.load %arg2[%c110] : memref<288xf32, #tpu.memory_space<smem>>
    %317 = vector.broadcast %316 : f32 to vector<16x16xf32>
    %318 = arith.mulf %317, %303 : vector<16x16xf32>
    %319 = arith.addf %281, %318 : vector<16x16xf32>
    %c146 = arith.constant 146 : index
    %320 = memref.load %arg2[%c146] : memref<288xf32, #tpu.memory_space<smem>>
    %321 = vector.broadcast %320 : f32 to vector<16x16xf32>
    %322 = arith.mulf %321, %303 : vector<16x16xf32>
    %323 = arith.addf %285, %322 : vector<16x16xf32>
    %c182 = arith.constant 182 : index
    %324 = memref.load %arg2[%c182] : memref<288xf32, #tpu.memory_space<smem>>
    %325 = vector.broadcast %324 : f32 to vector<16x16xf32>
    %326 = arith.mulf %325, %303 : vector<16x16xf32>
    %327 = arith.addf %289, %326 : vector<16x16xf32>
    %c218 = arith.constant 218 : index
    %328 = memref.load %arg2[%c218] : memref<288xf32, #tpu.memory_space<smem>>
    %329 = vector.broadcast %328 : f32 to vector<16x16xf32>
    %330 = arith.mulf %329, %303 : vector<16x16xf32>
    %331 = arith.addf %293, %330 : vector<16x16xf32>
    %c254 = arith.constant 254 : index
    %332 = memref.load %arg2[%c254] : memref<288xf32, #tpu.memory_space<smem>>
    %333 = vector.broadcast %332 : f32 to vector<16x16xf32>
    %334 = arith.mulf %333, %303 : vector<16x16xf32>
    %335 = arith.addf %297, %334 : vector<16x16xf32>
    %336 = vector.extract_strided_slice %301 {offsets = [1, 0, 0], sizes = [1, 16, 16], strides = [1, 1, 1]} : vector<4x16x16xf32> to vector<1x16x16xf32>
    %337 = vector.shape_cast %336 : vector<1x16x16xf32> to vector<16x16xf32>
    %c11 = arith.constant 11 : index
    %338 = memref.load %arg2[%c11] : memref<288xf32, #tpu.memory_space<smem>>
    %339 = vector.broadcast %338 : f32 to vector<16x16xf32>
    %340 = arith.mulf %339, %337 : vector<16x16xf32>
    %341 = arith.addf %307, %340 : vector<16x16xf32>
    %c47 = arith.constant 47 : index
    %342 = memref.load %arg2[%c47] : memref<288xf32, #tpu.memory_space<smem>>
    %343 = vector.broadcast %342 : f32 to vector<16x16xf32>
    %344 = arith.mulf %343, %337 : vector<16x16xf32>
    %345 = arith.addf %311, %344 : vector<16x16xf32>
    %c83 = arith.constant 83 : index
    %346 = memref.load %arg2[%c83] : memref<288xf32, #tpu.memory_space<smem>>
    %347 = vector.broadcast %346 : f32 to vector<16x16xf32>
    %348 = arith.mulf %347, %337 : vector<16x16xf32>
    %349 = arith.addf %315, %348 : vector<16x16xf32>
    %c119 = arith.constant 119 : index
    %350 = memref.load %arg2[%c119] : memref<288xf32, #tpu.memory_space<smem>>
    %351 = vector.broadcast %350 : f32 to vector<16x16xf32>
    %352 = arith.mulf %351, %337 : vector<16x16xf32>
    %353 = arith.addf %319, %352 : vector<16x16xf32>
    %c155 = arith.constant 155 : index
    %354 = memref.load %arg2[%c155] : memref<288xf32, #tpu.memory_space<smem>>
    %355 = vector.broadcast %354 : f32 to vector<16x16xf32>
    %356 = arith.mulf %355, %337 : vector<16x16xf32>
    %357 = arith.addf %323, %356 : vector<16x16xf32>
    %c191 = arith.constant 191 : index
    %358 = memref.load %arg2[%c191] : memref<288xf32, #tpu.memory_space<smem>>
    %359 = vector.broadcast %358 : f32 to vector<16x16xf32>
    %360 = arith.mulf %359, %337 : vector<16x16xf32>
    %361 = arith.addf %327, %360 : vector<16x16xf32>
    %c227 = arith.constant 227 : index
    %362 = memref.load %arg2[%c227] : memref<288xf32, #tpu.memory_space<smem>>
    %363 = vector.broadcast %362 : f32 to vector<16x16xf32>
    %364 = arith.mulf %363, %337 : vector<16x16xf32>
    %365 = arith.addf %331, %364 : vector<16x16xf32>
    %c263 = arith.constant 263 : index
    %366 = memref.load %arg2[%c263] : memref<288xf32, #tpu.memory_space<smem>>
    %367 = vector.broadcast %366 : f32 to vector<16x16xf32>
    %368 = arith.mulf %367, %337 : vector<16x16xf32>
    %369 = arith.addf %335, %368 : vector<16x16xf32>
    %370 = vector.extract_strided_slice %301 {offsets = [2, 0, 0], sizes = [1, 16, 16], strides = [1, 1, 1]} : vector<4x16x16xf32> to vector<1x16x16xf32>
    %371 = vector.shape_cast %370 : vector<1x16x16xf32> to vector<16x16xf32>
    %c20 = arith.constant 20 : index
    %372 = memref.load %arg2[%c20] : memref<288xf32, #tpu.memory_space<smem>>
    %373 = vector.broadcast %372 : f32 to vector<16x16xf32>
    %374 = arith.mulf %373, %371 : vector<16x16xf32>
    %375 = arith.addf %341, %374 : vector<16x16xf32>
    %c56 = arith.constant 56 : index
    %376 = memref.load %arg2[%c56] : memref<288xf32, #tpu.memory_space<smem>>
    %377 = vector.broadcast %376 : f32 to vector<16x16xf32>
    %378 = arith.mulf %377, %371 : vector<16x16xf32>
    %379 = arith.addf %345, %378 : vector<16x16xf32>
    %c92 = arith.constant 92 : index
    %380 = memref.load %arg2[%c92] : memref<288xf32, #tpu.memory_space<smem>>
    %381 = vector.broadcast %380 : f32 to vector<16x16xf32>
    %382 = arith.mulf %381, %371 : vector<16x16xf32>
    %383 = arith.addf %349, %382 : vector<16x16xf32>
    %c128 = arith.constant 128 : index
    %384 = memref.load %arg2[%c128] : memref<288xf32, #tpu.memory_space<smem>>
    %385 = vector.broadcast %384 : f32 to vector<16x16xf32>
    %386 = arith.mulf %385, %371 : vector<16x16xf32>
    %387 = arith.addf %353, %386 : vector<16x16xf32>
    %c164 = arith.constant 164 : index
    %388 = memref.load %arg2[%c164] : memref<288xf32, #tpu.memory_space<smem>>
    %389 = vector.broadcast %388 : f32 to vector<16x16xf32>
    %390 = arith.mulf %389, %371 : vector<16x16xf32>
    %391 = arith.addf %357, %390 : vector<16x16xf32>
    %c200 = arith.constant 200 : index
    %392 = memref.load %arg2[%c200] : memref<288xf32, #tpu.memory_space<smem>>
    %393 = vector.broadcast %392 : f32 to vector<16x16xf32>
    %394 = arith.mulf %393, %371 : vector<16x16xf32>
    %395 = arith.addf %361, %394 : vector<16x16xf32>
    %c236 = arith.constant 236 : index
    %396 = memref.load %arg2[%c236] : memref<288xf32, #tpu.memory_space<smem>>
    %397 = vector.broadcast %396 : f32 to vector<16x16xf32>
    %398 = arith.mulf %397, %371 : vector<16x16xf32>
    %399 = arith.addf %365, %398 : vector<16x16xf32>
    %c272 = arith.constant 272 : index
    %400 = memref.load %arg2[%c272] : memref<288xf32, #tpu.memory_space<smem>>
    %401 = vector.broadcast %400 : f32 to vector<16x16xf32>
    %402 = arith.mulf %401, %371 : vector<16x16xf32>
    %403 = arith.addf %369, %402 : vector<16x16xf32>
    %404 = vector.extract_strided_slice %301 {offsets = [3, 0, 0], sizes = [1, 16, 16], strides = [1, 1, 1]} : vector<4x16x16xf32> to vector<1x16x16xf32>
    %405 = vector.shape_cast %404 : vector<1x16x16xf32> to vector<16x16xf32>
    %c29 = arith.constant 29 : index
    %406 = memref.load %arg2[%c29] : memref<288xf32, #tpu.memory_space<smem>>
    %407 = vector.broadcast %406 : f32 to vector<16x16xf32>
    %408 = arith.mulf %407, %405 : vector<16x16xf32>
    %409 = arith.addf %375, %408 : vector<16x16xf32>
    %c65 = arith.constant 65 : index
    %410 = memref.load %arg2[%c65] : memref<288xf32, #tpu.memory_space<smem>>
    %411 = vector.broadcast %410 : f32 to vector<16x16xf32>
    %412 = arith.mulf %411, %405 : vector<16x16xf32>
    %413 = arith.addf %379, %412 : vector<16x16xf32>
    %c101 = arith.constant 101 : index
    %414 = memref.load %arg2[%c101] : memref<288xf32, #tpu.memory_space<smem>>
    %415 = vector.broadcast %414 : f32 to vector<16x16xf32>
    %416 = arith.mulf %415, %405 : vector<16x16xf32>
    %417 = arith.addf %383, %416 : vector<16x16xf32>
    %c137 = arith.constant 137 : index
    %418 = memref.load %arg2[%c137] : memref<288xf32, #tpu.memory_space<smem>>
    %419 = vector.broadcast %418 : f32 to vector<16x16xf32>
    %420 = arith.mulf %419, %405 : vector<16x16xf32>
    %421 = arith.addf %387, %420 : vector<16x16xf32>
    %c173 = arith.constant 173 : index
    %422 = memref.load %arg2[%c173] : memref<288xf32, #tpu.memory_space<smem>>
    %423 = vector.broadcast %422 : f32 to vector<16x16xf32>
    %424 = arith.mulf %423, %405 : vector<16x16xf32>
    %425 = arith.addf %391, %424 : vector<16x16xf32>
    %c209 = arith.constant 209 : index
    %426 = memref.load %arg2[%c209] : memref<288xf32, #tpu.memory_space<smem>>
    %427 = vector.broadcast %426 : f32 to vector<16x16xf32>
    %428 = arith.mulf %427, %405 : vector<16x16xf32>
    %429 = arith.addf %395, %428 : vector<16x16xf32>
    %c245 = arith.constant 245 : index
    %430 = memref.load %arg2[%c245] : memref<288xf32, #tpu.memory_space<smem>>
    %431 = vector.broadcast %430 : f32 to vector<16x16xf32>
    %432 = arith.mulf %431, %405 : vector<16x16xf32>
    %433 = arith.addf %399, %432 : vector<16x16xf32>
    %c281 = arith.constant 281 : index
    %434 = memref.load %arg2[%c281] : memref<288xf32, #tpu.memory_space<smem>>
    %435 = vector.broadcast %434 : f32 to vector<16x16xf32>
    %436 = arith.mulf %435, %405 : vector<16x16xf32>
    %437 = arith.addf %403, %436 : vector<16x16xf32>
    %c1_i32 = arith.constant 1 : i32
    %438 = arith.addi %1, %c1_i32 : i32
    %c0_14 = arith.constant 0 : index
    %c0_15 = arith.constant 0 : index
    %439 = arith.index_cast %438 : i32 to index
    %c0_16 = arith.constant 0 : index
    %440 = vector.load %arg4[%c0_14, %c0_15, %439, %c0_16] : memref<1x4x18x18xf32, #tpu.memory_space<vmem>>, vector<1x4x16x16xf32>
    %441 = vector.shape_cast %440 : vector<1x4x16x16xf32> to vector<4x16x16xf32>
    %442 = vector.extract_strided_slice %441 {offsets = [0, 0, 0], sizes = [1, 16, 16], strides = [1, 1, 1]} : vector<4x16x16xf32> to vector<1x16x16xf32>
    %443 = vector.shape_cast %442 : vector<1x16x16xf32> to vector<16x16xf32>
    %c3_17 = arith.constant 3 : index
    %444 = memref.load %arg2[%c3_17] : memref<288xf32, #tpu.memory_space<smem>>
    %445 = vector.broadcast %444 : f32 to vector<16x16xf32>
    %446 = arith.mulf %445, %443 : vector<16x16xf32>
    %447 = arith.addf %409, %446 : vector<16x16xf32>
    %c39 = arith.constant 39 : index
    %448 = memref.load %arg2[%c39] : memref<288xf32, #tpu.memory_space<smem>>
    %449 = vector.broadcast %448 : f32 to vector<16x16xf32>
    %450 = arith.mulf %449, %443 : vector<16x16xf32>
    %451 = arith.addf %413, %450 : vector<16x16xf32>
    %c75 = arith.constant 75 : index
    %452 = memref.load %arg2[%c75] : memref<288xf32, #tpu.memory_space<smem>>
    %453 = vector.broadcast %452 : f32 to vector<16x16xf32>
    %454 = arith.mulf %453, %443 : vector<16x16xf32>
    %455 = arith.addf %417, %454 : vector<16x16xf32>
    %c111 = arith.constant 111 : index
    %456 = memref.load %arg2[%c111] : memref<288xf32, #tpu.memory_space<smem>>
    %457 = vector.broadcast %456 : f32 to vector<16x16xf32>
    %458 = arith.mulf %457, %443 : vector<16x16xf32>
    %459 = arith.addf %421, %458 : vector<16x16xf32>
    %c147 = arith.constant 147 : index
    %460 = memref.load %arg2[%c147] : memref<288xf32, #tpu.memory_space<smem>>
    %461 = vector.broadcast %460 : f32 to vector<16x16xf32>
    %462 = arith.mulf %461, %443 : vector<16x16xf32>
    %463 = arith.addf %425, %462 : vector<16x16xf32>
    %c183 = arith.constant 183 : index
    %464 = memref.load %arg2[%c183] : memref<288xf32, #tpu.memory_space<smem>>
    %465 = vector.broadcast %464 : f32 to vector<16x16xf32>
    %466 = arith.mulf %465, %443 : vector<16x16xf32>
    %467 = arith.addf %429, %466 : vector<16x16xf32>
    %c219 = arith.constant 219 : index
    %468 = memref.load %arg2[%c219] : memref<288xf32, #tpu.memory_space<smem>>
    %469 = vector.broadcast %468 : f32 to vector<16x16xf32>
    %470 = arith.mulf %469, %443 : vector<16x16xf32>
    %471 = arith.addf %433, %470 : vector<16x16xf32>
    %c255 = arith.constant 255 : index
    %472 = memref.load %arg2[%c255] : memref<288xf32, #tpu.memory_space<smem>>
    %473 = vector.broadcast %472 : f32 to vector<16x16xf32>
    %474 = arith.mulf %473, %443 : vector<16x16xf32>
    %475 = arith.addf %437, %474 : vector<16x16xf32>
    %476 = vector.extract_strided_slice %441 {offsets = [1, 0, 0], sizes = [1, 16, 16], strides = [1, 1, 1]} : vector<4x16x16xf32> to vector<1x16x16xf32>
    %477 = vector.shape_cast %476 : vector<1x16x16xf32> to vector<16x16xf32>
    %c12 = arith.constant 12 : index
    %478 = memref.load %arg2[%c12] : memref<288xf32, #tpu.memory_space<smem>>
    %479 = vector.broadcast %478 : f32 to vector<16x16xf32>
    %480 = arith.mulf %479, %477 : vector<16x16xf32>
    %481 = arith.addf %447, %480 : vector<16x16xf32>
    %c48 = arith.constant 48 : index
    %482 = memref.load %arg2[%c48] : memref<288xf32, #tpu.memory_space<smem>>
    %483 = vector.broadcast %482 : f32 to vector<16x16xf32>
    %484 = arith.mulf %483, %477 : vector<16x16xf32>
    %485 = arith.addf %451, %484 : vector<16x16xf32>
    %c84 = arith.constant 84 : index
    %486 = memref.load %arg2[%c84] : memref<288xf32, #tpu.memory_space<smem>>
    %487 = vector.broadcast %486 : f32 to vector<16x16xf32>
    %488 = arith.mulf %487, %477 : vector<16x16xf32>
    %489 = arith.addf %455, %488 : vector<16x16xf32>
    %c120 = arith.constant 120 : index
    %490 = memref.load %arg2[%c120] : memref<288xf32, #tpu.memory_space<smem>>
    %491 = vector.broadcast %490 : f32 to vector<16x16xf32>
    %492 = arith.mulf %491, %477 : vector<16x16xf32>
    %493 = arith.addf %459, %492 : vector<16x16xf32>
    %c156 = arith.constant 156 : index
    %494 = memref.load %arg2[%c156] : memref<288xf32, #tpu.memory_space<smem>>
    %495 = vector.broadcast %494 : f32 to vector<16x16xf32>
    %496 = arith.mulf %495, %477 : vector<16x16xf32>
    %497 = arith.addf %463, %496 : vector<16x16xf32>
    %c192 = arith.constant 192 : index
    %498 = memref.load %arg2[%c192] : memref<288xf32, #tpu.memory_space<smem>>
    %499 = vector.broadcast %498 : f32 to vector<16x16xf32>
    %500 = arith.mulf %499, %477 : vector<16x16xf32>
    %501 = arith.addf %467, %500 : vector<16x16xf32>
    %c228 = arith.constant 228 : index
    %502 = memref.load %arg2[%c228] : memref<288xf32, #tpu.memory_space<smem>>
    %503 = vector.broadcast %502 : f32 to vector<16x16xf32>
    %504 = arith.mulf %503, %477 : vector<16x16xf32>
    %505 = arith.addf %471, %504 : vector<16x16xf32>
    %c264 = arith.constant 264 : index
    %506 = memref.load %arg2[%c264] : memref<288xf32, #tpu.memory_space<smem>>
    %507 = vector.broadcast %506 : f32 to vector<16x16xf32>
    %508 = arith.mulf %507, %477 : vector<16x16xf32>
    %509 = arith.addf %475, %508 : vector<16x16xf32>
    %510 = vector.extract_strided_slice %441 {offsets = [2, 0, 0], sizes = [1, 16, 16], strides = [1, 1, 1]} : vector<4x16x16xf32> to vector<1x16x16xf32>
    %511 = vector.shape_cast %510 : vector<1x16x16xf32> to vector<16x16xf32>
    %c21 = arith.constant 21 : index
    %512 = memref.load %arg2[%c21] : memref<288xf32, #tpu.memory_space<smem>>
    %513 = vector.broadcast %512 : f32 to vector<16x16xf32>
    %514 = arith.mulf %513, %511 : vector<16x16xf32>
    %515 = arith.addf %481, %514 : vector<16x16xf32>
    %c57 = arith.constant 57 : index
    %516 = memref.load %arg2[%c57] : memref<288xf32, #tpu.memory_space<smem>>
    %517 = vector.broadcast %516 : f32 to vector<16x16xf32>
    %518 = arith.mulf %517, %511 : vector<16x16xf32>
    %519 = arith.addf %485, %518 : vector<16x16xf32>
    %c93 = arith.constant 93 : index
    %520 = memref.load %arg2[%c93] : memref<288xf32, #tpu.memory_space<smem>>
    %521 = vector.broadcast %520 : f32 to vector<16x16xf32>
    %522 = arith.mulf %521, %511 : vector<16x16xf32>
    %523 = arith.addf %489, %522 : vector<16x16xf32>
    %c129 = arith.constant 129 : index
    %524 = memref.load %arg2[%c129] : memref<288xf32, #tpu.memory_space<smem>>
    %525 = vector.broadcast %524 : f32 to vector<16x16xf32>
    %526 = arith.mulf %525, %511 : vector<16x16xf32>
    %527 = arith.addf %493, %526 : vector<16x16xf32>
    %c165 = arith.constant 165 : index
    %528 = memref.load %arg2[%c165] : memref<288xf32, #tpu.memory_space<smem>>
    %529 = vector.broadcast %528 : f32 to vector<16x16xf32>
    %530 = arith.mulf %529, %511 : vector<16x16xf32>
    %531 = arith.addf %497, %530 : vector<16x16xf32>
    %c201 = arith.constant 201 : index
    %532 = memref.load %arg2[%c201] : memref<288xf32, #tpu.memory_space<smem>>
    %533 = vector.broadcast %532 : f32 to vector<16x16xf32>
    %534 = arith.mulf %533, %511 : vector<16x16xf32>
    %535 = arith.addf %501, %534 : vector<16x16xf32>
    %c237 = arith.constant 237 : index
    %536 = memref.load %arg2[%c237] : memref<288xf32, #tpu.memory_space<smem>>
    %537 = vector.broadcast %536 : f32 to vector<16x16xf32>
    %538 = arith.mulf %537, %511 : vector<16x16xf32>
    %539 = arith.addf %505, %538 : vector<16x16xf32>
    %c273 = arith.constant 273 : index
    %540 = memref.load %arg2[%c273] : memref<288xf32, #tpu.memory_space<smem>>
    %541 = vector.broadcast %540 : f32 to vector<16x16xf32>
    %542 = arith.mulf %541, %511 : vector<16x16xf32>
    %543 = arith.addf %509, %542 : vector<16x16xf32>
    %544 = vector.extract_strided_slice %441 {offsets = [3, 0, 0], sizes = [1, 16, 16], strides = [1, 1, 1]} : vector<4x16x16xf32> to vector<1x16x16xf32>
    %545 = vector.shape_cast %544 : vector<1x16x16xf32> to vector<16x16xf32>
    %c30 = arith.constant 30 : index
    %546 = memref.load %arg2[%c30] : memref<288xf32, #tpu.memory_space<smem>>
    %547 = vector.broadcast %546 : f32 to vector<16x16xf32>
    %548 = arith.mulf %547, %545 : vector<16x16xf32>
    %549 = arith.addf %515, %548 : vector<16x16xf32>
    %c66 = arith.constant 66 : index
    %550 = memref.load %arg2[%c66] : memref<288xf32, #tpu.memory_space<smem>>
    %551 = vector.broadcast %550 : f32 to vector<16x16xf32>
    %552 = arith.mulf %551, %545 : vector<16x16xf32>
    %553 = arith.addf %519, %552 : vector<16x16xf32>
    %c102 = arith.constant 102 : index
    %554 = memref.load %arg2[%c102] : memref<288xf32, #tpu.memory_space<smem>>
    %555 = vector.broadcast %554 : f32 to vector<16x16xf32>
    %556 = arith.mulf %555, %545 : vector<16x16xf32>
    %557 = arith.addf %523, %556 : vector<16x16xf32>
    %c138 = arith.constant 138 : index
    %558 = memref.load %arg2[%c138] : memref<288xf32, #tpu.memory_space<smem>>
    %559 = vector.broadcast %558 : f32 to vector<16x16xf32>
    %560 = arith.mulf %559, %545 : vector<16x16xf32>
    %561 = arith.addf %527, %560 : vector<16x16xf32>
    %c174 = arith.constant 174 : index
    %562 = memref.load %arg2[%c174] : memref<288xf32, #tpu.memory_space<smem>>
    %563 = vector.broadcast %562 : f32 to vector<16x16xf32>
    %564 = arith.mulf %563, %545 : vector<16x16xf32>
    %565 = arith.addf %531, %564 : vector<16x16xf32>
    %c210 = arith.constant 210 : index
    %566 = memref.load %arg2[%c210] : memref<288xf32, #tpu.memory_space<smem>>
    %567 = vector.broadcast %566 : f32 to vector<16x16xf32>
    %568 = arith.mulf %567, %545 : vector<16x16xf32>
    %569 = arith.addf %535, %568 : vector<16x16xf32>
    %c246 = arith.constant 246 : index
    %570 = memref.load %arg2[%c246] : memref<288xf32, #tpu.memory_space<smem>>
    %571 = vector.broadcast %570 : f32 to vector<16x16xf32>
    %572 = arith.mulf %571, %545 : vector<16x16xf32>
    %573 = arith.addf %539, %572 : vector<16x16xf32>
    %c282 = arith.constant 282 : index
    %574 = memref.load %arg2[%c282] : memref<288xf32, #tpu.memory_space<smem>>
    %575 = vector.broadcast %574 : f32 to vector<16x16xf32>
    %576 = arith.mulf %575, %545 : vector<16x16xf32>
    %577 = arith.addf %543, %576 : vector<16x16xf32>
    %c1_i32_18 = arith.constant 1 : i32
    %578 = arith.addi %1, %c1_i32_18 : i32
    %c0_19 = arith.constant 0 : index
    %c0_20 = arith.constant 0 : index
    %579 = arith.index_cast %578 : i32 to index
    %c1_21 = arith.constant 1 : index
    %580 = vector.load %arg4[%c0_19, %c0_20, %579, %c1_21] : memref<1x4x18x18xf32, #tpu.memory_space<vmem>>, vector<1x4x16x16xf32>
    %581 = vector.shape_cast %580 : vector<1x4x16x16xf32> to vector<4x16x16xf32>
    %582 = vector.extract_strided_slice %581 {offsets = [0, 0, 0], sizes = [1, 16, 16], strides = [1, 1, 1]} : vector<4x16x16xf32> to vector<1x16x16xf32>
    %583 = vector.shape_cast %582 : vector<1x16x16xf32> to vector<16x16xf32>
    %c4_22 = arith.constant 4 : index
    %584 = memref.load %arg2[%c4_22] : memref<288xf32, #tpu.memory_space<smem>>
    %585 = vector.broadcast %584 : f32 to vector<16x16xf32>
    %586 = arith.mulf %585, %583 : vector<16x16xf32>
    %587 = arith.addf %549, %586 : vector<16x16xf32>
    %c40 = arith.constant 40 : index
    %588 = memref.load %arg2[%c40] : memref<288xf32, #tpu.memory_space<smem>>
    %589 = vector.broadcast %588 : f32 to vector<16x16xf32>
    %590 = arith.mulf %589, %583 : vector<16x16xf32>
    %591 = arith.addf %553, %590 : vector<16x16xf32>
    %c76 = arith.constant 76 : index
    %592 = memref.load %arg2[%c76] : memref<288xf32, #tpu.memory_space<smem>>
    %593 = vector.broadcast %592 : f32 to vector<16x16xf32>
    %594 = arith.mulf %593, %583 : vector<16x16xf32>
    %595 = arith.addf %557, %594 : vector<16x16xf32>
    %c112 = arith.constant 112 : index
    %596 = memref.load %arg2[%c112] : memref<288xf32, #tpu.memory_space<smem>>
    %597 = vector.broadcast %596 : f32 to vector<16x16xf32>
    %598 = arith.mulf %597, %583 : vector<16x16xf32>
    %599 = arith.addf %561, %598 : vector<16x16xf32>
    %c148 = arith.constant 148 : index
    %600 = memref.load %arg2[%c148] : memref<288xf32, #tpu.memory_space<smem>>
    %601 = vector.broadcast %600 : f32 to vector<16x16xf32>
    %602 = arith.mulf %601, %583 : vector<16x16xf32>
    %603 = arith.addf %565, %602 : vector<16x16xf32>
    %c184 = arith.constant 184 : index
    %604 = memref.load %arg2[%c184] : memref<288xf32, #tpu.memory_space<smem>>
    %605 = vector.broadcast %604 : f32 to vector<16x16xf32>
    %606 = arith.mulf %605, %583 : vector<16x16xf32>
    %607 = arith.addf %569, %606 : vector<16x16xf32>
    %c220 = arith.constant 220 : index
    %608 = memref.load %arg2[%c220] : memref<288xf32, #tpu.memory_space<smem>>
    %609 = vector.broadcast %608 : f32 to vector<16x16xf32>
    %610 = arith.mulf %609, %583 : vector<16x16xf32>
    %611 = arith.addf %573, %610 : vector<16x16xf32>
    %c256 = arith.constant 256 : index
    %612 = memref.load %arg2[%c256] : memref<288xf32, #tpu.memory_space<smem>>
    %613 = vector.broadcast %612 : f32 to vector<16x16xf32>
    %614 = arith.mulf %613, %583 : vector<16x16xf32>
    %615 = arith.addf %577, %614 : vector<16x16xf32>
    %616 = vector.extract_strided_slice %581 {offsets = [1, 0, 0], sizes = [1, 16, 16], strides = [1, 1, 1]} : vector<4x16x16xf32> to vector<1x16x16xf32>
    %617 = vector.shape_cast %616 : vector<1x16x16xf32> to vector<16x16xf32>
    %c13 = arith.constant 13 : index
    %618 = memref.load %arg2[%c13] : memref<288xf32, #tpu.memory_space<smem>>
    %619 = vector.broadcast %618 : f32 to vector<16x16xf32>
    %620 = arith.mulf %619, %617 : vector<16x16xf32>
    %621 = arith.addf %587, %620 : vector<16x16xf32>
    %c49 = arith.constant 49 : index
    %622 = memref.load %arg2[%c49] : memref<288xf32, #tpu.memory_space<smem>>
    %623 = vector.broadcast %622 : f32 to vector<16x16xf32>
    %624 = arith.mulf %623, %617 : vector<16x16xf32>
    %625 = arith.addf %591, %624 : vector<16x16xf32>
    %c85 = arith.constant 85 : index
    %626 = memref.load %arg2[%c85] : memref<288xf32, #tpu.memory_space<smem>>
    %627 = vector.broadcast %626 : f32 to vector<16x16xf32>
    %628 = arith.mulf %627, %617 : vector<16x16xf32>
    %629 = arith.addf %595, %628 : vector<16x16xf32>
    %c121 = arith.constant 121 : index
    %630 = memref.load %arg2[%c121] : memref<288xf32, #tpu.memory_space<smem>>
    %631 = vector.broadcast %630 : f32 to vector<16x16xf32>
    %632 = arith.mulf %631, %617 : vector<16x16xf32>
    %633 = arith.addf %599, %632 : vector<16x16xf32>
    %c157 = arith.constant 157 : index
    %634 = memref.load %arg2[%c157] : memref<288xf32, #tpu.memory_space<smem>>
    %635 = vector.broadcast %634 : f32 to vector<16x16xf32>
    %636 = arith.mulf %635, %617 : vector<16x16xf32>
    %637 = arith.addf %603, %636 : vector<16x16xf32>
    %c193 = arith.constant 193 : index
    %638 = memref.load %arg2[%c193] : memref<288xf32, #tpu.memory_space<smem>>
    %639 = vector.broadcast %638 : f32 to vector<16x16xf32>
    %640 = arith.mulf %639, %617 : vector<16x16xf32>
    %641 = arith.addf %607, %640 : vector<16x16xf32>
    %c229 = arith.constant 229 : index
    %642 = memref.load %arg2[%c229] : memref<288xf32, #tpu.memory_space<smem>>
    %643 = vector.broadcast %642 : f32 to vector<16x16xf32>
    %644 = arith.mulf %643, %617 : vector<16x16xf32>
    %645 = arith.addf %611, %644 : vector<16x16xf32>
    %c265 = arith.constant 265 : index
    %646 = memref.load %arg2[%c265] : memref<288xf32, #tpu.memory_space<smem>>
    %647 = vector.broadcast %646 : f32 to vector<16x16xf32>
    %648 = arith.mulf %647, %617 : vector<16x16xf32>
    %649 = arith.addf %615, %648 : vector<16x16xf32>
    %650 = vector.extract_strided_slice %581 {offsets = [2, 0, 0], sizes = [1, 16, 16], strides = [1, 1, 1]} : vector<4x16x16xf32> to vector<1x16x16xf32>
    %651 = vector.shape_cast %650 : vector<1x16x16xf32> to vector<16x16xf32>
    %c22 = arith.constant 22 : index
    %652 = memref.load %arg2[%c22] : memref<288xf32, #tpu.memory_space<smem>>
    %653 = vector.broadcast %652 : f32 to vector<16x16xf32>
    %654 = arith.mulf %653, %651 : vector<16x16xf32>
    %655 = arith.addf %621, %654 : vector<16x16xf32>
    %c58 = arith.constant 58 : index
    %656 = memref.load %arg2[%c58] : memref<288xf32, #tpu.memory_space<smem>>
    %657 = vector.broadcast %656 : f32 to vector<16x16xf32>
    %658 = arith.mulf %657, %651 : vector<16x16xf32>
    %659 = arith.addf %625, %658 : vector<16x16xf32>
    %c94 = arith.constant 94 : index
    %660 = memref.load %arg2[%c94] : memref<288xf32, #tpu.memory_space<smem>>
    %661 = vector.broadcast %660 : f32 to vector<16x16xf32>
    %662 = arith.mulf %661, %651 : vector<16x16xf32>
    %663 = arith.addf %629, %662 : vector<16x16xf32>
    %c130 = arith.constant 130 : index
    %664 = memref.load %arg2[%c130] : memref<288xf32, #tpu.memory_space<smem>>
    %665 = vector.broadcast %664 : f32 to vector<16x16xf32>
    %666 = arith.mulf %665, %651 : vector<16x16xf32>
    %667 = arith.addf %633, %666 : vector<16x16xf32>
    %c166 = arith.constant 166 : index
    %668 = memref.load %arg2[%c166] : memref<288xf32, #tpu.memory_space<smem>>
    %669 = vector.broadcast %668 : f32 to vector<16x16xf32>
    %670 = arith.mulf %669, %651 : vector<16x16xf32>
    %671 = arith.addf %637, %670 : vector<16x16xf32>
    %c202 = arith.constant 202 : index
    %672 = memref.load %arg2[%c202] : memref<288xf32, #tpu.memory_space<smem>>
    %673 = vector.broadcast %672 : f32 to vector<16x16xf32>
    %674 = arith.mulf %673, %651 : vector<16x16xf32>
    %675 = arith.addf %641, %674 : vector<16x16xf32>
    %c238 = arith.constant 238 : index
    %676 = memref.load %arg2[%c238] : memref<288xf32, #tpu.memory_space<smem>>
    %677 = vector.broadcast %676 : f32 to vector<16x16xf32>
    %678 = arith.mulf %677, %651 : vector<16x16xf32>
    %679 = arith.addf %645, %678 : vector<16x16xf32>
    %c274 = arith.constant 274 : index
    %680 = memref.load %arg2[%c274] : memref<288xf32, #tpu.memory_space<smem>>
    %681 = vector.broadcast %680 : f32 to vector<16x16xf32>
    %682 = arith.mulf %681, %651 : vector<16x16xf32>
    %683 = arith.addf %649, %682 : vector<16x16xf32>
    %684 = vector.extract_strided_slice %581 {offsets = [3, 0, 0], sizes = [1, 16, 16], strides = [1, 1, 1]} : vector<4x16x16xf32> to vector<1x16x16xf32>
    %685 = vector.shape_cast %684 : vector<1x16x16xf32> to vector<16x16xf32>
    %c31 = arith.constant 31 : index
    %686 = memref.load %arg2[%c31] : memref<288xf32, #tpu.memory_space<smem>>
    %687 = vector.broadcast %686 : f32 to vector<16x16xf32>
    %688 = arith.mulf %687, %685 : vector<16x16xf32>
    %689 = arith.addf %655, %688 : vector<16x16xf32>
    %c67 = arith.constant 67 : index
    %690 = memref.load %arg2[%c67] : memref<288xf32, #tpu.memory_space<smem>>
    %691 = vector.broadcast %690 : f32 to vector<16x16xf32>
    %692 = arith.mulf %691, %685 : vector<16x16xf32>
    %693 = arith.addf %659, %692 : vector<16x16xf32>
    %c103 = arith.constant 103 : index
    %694 = memref.load %arg2[%c103] : memref<288xf32, #tpu.memory_space<smem>>
    %695 = vector.broadcast %694 : f32 to vector<16x16xf32>
    %696 = arith.mulf %695, %685 : vector<16x16xf32>
    %697 = arith.addf %663, %696 : vector<16x16xf32>
    %c139 = arith.constant 139 : index
    %698 = memref.load %arg2[%c139] : memref<288xf32, #tpu.memory_space<smem>>
    %699 = vector.broadcast %698 : f32 to vector<16x16xf32>
    %700 = arith.mulf %699, %685 : vector<16x16xf32>
    %701 = arith.addf %667, %700 : vector<16x16xf32>
    %c175 = arith.constant 175 : index
    %702 = memref.load %arg2[%c175] : memref<288xf32, #tpu.memory_space<smem>>
    %703 = vector.broadcast %702 : f32 to vector<16x16xf32>
    %704 = arith.mulf %703, %685 : vector<16x16xf32>
    %705 = arith.addf %671, %704 : vector<16x16xf32>
    %c211 = arith.constant 211 : index
    %706 = memref.load %arg2[%c211] : memref<288xf32, #tpu.memory_space<smem>>
    %707 = vector.broadcast %706 : f32 to vector<16x16xf32>
    %708 = arith.mulf %707, %685 : vector<16x16xf32>
    %709 = arith.addf %675, %708 : vector<16x16xf32>
    %c247 = arith.constant 247 : index
    %710 = memref.load %arg2[%c247] : memref<288xf32, #tpu.memory_space<smem>>
    %711 = vector.broadcast %710 : f32 to vector<16x16xf32>
    %712 = arith.mulf %711, %685 : vector<16x16xf32>
    %713 = arith.addf %679, %712 : vector<16x16xf32>
    %c283 = arith.constant 283 : index
    %714 = memref.load %arg2[%c283] : memref<288xf32, #tpu.memory_space<smem>>
    %715 = vector.broadcast %714 : f32 to vector<16x16xf32>
    %716 = arith.mulf %715, %685 : vector<16x16xf32>
    %717 = arith.addf %683, %716 : vector<16x16xf32>
    %c1_i32_23 = arith.constant 1 : i32
    %718 = arith.addi %1, %c1_i32_23 : i32
    %c0_24 = arith.constant 0 : index
    %c0_25 = arith.constant 0 : index
    %719 = arith.index_cast %718 : i32 to index
    %c2_26 = arith.constant 2 : index
    %720 = vector.load %arg4[%c0_24, %c0_25, %719, %c2_26] : memref<1x4x18x18xf32, #tpu.memory_space<vmem>>, vector<1x4x16x16xf32>
    %721 = vector.shape_cast %720 : vector<1x4x16x16xf32> to vector<4x16x16xf32>
    %722 = vector.extract_strided_slice %721 {offsets = [0, 0, 0], sizes = [1, 16, 16], strides = [1, 1, 1]} : vector<4x16x16xf32> to vector<1x16x16xf32>
    %723 = vector.shape_cast %722 : vector<1x16x16xf32> to vector<16x16xf32>
    %c5_27 = arith.constant 5 : index
    %724 = memref.load %arg2[%c5_27] : memref<288xf32, #tpu.memory_space<smem>>
    %725 = vector.broadcast %724 : f32 to vector<16x16xf32>
    %726 = arith.mulf %725, %723 : vector<16x16xf32>
    %727 = arith.addf %689, %726 : vector<16x16xf32>
    %c41 = arith.constant 41 : index
    %728 = memref.load %arg2[%c41] : memref<288xf32, #tpu.memory_space<smem>>
    %729 = vector.broadcast %728 : f32 to vector<16x16xf32>
    %730 = arith.mulf %729, %723 : vector<16x16xf32>
    %731 = arith.addf %693, %730 : vector<16x16xf32>
    %c77 = arith.constant 77 : index
    %732 = memref.load %arg2[%c77] : memref<288xf32, #tpu.memory_space<smem>>
    %733 = vector.broadcast %732 : f32 to vector<16x16xf32>
    %734 = arith.mulf %733, %723 : vector<16x16xf32>
    %735 = arith.addf %697, %734 : vector<16x16xf32>
    %c113 = arith.constant 113 : index
    %736 = memref.load %arg2[%c113] : memref<288xf32, #tpu.memory_space<smem>>
    %737 = vector.broadcast %736 : f32 to vector<16x16xf32>
    %738 = arith.mulf %737, %723 : vector<16x16xf32>
    %739 = arith.addf %701, %738 : vector<16x16xf32>
    %c149 = arith.constant 149 : index
    %740 = memref.load %arg2[%c149] : memref<288xf32, #tpu.memory_space<smem>>
    %741 = vector.broadcast %740 : f32 to vector<16x16xf32>
    %742 = arith.mulf %741, %723 : vector<16x16xf32>
    %743 = arith.addf %705, %742 : vector<16x16xf32>
    %c185 = arith.constant 185 : index
    %744 = memref.load %arg2[%c185] : memref<288xf32, #tpu.memory_space<smem>>
    %745 = vector.broadcast %744 : f32 to vector<16x16xf32>
    %746 = arith.mulf %745, %723 : vector<16x16xf32>
    %747 = arith.addf %709, %746 : vector<16x16xf32>
    %c221 = arith.constant 221 : index
    %748 = memref.load %arg2[%c221] : memref<288xf32, #tpu.memory_space<smem>>
    %749 = vector.broadcast %748 : f32 to vector<16x16xf32>
    %750 = arith.mulf %749, %723 : vector<16x16xf32>
    %751 = arith.addf %713, %750 : vector<16x16xf32>
    %c257 = arith.constant 257 : index
    %752 = memref.load %arg2[%c257] : memref<288xf32, #tpu.memory_space<smem>>
    %753 = vector.broadcast %752 : f32 to vector<16x16xf32>
    %754 = arith.mulf %753, %723 : vector<16x16xf32>
    %755 = arith.addf %717, %754 : vector<16x16xf32>
    %756 = vector.extract_strided_slice %721 {offsets = [1, 0, 0], sizes = [1, 16, 16], strides = [1, 1, 1]} : vector<4x16x16xf32> to vector<1x16x16xf32>
    %757 = vector.shape_cast %756 : vector<1x16x16xf32> to vector<16x16xf32>
    %c14 = arith.constant 14 : index
    %758 = memref.load %arg2[%c14] : memref<288xf32, #tpu.memory_space<smem>>
    %759 = vector.broadcast %758 : f32 to vector<16x16xf32>
    %760 = arith.mulf %759, %757 : vector<16x16xf32>
    %761 = arith.addf %727, %760 : vector<16x16xf32>
    %c50 = arith.constant 50 : index
    %762 = memref.load %arg2[%c50] : memref<288xf32, #tpu.memory_space<smem>>
    %763 = vector.broadcast %762 : f32 to vector<16x16xf32>
    %764 = arith.mulf %763, %757 : vector<16x16xf32>
    %765 = arith.addf %731, %764 : vector<16x16xf32>
    %c86 = arith.constant 86 : index
    %766 = memref.load %arg2[%c86] : memref<288xf32, #tpu.memory_space<smem>>
    %767 = vector.broadcast %766 : f32 to vector<16x16xf32>
    %768 = arith.mulf %767, %757 : vector<16x16xf32>
    %769 = arith.addf %735, %768 : vector<16x16xf32>
    %c122 = arith.constant 122 : index
    %770 = memref.load %arg2[%c122] : memref<288xf32, #tpu.memory_space<smem>>
    %771 = vector.broadcast %770 : f32 to vector<16x16xf32>
    %772 = arith.mulf %771, %757 : vector<16x16xf32>
    %773 = arith.addf %739, %772 : vector<16x16xf32>
    %c158 = arith.constant 158 : index
    %774 = memref.load %arg2[%c158] : memref<288xf32, #tpu.memory_space<smem>>
    %775 = vector.broadcast %774 : f32 to vector<16x16xf32>
    %776 = arith.mulf %775, %757 : vector<16x16xf32>
    %777 = arith.addf %743, %776 : vector<16x16xf32>
    %c194 = arith.constant 194 : index
    %778 = memref.load %arg2[%c194] : memref<288xf32, #tpu.memory_space<smem>>
    %779 = vector.broadcast %778 : f32 to vector<16x16xf32>
    %780 = arith.mulf %779, %757 : vector<16x16xf32>
    %781 = arith.addf %747, %780 : vector<16x16xf32>
    %c230 = arith.constant 230 : index
    %782 = memref.load %arg2[%c230] : memref<288xf32, #tpu.memory_space<smem>>
    %783 = vector.broadcast %782 : f32 to vector<16x16xf32>
    %784 = arith.mulf %783, %757 : vector<16x16xf32>
    %785 = arith.addf %751, %784 : vector<16x16xf32>
    %c266 = arith.constant 266 : index
    %786 = memref.load %arg2[%c266] : memref<288xf32, #tpu.memory_space<smem>>
    %787 = vector.broadcast %786 : f32 to vector<16x16xf32>
    %788 = arith.mulf %787, %757 : vector<16x16xf32>
    %789 = arith.addf %755, %788 : vector<16x16xf32>
    %790 = vector.extract_strided_slice %721 {offsets = [2, 0, 0], sizes = [1, 16, 16], strides = [1, 1, 1]} : vector<4x16x16xf32> to vector<1x16x16xf32>
    %791 = vector.shape_cast %790 : vector<1x16x16xf32> to vector<16x16xf32>
    %c23 = arith.constant 23 : index
    %792 = memref.load %arg2[%c23] : memref<288xf32, #tpu.memory_space<smem>>
    %793 = vector.broadcast %792 : f32 to vector<16x16xf32>
    %794 = arith.mulf %793, %791 : vector<16x16xf32>
    %795 = arith.addf %761, %794 : vector<16x16xf32>
    %c59 = arith.constant 59 : index
    %796 = memref.load %arg2[%c59] : memref<288xf32, #tpu.memory_space<smem>>
    %797 = vector.broadcast %796 : f32 to vector<16x16xf32>
    %798 = arith.mulf %797, %791 : vector<16x16xf32>
    %799 = arith.addf %765, %798 : vector<16x16xf32>
    %c95 = arith.constant 95 : index
    %800 = memref.load %arg2[%c95] : memref<288xf32, #tpu.memory_space<smem>>
    %801 = vector.broadcast %800 : f32 to vector<16x16xf32>
    %802 = arith.mulf %801, %791 : vector<16x16xf32>
    %803 = arith.addf %769, %802 : vector<16x16xf32>
    %c131 = arith.constant 131 : index
    %804 = memref.load %arg2[%c131] : memref<288xf32, #tpu.memory_space<smem>>
    %805 = vector.broadcast %804 : f32 to vector<16x16xf32>
    %806 = arith.mulf %805, %791 : vector<16x16xf32>
    %807 = arith.addf %773, %806 : vector<16x16xf32>
    %c167 = arith.constant 167 : index
    %808 = memref.load %arg2[%c167] : memref<288xf32, #tpu.memory_space<smem>>
    %809 = vector.broadcast %808 : f32 to vector<16x16xf32>
    %810 = arith.mulf %809, %791 : vector<16x16xf32>
    %811 = arith.addf %777, %810 : vector<16x16xf32>
    %c203 = arith.constant 203 : index
    %812 = memref.load %arg2[%c203] : memref<288xf32, #tpu.memory_space<smem>>
    %813 = vector.broadcast %812 : f32 to vector<16x16xf32>
    %814 = arith.mulf %813, %791 : vector<16x16xf32>
    %815 = arith.addf %781, %814 : vector<16x16xf32>
    %c239 = arith.constant 239 : index
    %816 = memref.load %arg2[%c239] : memref<288xf32, #tpu.memory_space<smem>>
    %817 = vector.broadcast %816 : f32 to vector<16x16xf32>
    %818 = arith.mulf %817, %791 : vector<16x16xf32>
    %819 = arith.addf %785, %818 : vector<16x16xf32>
    %c275 = arith.constant 275 : index
    %820 = memref.load %arg2[%c275] : memref<288xf32, #tpu.memory_space<smem>>
    %821 = vector.broadcast %820 : f32 to vector<16x16xf32>
    %822 = arith.mulf %821, %791 : vector<16x16xf32>
    %823 = arith.addf %789, %822 : vector<16x16xf32>
    %824 = vector.extract_strided_slice %721 {offsets = [3, 0, 0], sizes = [1, 16, 16], strides = [1, 1, 1]} : vector<4x16x16xf32> to vector<1x16x16xf32>
    %825 = vector.shape_cast %824 : vector<1x16x16xf32> to vector<16x16xf32>
    %c32 = arith.constant 32 : index
    %826 = memref.load %arg2[%c32] : memref<288xf32, #tpu.memory_space<smem>>
    %827 = vector.broadcast %826 : f32 to vector<16x16xf32>
    %828 = arith.mulf %827, %825 : vector<16x16xf32>
    %829 = arith.addf %795, %828 : vector<16x16xf32>
    %c68 = arith.constant 68 : index
    %830 = memref.load %arg2[%c68] : memref<288xf32, #tpu.memory_space<smem>>
    %831 = vector.broadcast %830 : f32 to vector<16x16xf32>
    %832 = arith.mulf %831, %825 : vector<16x16xf32>
    %833 = arith.addf %799, %832 : vector<16x16xf32>
    %c104 = arith.constant 104 : index
    %834 = memref.load %arg2[%c104] : memref<288xf32, #tpu.memory_space<smem>>
    %835 = vector.broadcast %834 : f32 to vector<16x16xf32>
    %836 = arith.mulf %835, %825 : vector<16x16xf32>
    %837 = arith.addf %803, %836 : vector<16x16xf32>
    %c140 = arith.constant 140 : index
    %838 = memref.load %arg2[%c140] : memref<288xf32, #tpu.memory_space<smem>>
    %839 = vector.broadcast %838 : f32 to vector<16x16xf32>
    %840 = arith.mulf %839, %825 : vector<16x16xf32>
    %841 = arith.addf %807, %840 : vector<16x16xf32>
    %c176 = arith.constant 176 : index
    %842 = memref.load %arg2[%c176] : memref<288xf32, #tpu.memory_space<smem>>
    %843 = vector.broadcast %842 : f32 to vector<16x16xf32>
    %844 = arith.mulf %843, %825 : vector<16x16xf32>
    %845 = arith.addf %811, %844 : vector<16x16xf32>
    %c212 = arith.constant 212 : index
    %846 = memref.load %arg2[%c212] : memref<288xf32, #tpu.memory_space<smem>>
    %847 = vector.broadcast %846 : f32 to vector<16x16xf32>
    %848 = arith.mulf %847, %825 : vector<16x16xf32>
    %849 = arith.addf %815, %848 : vector<16x16xf32>
    %c248 = arith.constant 248 : index
    %850 = memref.load %arg2[%c248] : memref<288xf32, #tpu.memory_space<smem>>
    %851 = vector.broadcast %850 : f32 to vector<16x16xf32>
    %852 = arith.mulf %851, %825 : vector<16x16xf32>
    %853 = arith.addf %819, %852 : vector<16x16xf32>
    %c284 = arith.constant 284 : index
    %854 = memref.load %arg2[%c284] : memref<288xf32, #tpu.memory_space<smem>>
    %855 = vector.broadcast %854 : f32 to vector<16x16xf32>
    %856 = arith.mulf %855, %825 : vector<16x16xf32>
    %857 = arith.addf %823, %856 : vector<16x16xf32>
    %c2_i32 = arith.constant 2 : i32
    %858 = arith.addi %1, %c2_i32 : i32
    %c0_28 = arith.constant 0 : index
    %c0_29 = arith.constant 0 : index
    %859 = arith.index_cast %858 : i32 to index
    %c0_30 = arith.constant 0 : index
    %860 = vector.load %arg4[%c0_28, %c0_29, %859, %c0_30] : memref<1x4x18x18xf32, #tpu.memory_space<vmem>>, vector<1x4x16x16xf32>
    %861 = vector.shape_cast %860 : vector<1x4x16x16xf32> to vector<4x16x16xf32>
    %862 = vector.extract_strided_slice %861 {offsets = [0, 0, 0], sizes = [1, 16, 16], strides = [1, 1, 1]} : vector<4x16x16xf32> to vector<1x16x16xf32>
    %863 = vector.shape_cast %862 : vector<1x16x16xf32> to vector<16x16xf32>
    %c6_31 = arith.constant 6 : index
    %864 = memref.load %arg2[%c6_31] : memref<288xf32, #tpu.memory_space<smem>>
    %865 = vector.broadcast %864 : f32 to vector<16x16xf32>
    %866 = arith.mulf %865, %863 : vector<16x16xf32>
    %867 = arith.addf %829, %866 : vector<16x16xf32>
    %c42 = arith.constant 42 : index
    %868 = memref.load %arg2[%c42] : memref<288xf32, #tpu.memory_space<smem>>
    %869 = vector.broadcast %868 : f32 to vector<16x16xf32>
    %870 = arith.mulf %869, %863 : vector<16x16xf32>
    %871 = arith.addf %833, %870 : vector<16x16xf32>
    %c78 = arith.constant 78 : index
    %872 = memref.load %arg2[%c78] : memref<288xf32, #tpu.memory_space<smem>>
    %873 = vector.broadcast %872 : f32 to vector<16x16xf32>
    %874 = arith.mulf %873, %863 : vector<16x16xf32>
    %875 = arith.addf %837, %874 : vector<16x16xf32>
    %c114 = arith.constant 114 : index
    %876 = memref.load %arg2[%c114] : memref<288xf32, #tpu.memory_space<smem>>
    %877 = vector.broadcast %876 : f32 to vector<16x16xf32>
    %878 = arith.mulf %877, %863 : vector<16x16xf32>
    %879 = arith.addf %841, %878 : vector<16x16xf32>
    %c150 = arith.constant 150 : index
    %880 = memref.load %arg2[%c150] : memref<288xf32, #tpu.memory_space<smem>>
    %881 = vector.broadcast %880 : f32 to vector<16x16xf32>
    %882 = arith.mulf %881, %863 : vector<16x16xf32>
    %883 = arith.addf %845, %882 : vector<16x16xf32>
    %c186 = arith.constant 186 : index
    %884 = memref.load %arg2[%c186] : memref<288xf32, #tpu.memory_space<smem>>
    %885 = vector.broadcast %884 : f32 to vector<16x16xf32>
    %886 = arith.mulf %885, %863 : vector<16x16xf32>
    %887 = arith.addf %849, %886 : vector<16x16xf32>
    %c222 = arith.constant 222 : index
    %888 = memref.load %arg2[%c222] : memref<288xf32, #tpu.memory_space<smem>>
    %889 = vector.broadcast %888 : f32 to vector<16x16xf32>
    %890 = arith.mulf %889, %863 : vector<16x16xf32>
    %891 = arith.addf %853, %890 : vector<16x16xf32>
    %c258 = arith.constant 258 : index
    %892 = memref.load %arg2[%c258] : memref<288xf32, #tpu.memory_space<smem>>
    %893 = vector.broadcast %892 : f32 to vector<16x16xf32>
    %894 = arith.mulf %893, %863 : vector<16x16xf32>
    %895 = arith.addf %857, %894 : vector<16x16xf32>
    %896 = vector.extract_strided_slice %861 {offsets = [1, 0, 0], sizes = [1, 16, 16], strides = [1, 1, 1]} : vector<4x16x16xf32> to vector<1x16x16xf32>
    %897 = vector.shape_cast %896 : vector<1x16x16xf32> to vector<16x16xf32>
    %c15 = arith.constant 15 : index
    %898 = memref.load %arg2[%c15] : memref<288xf32, #tpu.memory_space<smem>>
    %899 = vector.broadcast %898 : f32 to vector<16x16xf32>
    %900 = arith.mulf %899, %897 : vector<16x16xf32>
    %901 = arith.addf %867, %900 : vector<16x16xf32>
    %c51 = arith.constant 51 : index
    %902 = memref.load %arg2[%c51] : memref<288xf32, #tpu.memory_space<smem>>
    %903 = vector.broadcast %902 : f32 to vector<16x16xf32>
    %904 = arith.mulf %903, %897 : vector<16x16xf32>
    %905 = arith.addf %871, %904 : vector<16x16xf32>
    %c87 = arith.constant 87 : index
    %906 = memref.load %arg2[%c87] : memref<288xf32, #tpu.memory_space<smem>>
    %907 = vector.broadcast %906 : f32 to vector<16x16xf32>
    %908 = arith.mulf %907, %897 : vector<16x16xf32>
    %909 = arith.addf %875, %908 : vector<16x16xf32>
    %c123 = arith.constant 123 : index
    %910 = memref.load %arg2[%c123] : memref<288xf32, #tpu.memory_space<smem>>
    %911 = vector.broadcast %910 : f32 to vector<16x16xf32>
    %912 = arith.mulf %911, %897 : vector<16x16xf32>
    %913 = arith.addf %879, %912 : vector<16x16xf32>
    %c159 = arith.constant 159 : index
    %914 = memref.load %arg2[%c159] : memref<288xf32, #tpu.memory_space<smem>>
    %915 = vector.broadcast %914 : f32 to vector<16x16xf32>
    %916 = arith.mulf %915, %897 : vector<16x16xf32>
    %917 = arith.addf %883, %916 : vector<16x16xf32>
    %c195 = arith.constant 195 : index
    %918 = memref.load %arg2[%c195] : memref<288xf32, #tpu.memory_space<smem>>
    %919 = vector.broadcast %918 : f32 to vector<16x16xf32>
    %920 = arith.mulf %919, %897 : vector<16x16xf32>
    %921 = arith.addf %887, %920 : vector<16x16xf32>
    %c231 = arith.constant 231 : index
    %922 = memref.load %arg2[%c231] : memref<288xf32, #tpu.memory_space<smem>>
    %923 = vector.broadcast %922 : f32 to vector<16x16xf32>
    %924 = arith.mulf %923, %897 : vector<16x16xf32>
    %925 = arith.addf %891, %924 : vector<16x16xf32>
    %c267 = arith.constant 267 : index
    %926 = memref.load %arg2[%c267] : memref<288xf32, #tpu.memory_space<smem>>
    %927 = vector.broadcast %926 : f32 to vector<16x16xf32>
    %928 = arith.mulf %927, %897 : vector<16x16xf32>
    %929 = arith.addf %895, %928 : vector<16x16xf32>
    %930 = vector.extract_strided_slice %861 {offsets = [2, 0, 0], sizes = [1, 16, 16], strides = [1, 1, 1]} : vector<4x16x16xf32> to vector<1x16x16xf32>
    %931 = vector.shape_cast %930 : vector<1x16x16xf32> to vector<16x16xf32>
    %c24 = arith.constant 24 : index
    %932 = memref.load %arg2[%c24] : memref<288xf32, #tpu.memory_space<smem>>
    %933 = vector.broadcast %932 : f32 to vector<16x16xf32>
    %934 = arith.mulf %933, %931 : vector<16x16xf32>
    %935 = arith.addf %901, %934 : vector<16x16xf32>
    %c60 = arith.constant 60 : index
    %936 = memref.load %arg2[%c60] : memref<288xf32, #tpu.memory_space<smem>>
    %937 = vector.broadcast %936 : f32 to vector<16x16xf32>
    %938 = arith.mulf %937, %931 : vector<16x16xf32>
    %939 = arith.addf %905, %938 : vector<16x16xf32>
    %c96 = arith.constant 96 : index
    %940 = memref.load %arg2[%c96] : memref<288xf32, #tpu.memory_space<smem>>
    %941 = vector.broadcast %940 : f32 to vector<16x16xf32>
    %942 = arith.mulf %941, %931 : vector<16x16xf32>
    %943 = arith.addf %909, %942 : vector<16x16xf32>
    %c132 = arith.constant 132 : index
    %944 = memref.load %arg2[%c132] : memref<288xf32, #tpu.memory_space<smem>>
    %945 = vector.broadcast %944 : f32 to vector<16x16xf32>
    %946 = arith.mulf %945, %931 : vector<16x16xf32>
    %947 = arith.addf %913, %946 : vector<16x16xf32>
    %c168 = arith.constant 168 : index
    %948 = memref.load %arg2[%c168] : memref<288xf32, #tpu.memory_space<smem>>
    %949 = vector.broadcast %948 : f32 to vector<16x16xf32>
    %950 = arith.mulf %949, %931 : vector<16x16xf32>
    %951 = arith.addf %917, %950 : vector<16x16xf32>
    %c204 = arith.constant 204 : index
    %952 = memref.load %arg2[%c204] : memref<288xf32, #tpu.memory_space<smem>>
    %953 = vector.broadcast %952 : f32 to vector<16x16xf32>
    %954 = arith.mulf %953, %931 : vector<16x16xf32>
    %955 = arith.addf %921, %954 : vector<16x16xf32>
    %c240 = arith.constant 240 : index
    %956 = memref.load %arg2[%c240] : memref<288xf32, #tpu.memory_space<smem>>
    %957 = vector.broadcast %956 : f32 to vector<16x16xf32>
    %958 = arith.mulf %957, %931 : vector<16x16xf32>
    %959 = arith.addf %925, %958 : vector<16x16xf32>
    %c276 = arith.constant 276 : index
    %960 = memref.load %arg2[%c276] : memref<288xf32, #tpu.memory_space<smem>>
    %961 = vector.broadcast %960 : f32 to vector<16x16xf32>
    %962 = arith.mulf %961, %931 : vector<16x16xf32>
    %963 = arith.addf %929, %962 : vector<16x16xf32>
    %964 = vector.extract_strided_slice %861 {offsets = [3, 0, 0], sizes = [1, 16, 16], strides = [1, 1, 1]} : vector<4x16x16xf32> to vector<1x16x16xf32>
    %965 = vector.shape_cast %964 : vector<1x16x16xf32> to vector<16x16xf32>
    %c33 = arith.constant 33 : index
    %966 = memref.load %arg2[%c33] : memref<288xf32, #tpu.memory_space<smem>>
    %967 = vector.broadcast %966 : f32 to vector<16x16xf32>
    %968 = arith.mulf %967, %965 : vector<16x16xf32>
    %969 = arith.addf %935, %968 : vector<16x16xf32>
    %c69 = arith.constant 69 : index
    %970 = memref.load %arg2[%c69] : memref<288xf32, #tpu.memory_space<smem>>
    %971 = vector.broadcast %970 : f32 to vector<16x16xf32>
    %972 = arith.mulf %971, %965 : vector<16x16xf32>
    %973 = arith.addf %939, %972 : vector<16x16xf32>
    %c105 = arith.constant 105 : index
    %974 = memref.load %arg2[%c105] : memref<288xf32, #tpu.memory_space<smem>>
    %975 = vector.broadcast %974 : f32 to vector<16x16xf32>
    %976 = arith.mulf %975, %965 : vector<16x16xf32>
    %977 = arith.addf %943, %976 : vector<16x16xf32>
    %c141 = arith.constant 141 : index
    %978 = memref.load %arg2[%c141] : memref<288xf32, #tpu.memory_space<smem>>
    %979 = vector.broadcast %978 : f32 to vector<16x16xf32>
    %980 = arith.mulf %979, %965 : vector<16x16xf32>
    %981 = arith.addf %947, %980 : vector<16x16xf32>
    %c177 = arith.constant 177 : index
    %982 = memref.load %arg2[%c177] : memref<288xf32, #tpu.memory_space<smem>>
    %983 = vector.broadcast %982 : f32 to vector<16x16xf32>
    %984 = arith.mulf %983, %965 : vector<16x16xf32>
    %985 = arith.addf %951, %984 : vector<16x16xf32>
    %c213 = arith.constant 213 : index
    %986 = memref.load %arg2[%c213] : memref<288xf32, #tpu.memory_space<smem>>
    %987 = vector.broadcast %986 : f32 to vector<16x16xf32>
    %988 = arith.mulf %987, %965 : vector<16x16xf32>
    %989 = arith.addf %955, %988 : vector<16x16xf32>
    %c249 = arith.constant 249 : index
    %990 = memref.load %arg2[%c249] : memref<288xf32, #tpu.memory_space<smem>>
    %991 = vector.broadcast %990 : f32 to vector<16x16xf32>
    %992 = arith.mulf %991, %965 : vector<16x16xf32>
    %993 = arith.addf %959, %992 : vector<16x16xf32>
    %c285 = arith.constant 285 : index
    %994 = memref.load %arg2[%c285] : memref<288xf32, #tpu.memory_space<smem>>
    %995 = vector.broadcast %994 : f32 to vector<16x16xf32>
    %996 = arith.mulf %995, %965 : vector<16x16xf32>
    %997 = arith.addf %963, %996 : vector<16x16xf32>
    %c2_i32_32 = arith.constant 2 : i32
    %998 = arith.addi %1, %c2_i32_32 : i32
    %c0_33 = arith.constant 0 : index
    %c0_34 = arith.constant 0 : index
    %999 = arith.index_cast %998 : i32 to index
    %c1_35 = arith.constant 1 : index
    %1000 = vector.load %arg4[%c0_33, %c0_34, %999, %c1_35] : memref<1x4x18x18xf32, #tpu.memory_space<vmem>>, vector<1x4x16x16xf32>
    %1001 = vector.shape_cast %1000 : vector<1x4x16x16xf32> to vector<4x16x16xf32>
    %1002 = vector.extract_strided_slice %1001 {offsets = [0, 0, 0], sizes = [1, 16, 16], strides = [1, 1, 1]} : vector<4x16x16xf32> to vector<1x16x16xf32>
    %1003 = vector.shape_cast %1002 : vector<1x16x16xf32> to vector<16x16xf32>
    %c7_36 = arith.constant 7 : index
    %1004 = memref.load %arg2[%c7_36] : memref<288xf32, #tpu.memory_space<smem>>
    %1005 = vector.broadcast %1004 : f32 to vector<16x16xf32>
    %1006 = arith.mulf %1005, %1003 : vector<16x16xf32>
    %1007 = arith.addf %969, %1006 : vector<16x16xf32>
    %c43 = arith.constant 43 : index
    %1008 = memref.load %arg2[%c43] : memref<288xf32, #tpu.memory_space<smem>>
    %1009 = vector.broadcast %1008 : f32 to vector<16x16xf32>
    %1010 = arith.mulf %1009, %1003 : vector<16x16xf32>
    %1011 = arith.addf %973, %1010 : vector<16x16xf32>
    %c79 = arith.constant 79 : index
    %1012 = memref.load %arg2[%c79] : memref<288xf32, #tpu.memory_space<smem>>
    %1013 = vector.broadcast %1012 : f32 to vector<16x16xf32>
    %1014 = arith.mulf %1013, %1003 : vector<16x16xf32>
    %1015 = arith.addf %977, %1014 : vector<16x16xf32>
    %c115 = arith.constant 115 : index
    %1016 = memref.load %arg2[%c115] : memref<288xf32, #tpu.memory_space<smem>>
    %1017 = vector.broadcast %1016 : f32 to vector<16x16xf32>
    %1018 = arith.mulf %1017, %1003 : vector<16x16xf32>
    %1019 = arith.addf %981, %1018 : vector<16x16xf32>
    %c151 = arith.constant 151 : index
    %1020 = memref.load %arg2[%c151] : memref<288xf32, #tpu.memory_space<smem>>
    %1021 = vector.broadcast %1020 : f32 to vector<16x16xf32>
    %1022 = arith.mulf %1021, %1003 : vector<16x16xf32>
    %1023 = arith.addf %985, %1022 : vector<16x16xf32>
    %c187 = arith.constant 187 : index
    %1024 = memref.load %arg2[%c187] : memref<288xf32, #tpu.memory_space<smem>>
    %1025 = vector.broadcast %1024 : f32 to vector<16x16xf32>
    %1026 = arith.mulf %1025, %1003 : vector<16x16xf32>
    %1027 = arith.addf %989, %1026 : vector<16x16xf32>
    %c223 = arith.constant 223 : index
    %1028 = memref.load %arg2[%c223] : memref<288xf32, #tpu.memory_space<smem>>
    %1029 = vector.broadcast %1028 : f32 to vector<16x16xf32>
    %1030 = arith.mulf %1029, %1003 : vector<16x16xf32>
    %1031 = arith.addf %993, %1030 : vector<16x16xf32>
    %c259 = arith.constant 259 : index
    %1032 = memref.load %arg2[%c259] : memref<288xf32, #tpu.memory_space<smem>>
    %1033 = vector.broadcast %1032 : f32 to vector<16x16xf32>
    %1034 = arith.mulf %1033, %1003 : vector<16x16xf32>
    %1035 = arith.addf %997, %1034 : vector<16x16xf32>
    %1036 = vector.extract_strided_slice %1001 {offsets = [1, 0, 0], sizes = [1, 16, 16], strides = [1, 1, 1]} : vector<4x16x16xf32> to vector<1x16x16xf32>
    %1037 = vector.shape_cast %1036 : vector<1x16x16xf32> to vector<16x16xf32>
    %c16 = arith.constant 16 : index
    %1038 = memref.load %arg2[%c16] : memref<288xf32, #tpu.memory_space<smem>>
    %1039 = vector.broadcast %1038 : f32 to vector<16x16xf32>
    %1040 = arith.mulf %1039, %1037 : vector<16x16xf32>
    %1041 = arith.addf %1007, %1040 : vector<16x16xf32>
    %c52 = arith.constant 52 : index
    %1042 = memref.load %arg2[%c52] : memref<288xf32, #tpu.memory_space<smem>>
    %1043 = vector.broadcast %1042 : f32 to vector<16x16xf32>
    %1044 = arith.mulf %1043, %1037 : vector<16x16xf32>
    %1045 = arith.addf %1011, %1044 : vector<16x16xf32>
    %c88 = arith.constant 88 : index
    %1046 = memref.load %arg2[%c88] : memref<288xf32, #tpu.memory_space<smem>>
    %1047 = vector.broadcast %1046 : f32 to vector<16x16xf32>
    %1048 = arith.mulf %1047, %1037 : vector<16x16xf32>
    %1049 = arith.addf %1015, %1048 : vector<16x16xf32>
    %c124 = arith.constant 124 : index
    %1050 = memref.load %arg2[%c124] : memref<288xf32, #tpu.memory_space<smem>>
    %1051 = vector.broadcast %1050 : f32 to vector<16x16xf32>
    %1052 = arith.mulf %1051, %1037 : vector<16x16xf32>
    %1053 = arith.addf %1019, %1052 : vector<16x16xf32>
    %c160 = arith.constant 160 : index
    %1054 = memref.load %arg2[%c160] : memref<288xf32, #tpu.memory_space<smem>>
    %1055 = vector.broadcast %1054 : f32 to vector<16x16xf32>
    %1056 = arith.mulf %1055, %1037 : vector<16x16xf32>
    %1057 = arith.addf %1023, %1056 : vector<16x16xf32>
    %c196 = arith.constant 196 : index
    %1058 = memref.load %arg2[%c196] : memref<288xf32, #tpu.memory_space<smem>>
    %1059 = vector.broadcast %1058 : f32 to vector<16x16xf32>
    %1060 = arith.mulf %1059, %1037 : vector<16x16xf32>
    %1061 = arith.addf %1027, %1060 : vector<16x16xf32>
    %c232 = arith.constant 232 : index
    %1062 = memref.load %arg2[%c232] : memref<288xf32, #tpu.memory_space<smem>>
    %1063 = vector.broadcast %1062 : f32 to vector<16x16xf32>
    %1064 = arith.mulf %1063, %1037 : vector<16x16xf32>
    %1065 = arith.addf %1031, %1064 : vector<16x16xf32>
    %c268 = arith.constant 268 : index
    %1066 = memref.load %arg2[%c268] : memref<288xf32, #tpu.memory_space<smem>>
    %1067 = vector.broadcast %1066 : f32 to vector<16x16xf32>
    %1068 = arith.mulf %1067, %1037 : vector<16x16xf32>
    %1069 = arith.addf %1035, %1068 : vector<16x16xf32>
    %1070 = vector.extract_strided_slice %1001 {offsets = [2, 0, 0], sizes = [1, 16, 16], strides = [1, 1, 1]} : vector<4x16x16xf32> to vector<1x16x16xf32>
    %1071 = vector.shape_cast %1070 : vector<1x16x16xf32> to vector<16x16xf32>
    %c25 = arith.constant 25 : index
    %1072 = memref.load %arg2[%c25] : memref<288xf32, #tpu.memory_space<smem>>
    %1073 = vector.broadcast %1072 : f32 to vector<16x16xf32>
    %1074 = arith.mulf %1073, %1071 : vector<16x16xf32>
    %1075 = arith.addf %1041, %1074 : vector<16x16xf32>
    %c61 = arith.constant 61 : index
    %1076 = memref.load %arg2[%c61] : memref<288xf32, #tpu.memory_space<smem>>
    %1077 = vector.broadcast %1076 : f32 to vector<16x16xf32>
    %1078 = arith.mulf %1077, %1071 : vector<16x16xf32>
    %1079 = arith.addf %1045, %1078 : vector<16x16xf32>
    %c97 = arith.constant 97 : index
    %1080 = memref.load %arg2[%c97] : memref<288xf32, #tpu.memory_space<smem>>
    %1081 = vector.broadcast %1080 : f32 to vector<16x16xf32>
    %1082 = arith.mulf %1081, %1071 : vector<16x16xf32>
    %1083 = arith.addf %1049, %1082 : vector<16x16xf32>
    %c133 = arith.constant 133 : index
    %1084 = memref.load %arg2[%c133] : memref<288xf32, #tpu.memory_space<smem>>
    %1085 = vector.broadcast %1084 : f32 to vector<16x16xf32>
    %1086 = arith.mulf %1085, %1071 : vector<16x16xf32>
    %1087 = arith.addf %1053, %1086 : vector<16x16xf32>
    %c169 = arith.constant 169 : index
    %1088 = memref.load %arg2[%c169] : memref<288xf32, #tpu.memory_space<smem>>
    %1089 = vector.broadcast %1088 : f32 to vector<16x16xf32>
    %1090 = arith.mulf %1089, %1071 : vector<16x16xf32>
    %1091 = arith.addf %1057, %1090 : vector<16x16xf32>
    %c205 = arith.constant 205 : index
    %1092 = memref.load %arg2[%c205] : memref<288xf32, #tpu.memory_space<smem>>
    %1093 = vector.broadcast %1092 : f32 to vector<16x16xf32>
    %1094 = arith.mulf %1093, %1071 : vector<16x16xf32>
    %1095 = arith.addf %1061, %1094 : vector<16x16xf32>
    %c241 = arith.constant 241 : index
    %1096 = memref.load %arg2[%c241] : memref<288xf32, #tpu.memory_space<smem>>
    %1097 = vector.broadcast %1096 : f32 to vector<16x16xf32>
    %1098 = arith.mulf %1097, %1071 : vector<16x16xf32>
    %1099 = arith.addf %1065, %1098 : vector<16x16xf32>
    %c277 = arith.constant 277 : index
    %1100 = memref.load %arg2[%c277] : memref<288xf32, #tpu.memory_space<smem>>
    %1101 = vector.broadcast %1100 : f32 to vector<16x16xf32>
    %1102 = arith.mulf %1101, %1071 : vector<16x16xf32>
    %1103 = arith.addf %1069, %1102 : vector<16x16xf32>
    %1104 = vector.extract_strided_slice %1001 {offsets = [3, 0, 0], sizes = [1, 16, 16], strides = [1, 1, 1]} : vector<4x16x16xf32> to vector<1x16x16xf32>
    %1105 = vector.shape_cast %1104 : vector<1x16x16xf32> to vector<16x16xf32>
    %c34 = arith.constant 34 : index
    %1106 = memref.load %arg2[%c34] : memref<288xf32, #tpu.memory_space<smem>>
    %1107 = vector.broadcast %1106 : f32 to vector<16x16xf32>
    %1108 = arith.mulf %1107, %1105 : vector<16x16xf32>
    %1109 = arith.addf %1075, %1108 : vector<16x16xf32>
    %c70 = arith.constant 70 : index
    %1110 = memref.load %arg2[%c70] : memref<288xf32, #tpu.memory_space<smem>>
    %1111 = vector.broadcast %1110 : f32 to vector<16x16xf32>
    %1112 = arith.mulf %1111, %1105 : vector<16x16xf32>
    %1113 = arith.addf %1079, %1112 : vector<16x16xf32>
    %c106 = arith.constant 106 : index
    %1114 = memref.load %arg2[%c106] : memref<288xf32, #tpu.memory_space<smem>>
    %1115 = vector.broadcast %1114 : f32 to vector<16x16xf32>
    %1116 = arith.mulf %1115, %1105 : vector<16x16xf32>
    %1117 = arith.addf %1083, %1116 : vector<16x16xf32>
    %c142 = arith.constant 142 : index
    %1118 = memref.load %arg2[%c142] : memref<288xf32, #tpu.memory_space<smem>>
    %1119 = vector.broadcast %1118 : f32 to vector<16x16xf32>
    %1120 = arith.mulf %1119, %1105 : vector<16x16xf32>
    %1121 = arith.addf %1087, %1120 : vector<16x16xf32>
    %c178 = arith.constant 178 : index
    %1122 = memref.load %arg2[%c178] : memref<288xf32, #tpu.memory_space<smem>>
    %1123 = vector.broadcast %1122 : f32 to vector<16x16xf32>
    %1124 = arith.mulf %1123, %1105 : vector<16x16xf32>
    %1125 = arith.addf %1091, %1124 : vector<16x16xf32>
    %c214 = arith.constant 214 : index
    %1126 = memref.load %arg2[%c214] : memref<288xf32, #tpu.memory_space<smem>>
    %1127 = vector.broadcast %1126 : f32 to vector<16x16xf32>
    %1128 = arith.mulf %1127, %1105 : vector<16x16xf32>
    %1129 = arith.addf %1095, %1128 : vector<16x16xf32>
    %c250 = arith.constant 250 : index
    %1130 = memref.load %arg2[%c250] : memref<288xf32, #tpu.memory_space<smem>>
    %1131 = vector.broadcast %1130 : f32 to vector<16x16xf32>
    %1132 = arith.mulf %1131, %1105 : vector<16x16xf32>
    %1133 = arith.addf %1099, %1132 : vector<16x16xf32>
    %c286 = arith.constant 286 : index
    %1134 = memref.load %arg2[%c286] : memref<288xf32, #tpu.memory_space<smem>>
    %1135 = vector.broadcast %1134 : f32 to vector<16x16xf32>
    %1136 = arith.mulf %1135, %1105 : vector<16x16xf32>
    %1137 = arith.addf %1103, %1136 : vector<16x16xf32>
    %c2_i32_37 = arith.constant 2 : i32
    %1138 = arith.addi %1, %c2_i32_37 : i32
    %c0_38 = arith.constant 0 : index
    %c0_39 = arith.constant 0 : index
    %1139 = arith.index_cast %1138 : i32 to index
    %c2_40 = arith.constant 2 : index
    %1140 = vector.load %arg4[%c0_38, %c0_39, %1139, %c2_40] : memref<1x4x18x18xf32, #tpu.memory_space<vmem>>, vector<1x4x16x16xf32>
    %1141 = vector.shape_cast %1140 : vector<1x4x16x16xf32> to vector<4x16x16xf32>
    %1142 = vector.extract_strided_slice %1141 {offsets = [0, 0, 0], sizes = [1, 16, 16], strides = [1, 1, 1]} : vector<4x16x16xf32> to vector<1x16x16xf32>
    %1143 = vector.shape_cast %1142 : vector<1x16x16xf32> to vector<16x16xf32>
    %c8 = arith.constant 8 : index
    %1144 = memref.load %arg2[%c8] : memref<288xf32, #tpu.memory_space<smem>>
    %1145 = vector.broadcast %1144 : f32 to vector<16x16xf32>
    %1146 = arith.mulf %1145, %1143 : vector<16x16xf32>
    %1147 = arith.addf %1109, %1146 : vector<16x16xf32>
    %c44 = arith.constant 44 : index
    %1148 = memref.load %arg2[%c44] : memref<288xf32, #tpu.memory_space<smem>>
    %1149 = vector.broadcast %1148 : f32 to vector<16x16xf32>
    %1150 = arith.mulf %1149, %1143 : vector<16x16xf32>
    %1151 = arith.addf %1113, %1150 : vector<16x16xf32>
    %c80 = arith.constant 80 : index
    %1152 = memref.load %arg2[%c80] : memref<288xf32, #tpu.memory_space<smem>>
    %1153 = vector.broadcast %1152 : f32 to vector<16x16xf32>
    %1154 = arith.mulf %1153, %1143 : vector<16x16xf32>
    %1155 = arith.addf %1117, %1154 : vector<16x16xf32>
    %c116 = arith.constant 116 : index
    %1156 = memref.load %arg2[%c116] : memref<288xf32, #tpu.memory_space<smem>>
    %1157 = vector.broadcast %1156 : f32 to vector<16x16xf32>
    %1158 = arith.mulf %1157, %1143 : vector<16x16xf32>
    %1159 = arith.addf %1121, %1158 : vector<16x16xf32>
    %c152 = arith.constant 152 : index
    %1160 = memref.load %arg2[%c152] : memref<288xf32, #tpu.memory_space<smem>>
    %1161 = vector.broadcast %1160 : f32 to vector<16x16xf32>
    %1162 = arith.mulf %1161, %1143 : vector<16x16xf32>
    %1163 = arith.addf %1125, %1162 : vector<16x16xf32>
    %c188 = arith.constant 188 : index
    %1164 = memref.load %arg2[%c188] : memref<288xf32, #tpu.memory_space<smem>>
    %1165 = vector.broadcast %1164 : f32 to vector<16x16xf32>
    %1166 = arith.mulf %1165, %1143 : vector<16x16xf32>
    %1167 = arith.addf %1129, %1166 : vector<16x16xf32>
    %c224 = arith.constant 224 : index
    %1168 = memref.load %arg2[%c224] : memref<288xf32, #tpu.memory_space<smem>>
    %1169 = vector.broadcast %1168 : f32 to vector<16x16xf32>
    %1170 = arith.mulf %1169, %1143 : vector<16x16xf32>
    %1171 = arith.addf %1133, %1170 : vector<16x16xf32>
    %c260 = arith.constant 260 : index
    %1172 = memref.load %arg2[%c260] : memref<288xf32, #tpu.memory_space<smem>>
    %1173 = vector.broadcast %1172 : f32 to vector<16x16xf32>
    %1174 = arith.mulf %1173, %1143 : vector<16x16xf32>
    %1175 = arith.addf %1137, %1174 : vector<16x16xf32>
    %1176 = vector.extract_strided_slice %1141 {offsets = [1, 0, 0], sizes = [1, 16, 16], strides = [1, 1, 1]} : vector<4x16x16xf32> to vector<1x16x16xf32>
    %1177 = vector.shape_cast %1176 : vector<1x16x16xf32> to vector<16x16xf32>
    %c17 = arith.constant 17 : index
    %1178 = memref.load %arg2[%c17] : memref<288xf32, #tpu.memory_space<smem>>
    %1179 = vector.broadcast %1178 : f32 to vector<16x16xf32>
    %1180 = arith.mulf %1179, %1177 : vector<16x16xf32>
    %1181 = arith.addf %1147, %1180 : vector<16x16xf32>
    %c53 = arith.constant 53 : index
    %1182 = memref.load %arg2[%c53] : memref<288xf32, #tpu.memory_space<smem>>
    %1183 = vector.broadcast %1182 : f32 to vector<16x16xf32>
    %1184 = arith.mulf %1183, %1177 : vector<16x16xf32>
    %1185 = arith.addf %1151, %1184 : vector<16x16xf32>
    %c89 = arith.constant 89 : index
    %1186 = memref.load %arg2[%c89] : memref<288xf32, #tpu.memory_space<smem>>
    %1187 = vector.broadcast %1186 : f32 to vector<16x16xf32>
    %1188 = arith.mulf %1187, %1177 : vector<16x16xf32>
    %1189 = arith.addf %1155, %1188 : vector<16x16xf32>
    %c125 = arith.constant 125 : index
    %1190 = memref.load %arg2[%c125] : memref<288xf32, #tpu.memory_space<smem>>
    %1191 = vector.broadcast %1190 : f32 to vector<16x16xf32>
    %1192 = arith.mulf %1191, %1177 : vector<16x16xf32>
    %1193 = arith.addf %1159, %1192 : vector<16x16xf32>
    %c161 = arith.constant 161 : index
    %1194 = memref.load %arg2[%c161] : memref<288xf32, #tpu.memory_space<smem>>
    %1195 = vector.broadcast %1194 : f32 to vector<16x16xf32>
    %1196 = arith.mulf %1195, %1177 : vector<16x16xf32>
    %1197 = arith.addf %1163, %1196 : vector<16x16xf32>
    %c197 = arith.constant 197 : index
    %1198 = memref.load %arg2[%c197] : memref<288xf32, #tpu.memory_space<smem>>
    %1199 = vector.broadcast %1198 : f32 to vector<16x16xf32>
    %1200 = arith.mulf %1199, %1177 : vector<16x16xf32>
    %1201 = arith.addf %1167, %1200 : vector<16x16xf32>
    %c233 = arith.constant 233 : index
    %1202 = memref.load %arg2[%c233] : memref<288xf32, #tpu.memory_space<smem>>
    %1203 = vector.broadcast %1202 : f32 to vector<16x16xf32>
    %1204 = arith.mulf %1203, %1177 : vector<16x16xf32>
    %1205 = arith.addf %1171, %1204 : vector<16x16xf32>
    %c269 = arith.constant 269 : index
    %1206 = memref.load %arg2[%c269] : memref<288xf32, #tpu.memory_space<smem>>
    %1207 = vector.broadcast %1206 : f32 to vector<16x16xf32>
    %1208 = arith.mulf %1207, %1177 : vector<16x16xf32>
    %1209 = arith.addf %1175, %1208 : vector<16x16xf32>
    %1210 = vector.extract_strided_slice %1141 {offsets = [2, 0, 0], sizes = [1, 16, 16], strides = [1, 1, 1]} : vector<4x16x16xf32> to vector<1x16x16xf32>
    %1211 = vector.shape_cast %1210 : vector<1x16x16xf32> to vector<16x16xf32>
    %c26 = arith.constant 26 : index
    %1212 = memref.load %arg2[%c26] : memref<288xf32, #tpu.memory_space<smem>>
    %1213 = vector.broadcast %1212 : f32 to vector<16x16xf32>
    %1214 = arith.mulf %1213, %1211 : vector<16x16xf32>
    %1215 = arith.addf %1181, %1214 : vector<16x16xf32>
    %c62 = arith.constant 62 : index
    %1216 = memref.load %arg2[%c62] : memref<288xf32, #tpu.memory_space<smem>>
    %1217 = vector.broadcast %1216 : f32 to vector<16x16xf32>
    %1218 = arith.mulf %1217, %1211 : vector<16x16xf32>
    %1219 = arith.addf %1185, %1218 : vector<16x16xf32>
    %c98 = arith.constant 98 : index
    %1220 = memref.load %arg2[%c98] : memref<288xf32, #tpu.memory_space<smem>>
    %1221 = vector.broadcast %1220 : f32 to vector<16x16xf32>
    %1222 = arith.mulf %1221, %1211 : vector<16x16xf32>
    %1223 = arith.addf %1189, %1222 : vector<16x16xf32>
    %c134 = arith.constant 134 : index
    %1224 = memref.load %arg2[%c134] : memref<288xf32, #tpu.memory_space<smem>>
    %1225 = vector.broadcast %1224 : f32 to vector<16x16xf32>
    %1226 = arith.mulf %1225, %1211 : vector<16x16xf32>
    %1227 = arith.addf %1193, %1226 : vector<16x16xf32>
    %c170 = arith.constant 170 : index
    %1228 = memref.load %arg2[%c170] : memref<288xf32, #tpu.memory_space<smem>>
    %1229 = vector.broadcast %1228 : f32 to vector<16x16xf32>
    %1230 = arith.mulf %1229, %1211 : vector<16x16xf32>
    %1231 = arith.addf %1197, %1230 : vector<16x16xf32>
    %c206 = arith.constant 206 : index
    %1232 = memref.load %arg2[%c206] : memref<288xf32, #tpu.memory_space<smem>>
    %1233 = vector.broadcast %1232 : f32 to vector<16x16xf32>
    %1234 = arith.mulf %1233, %1211 : vector<16x16xf32>
    %1235 = arith.addf %1201, %1234 : vector<16x16xf32>
    %c242 = arith.constant 242 : index
    %1236 = memref.load %arg2[%c242] : memref<288xf32, #tpu.memory_space<smem>>
    %1237 = vector.broadcast %1236 : f32 to vector<16x16xf32>
    %1238 = arith.mulf %1237, %1211 : vector<16x16xf32>
    %1239 = arith.addf %1205, %1238 : vector<16x16xf32>
    %c278 = arith.constant 278 : index
    %1240 = memref.load %arg2[%c278] : memref<288xf32, #tpu.memory_space<smem>>
    %1241 = vector.broadcast %1240 : f32 to vector<16x16xf32>
    %1242 = arith.mulf %1241, %1211 : vector<16x16xf32>
    %1243 = arith.addf %1209, %1242 : vector<16x16xf32>
    %1244 = vector.extract_strided_slice %1141 {offsets = [3, 0, 0], sizes = [1, 16, 16], strides = [1, 1, 1]} : vector<4x16x16xf32> to vector<1x16x16xf32>
    %1245 = vector.shape_cast %1244 : vector<1x16x16xf32> to vector<16x16xf32>
    %c35 = arith.constant 35 : index
    %1246 = memref.load %arg2[%c35] : memref<288xf32, #tpu.memory_space<smem>>
    %1247 = vector.broadcast %1246 : f32 to vector<16x16xf32>
    %1248 = arith.mulf %1247, %1245 : vector<16x16xf32>
    %1249 = arith.addf %1215, %1248 : vector<16x16xf32>
    %c71 = arith.constant 71 : index
    %1250 = memref.load %arg2[%c71] : memref<288xf32, #tpu.memory_space<smem>>
    %1251 = vector.broadcast %1250 : f32 to vector<16x16xf32>
    %1252 = arith.mulf %1251, %1245 : vector<16x16xf32>
    %1253 = arith.addf %1219, %1252 : vector<16x16xf32>
    %c107 = arith.constant 107 : index
    %1254 = memref.load %arg2[%c107] : memref<288xf32, #tpu.memory_space<smem>>
    %1255 = vector.broadcast %1254 : f32 to vector<16x16xf32>
    %1256 = arith.mulf %1255, %1245 : vector<16x16xf32>
    %1257 = arith.addf %1223, %1256 : vector<16x16xf32>
    %c143 = arith.constant 143 : index
    %1258 = memref.load %arg2[%c143] : memref<288xf32, #tpu.memory_space<smem>>
    %1259 = vector.broadcast %1258 : f32 to vector<16x16xf32>
    %1260 = arith.mulf %1259, %1245 : vector<16x16xf32>
    %1261 = arith.addf %1227, %1260 : vector<16x16xf32>
    %c179 = arith.constant 179 : index
    %1262 = memref.load %arg2[%c179] : memref<288xf32, #tpu.memory_space<smem>>
    %1263 = vector.broadcast %1262 : f32 to vector<16x16xf32>
    %1264 = arith.mulf %1263, %1245 : vector<16x16xf32>
    %1265 = arith.addf %1231, %1264 : vector<16x16xf32>
    %c215 = arith.constant 215 : index
    %1266 = memref.load %arg2[%c215] : memref<288xf32, #tpu.memory_space<smem>>
    %1267 = vector.broadcast %1266 : f32 to vector<16x16xf32>
    %1268 = arith.mulf %1267, %1245 : vector<16x16xf32>
    %1269 = arith.addf %1235, %1268 : vector<16x16xf32>
    %c251 = arith.constant 251 : index
    %1270 = memref.load %arg2[%c251] : memref<288xf32, #tpu.memory_space<smem>>
    %1271 = vector.broadcast %1270 : f32 to vector<16x16xf32>
    %1272 = arith.mulf %1271, %1245 : vector<16x16xf32>
    %1273 = arith.addf %1239, %1272 : vector<16x16xf32>
    %c287 = arith.constant 287 : index
    %1274 = memref.load %arg2[%c287] : memref<288xf32, #tpu.memory_space<smem>>
    %1275 = vector.broadcast %1274 : f32 to vector<16x16xf32>
    %1276 = arith.mulf %1275, %1245 : vector<16x16xf32>
    %1277 = arith.addf %1243, %1276 : vector<16x16xf32>
    %c0_41 = arith.constant 0 : index
    %c0_42 = arith.constant 0 : index
    %c0_43 = arith.constant 0 : index
    %c0_44 = arith.constant 0 : index
    %1278 = vector.load %arg5[%c0_41, %c0_42, %c0_43, %c0_44] : memref<1x8x16x16xf32, #tpu.memory_space<vmem>>, vector<1x1x16x16xf32>
    %1279 = vector.shape_cast %1278 : vector<1x1x16x16xf32> to vector<16x16xf32>
    %1280 = vector.shape_cast %1249 : vector<16x16xf32> to vector<1x1x16x16xf32>
    tpu.vector_store %arg5[%c0_41, %c0_42, %c0_43, %c0_44], %1280 {strides = array<i32>} : memref<1x8x16x16xf32, #tpu.memory_space<vmem>>, vector<1x1x16x16xf32>,
    %c0_45 = arith.constant 0 : index
    %c1_46 = arith.constant 1 : index
    %c0_47 = arith.constant 0 : index
    %c0_48 = arith.constant 0 : index
    %1281 = vector.load %arg5[%c0_45, %c1_46, %c0_47, %c0_48] : memref<1x8x16x16xf32, #tpu.memory_space<vmem>>, vector<1x1x16x16xf32>
    %1282 = vector.shape_cast %1281 : vector<1x1x16x16xf32> to vector<16x16xf32>
    %1283 = vector.shape_cast %1253 : vector<16x16xf32> to vector<1x1x16x16xf32>
    tpu.vector_store %arg5[%c0_45, %c1_46, %c0_47, %c0_48], %1283 {strides = array<i32>} : memref<1x8x16x16xf32, #tpu.memory_space<vmem>>, vector<1x1x16x16xf32>,
    %c0_49 = arith.constant 0 : index
    %c2_50 = arith.constant 2 : index
    %c0_51 = arith.constant 0 : index
    %c0_52 = arith.constant 0 : index
    %1284 = vector.load %arg5[%c0_49, %c2_50, %c0_51, %c0_52] : memref<1x8x16x16xf32, #tpu.memory_space<vmem>>, vector<1x1x16x16xf32>
    %1285 = vector.shape_cast %1284 : vector<1x1x16x16xf32> to vector<16x16xf32>
    %1286 = vector.shape_cast %1257 : vector<16x16xf32> to vector<1x1x16x16xf32>
    tpu.vector_store %arg5[%c0_49, %c2_50, %c0_51, %c0_52], %1286 {strides = array<i32>} : memref<1x8x16x16xf32, #tpu.memory_space<vmem>>, vector<1x1x16x16xf32>,
    %c0_53 = arith.constant 0 : index
    %c3_54 = arith.constant 3 : index
    %c0_55 = arith.constant 0 : index
    %c0_56 = arith.constant 0 : index
    %1287 = vector.load %arg5[%c0_53, %c3_54, %c0_55, %c0_56] : memref<1x8x16x16xf32, #tpu.memory_space<vmem>>, vector<1x1x16x16xf32>
    %1288 = vector.shape_cast %1287 : vector<1x1x16x16xf32> to vector<16x16xf32>
    %1289 = vector.shape_cast %1261 : vector<16x16xf32> to vector<1x1x16x16xf32>
    tpu.vector_store %arg5[%c0_53, %c3_54, %c0_55, %c0_56], %1289 {strides = array<i32>} : memref<1x8x16x16xf32, #tpu.memory_space<vmem>>, vector<1x1x16x16xf32>,
    %c0_57 = arith.constant 0 : index
    %c4_58 = arith.constant 4 : index
    %c0_59 = arith.constant 0 : index
    %c0_60 = arith.constant 0 : index
    %1290 = vector.load %arg5[%c0_57, %c4_58, %c0_59, %c0_60] : memref<1x8x16x16xf32, #tpu.memory_space<vmem>>, vector<1x1x16x16xf32>
    %1291 = vector.shape_cast %1290 : vector<1x1x16x16xf32> to vector<16x16xf32>
    %1292 = vector.shape_cast %1265 : vector<16x16xf32> to vector<1x1x16x16xf32>
    tpu.vector_store %arg5[%c0_57, %c4_58, %c0_59, %c0_60], %1292 {strides = array<i32>} : memref<1x8x16x16xf32, #tpu.memory_space<vmem>>, vector<1x1x16x16xf32>,
    %c0_61 = arith.constant 0 : index
    %c5_62 = arith.constant 5 : index
    %c0_63 = arith.constant 0 : index
    %c0_64 = arith.constant 0 : index
    %1293 = vector.load %arg5[%c0_61, %c5_62, %c0_63, %c0_64] : memref<1x8x16x16xf32, #tpu.memory_space<vmem>>, vector<1x1x16x16xf32>
    %1294 = vector.shape_cast %1293 : vector<1x1x16x16xf32> to vector<16x16xf32>
    %1295 = vector.shape_cast %1269 : vector<16x16xf32> to vector<1x1x16x16xf32>
    tpu.vector_store %arg5[%c0_61, %c5_62, %c0_63, %c0_64], %1295 {strides = array<i32>} : memref<1x8x16x16xf32, #tpu.memory_space<vmem>>, vector<1x1x16x16xf32>,
    %c0_65 = arith.constant 0 : index
    %c6_66 = arith.constant 6 : index
    %c0_67 = arith.constant 0 : index
    %c0_68 = arith.constant 0 : index
    %1296 = vector.load %arg5[%c0_65, %c6_66, %c0_67, %c0_68] : memref<1x8x16x16xf32, #tpu.memory_space<vmem>>, vector<1x1x16x16xf32>
    %1297 = vector.shape_cast %1296 : vector<1x1x16x16xf32> to vector<16x16xf32>
    %1298 = vector.shape_cast %1273 : vector<16x16xf32> to vector<1x1x16x16xf32>
    tpu.vector_store %arg5[%c0_65, %c6_66, %c0_67, %c0_68], %1298 {strides = array<i32>} : memref<1x8x16x16xf32, #tpu.memory_space<vmem>>, vector<1x1x16x16xf32>,
    %c0_69 = arith.constant 0 : index
    %c7_70 = arith.constant 7 : index
    %c0_71 = arith.constant 0 : index
    %c0_72 = arith.constant 0 : index
    %1299 = vector.load %arg5[%c0_69, %c7_70, %c0_71, %c0_72] : memref<1x8x16x16xf32, #tpu.memory_space<vmem>>, vector<1x1x16x16xf32>
    %1300 = vector.shape_cast %1299 : vector<1x1x16x16xf32> to vector<16x16xf32>
    %1301 = vector.shape_cast %1277 : vector<16x16xf32> to vector<1x1x16x16xf32>
    tpu.vector_store %arg5[%c0_69, %c7_70, %c0_71, %c0_72], %1301 {strides = array<i32>} : memref<1x8x16x16xf32, #tpu.memory_space<vmem>>, vector<1x1x16x16xf32>,
    return
  }
  func.func @transform_0(%arg0: i32, %arg1: i32) -> i32 {
    %c0_i32 = arith.constant 0 : i32
    %c0_i32_0 = arith.constant 0 : i32
    return %c0_i32 : i32
  }
  func.func @transform_1(%arg0: i32, %arg1: i32) -> i32 {
    %c0_i32 = arith.constant 0 : i32
    %c0_i32_0 = arith.constant 0 : i32
    return %c0_i32 : i32
  }
  func.func @transform_2(%arg0: i32, %arg1: i32) -> (i32, i32, i32, i32) {
    %c0_i32 = arith.constant 0 : i32
    %c0_i32_0 = arith.constant 0 : i32
    %c0_i32_1 = arith.constant 0 : i32
    %c0_i32_2 = arith.constant 0 : i32
    return %arg0, %c0_i32, %c0_i32_0, %c0_i32_1 : i32, i32, i32, i32
  }
  func.func @transform_3(%arg0: i32, %arg1: i32) -> (i32, i32, i32, i32) {
    %c0_i32 = arith.constant 0 : i32
    %c0_i32_0 = arith.constant 0 : i32
    %c0_i32_1 = arith.constant 0 : i32
    return %arg0, %c0_i32, %arg1, %c0_i32_0 : i32, i32, i32, i32
  }
}

</mosaic_0001>

<llo_original>
// kernel: convolution2d_forward.1
$region0: #{convolution2d_forward.1}
  #allocation0 [shape = 'u32[]', space=smem, size = 0x4, offset = 0x4, fixed_abs, tag = 'smem constant byte address 0x4 - core index']
  #allocation1 [shape = 'u32[144,128]{1,0:T(1,128)}', space=vmem, size = 0x12000, scoped, tag = 'internal scratch']
  %s0 = inlined_call_operand.vmem [shape: f32[288], index: 0, kind: input, shape index: {}]
  %s1 = inlined_call_operand.vmem [shape: f32[8], index: 1, kind: input, shape index: {}]
  %s2 = inlined_call_operand.vmem [shape: f32[2,4,18,18], index: 2, kind: input, shape index: {}]
  %s3 = inlined_call_operand.hbm [shape: f32[2,8,16,16], index: 3, kind: output, shape index: {}]
  %s4 = sld [smem:[#allocation0]]
  $region53: #{convolution2d_forward.1} parent=0
    _
  %s6 = ssub.s32 1, %s4
  %s7 = scalar_select 0, %s6, %s4
  $region1: #{convolution2d_forward.1} parent=0
    #allocation2 [shape = 'u8[1536]{0}', space=smem, size = 0x600, scoped, tag = 'input window, operand 0, single buffered']
    #allocation3 [shape = 's32[2]{0}', space=sflag, size = 0x8, scoped, tag = 'scoped memory for convolution2d_forward.1']
    #allocation4 [shape = 's32[2]{0}', space=sflag, size = 0x8, scoped, tag = 'scoped memory for convolution2d_forward.1']
    #allocation5 [shape = 'u8[512]{0}', space=smem, size = 0x200, scoped, tag = 'input window, operand 1, single buffered']
    #allocation6 [shape = 's32[1]{0}', space=sflag, size = 0x4, scoped, tag = 'scoped memory for convolution2d_forward.1']
    #allocation7 [shape = 'u8[131072]{0}', space=vmem, size = 0x20000, scoped, tag = 'output window, operand 0']
    %8 = vsyncpa [#allocation4], 0
    %9 = vsyncpa [#allocation6], 0
    %10 = vsyncpa [#allocation3], 0
    %s11 = scalar_lea.sflag [#allocation3], 1
    %12 = vsyncpa %s11, 0
    loop: start=0, step=1, limit=4
    $region2: #{convolution2d_forward.1} parent=1 // loop_pre_header
      _
    $region3: #{convolution2d_forward.1} parent=1 // loop_header
      %s14 = sphi 0, %s18
      %p15 = scmp.ge.s32.totalorder %s14, 4
      %s21 = sphi 0, %s33
      %s22 = sphi 0, %s29
      %s23 = sphi 0, %s21
      %s24 = sphi 0, %s22
      %s25 = sphi 0, %s23
      %s26 = sphi 0, %s24
      %s34 = sphi 0, %s34
      %s36 = sphi 0, %s34
      %s37 = sphi 0, %s36
      %s51 = sphi 0, %s37
      %s55 = sphi 0, %s55
      %s57 = sphi 0, %s55
      %s58 = sphi 0, %s57
      %s72 = sphi 0, %s58
      %s78 = sphi 0, %s80
      %s81 = sphi 0, %s78
      %s82 = sphi 0, %s81
      %s98 = sphi 0, %s82
      %s106 = sphi 0, %s108
      %s109 = sphi 0, %s106
      %s110 = sphi 0, %s109
      %s126 = sphi 0, %s110
    $region4: #{convolution2d_forward.1} parent=1 // loop_header_branch
      %17 = sbr.rel (%p15) target = $region8
    $region5: #{convolution2d_forward.1} parent=1 // loop_body
      %s19 = ssub.s32 %s14, 1
      %s20 = ssub.s32 %s14, 2
      %s27 = sadd.s32 1, %s22
      %p28 = scmp.ge.s32.totalorder %s27, 1
      %s29 = scalar_select %p28, 0, %s27
      %s30 = sadd.s32 1, %s21
      %s31 = scalar_select %p28, %s30, %s21
      %p32 = scmp.ge.s32.totalorder %s31, 2
      %s33 = scalar_select %p32, 0, %s31
      %s35 = sadd.s32 %s34, 1
      %p38 = scmp.eq.s32.totalorder %s14, 1
      %p39 = scmp.ne.s32.totalorder %s34, %s36
      %p40 = scmp.eq.s32.totalorder %s14, 0
      %p41 = por %p39, %p40
      %p42 = scmp.ne.s32.totalorder %s34, %s36
      %p43 = scmp.eq.s32.totalorder %s19, 1
      %p44 = por %p42, %p43
      %p45 = scmp.ne.s32.totalorder %s36, %s37
      %p46 = scmp.eq.s32.totalorder %s19, 0
      %p47 = por %p45, %p46
      %p48 = scmp.ne.s32.totalorder %s36, %s37
      %p49 = scmp.eq.s32.totalorder %s20, 1
      %p50 = por %p48, %p49
      %p52 = scmp.ne.s32.totalorder %s37, %s51
      %p53 = scmp.eq.s32.totalorder %s20, 0
      %p54 = por %p52, %p53
      %s56 = sadd.s32 %s55, 1
      %p59 = scmp.eq.s32.totalorder %s14, 1
      %p60 = scmp.ne.s32.totalorder %s55, %s57
      %p61 = scmp.eq.s32.totalorder %s14, 0
      %p62 = por %p60, %p61
      %p63 = scmp.ne.s32.totalorder %s55, %s57
      %p64 = scmp.eq.s32.totalorder %s19, 1
      %p65 = por %p63, %p64
      %p66 = scmp.ne.s32.totalorder %s57, %s58
      %p67 = scmp.eq.s32.totalorder %s19, 0
      %p68 = por %p66, %p67
      %p69 = scmp.ne.s32.totalorder %s57, %s58
      %p70 = scmp.eq.s32.totalorder %s20, 1
      %p71 = por %p69, %p70
      %p73 = scmp.ne.s32.totalorder %s58, %s72
      %p74 = scmp.eq.s32.totalorder %s20, 0
      %p75 = por %p73, %p74
      %s76 = ssub.s32 %s21, %s33
      %p77 = scmp.eq.s32.totalorder %s76, 0
      %s79 = sadd.s32 %s78, 1
      %s80 = scalar_select %p77, %s78, %s79
      %p83 = pneg %p77
      %p84 = scmp.eq.s32.totalorder %s14, 1
      %p85 = por %p83, %p84
      %p86 = scmp.ne.s32.totalorder %s78, %s81
      %p87 = scmp.eq.s32.totalorder %s14, 0
      %p88 = por %p86, %p87
      %p89 = scmp.ne.s32.totalorder %s78, %s81
      %p90 = scmp.eq.s32.totalorder %s19, 1
      %p91 = por %p89, %p90
      %p92 = scmp.ne.s32.totalorder %s81, %s82
      %p93 = scmp.eq.s32.totalorder %s19, 0
      %p94 = por %p92, %p93
      %p95 = scmp.ne.s32.totalorder %s81, %s82
      %p96 = scmp.eq.s32.totalorder %s20, 1
      %p97 = por %p95, %p96
      %p99 = scmp.ne.s32.totalorder %s82, %s98
      %p100 = scmp.eq.s32.totalorder %s20, 0
      %p101 = por %p99, %p100
      %s102 = ssub.s32 %s21, %s33
      %s103 = ssub.s32 %s22, %s29
      %s104 = sor.u32 %s102, %s103
      %p105 = scmp.eq.s32.totalorder %s104, 0
      %s107 = sadd.s32 %s106, 1
      %s108 = scalar_select %p105, %s106, %s107
      %p111 = pneg %p105
      %p112 = scmp.eq.s32.totalorder %s14, 1
      %p113 = por %p111, %p112
      %p114 = scmp.ne.s32.totalorder %s106, %s109
      %p115 = scmp.eq.s32.totalorder %s14, 0
      %p116 = por %p114, %p115
      %p117 = scmp.ne.s32.totalorder %s106, %s109
      %p118 = scmp.eq.s32.totalorder %s19, 1
      %p119 = por %p117, %p118
      %p120 = scmp.ne.s32.totalorder %s109, %s110
      %p121 = scmp.eq.s32.totalorder %s19, 0
      %p122 = por %p120, %p121
      %p123 = scmp.ne.s32.totalorder %s109, %s110
      %p124 = scmp.eq.s32.totalorder %s20, 1
      %p125 = por %p123, %p124
      %p127 = scmp.ne.s32.totalorder %s110, %s126
      %p128 = scmp.eq.s32.totalorder %s20, 0
      %p129 = por %p127, %p128
      %p130 = scmp.le.s32.totalorder 1, %s14
      %p131 = scmp.lt.s32.totalorder %s14, 3
      %p132 = pnand %p130, %p131
      %p133 = pneg %p132
      // Predicated region
      $region9: #{convolution2d_forward.1} parent=5 // pred_check
        _
      $region10: #{convolution2d_forward.1} parent=5 // pred_check_branch
        %135 = sbr.rel (%p132) target = $region12
      $region11: #{convolution2d_forward.1} parent=5 // pred_region
        %s136 = ssub.s32 %s14, 1
        // Predicated region
        $region13: #{convolution2d_forward.1} parent=11 // pred_check
          %p137 = pneg %p47
        $region14: #{convolution2d_forward.1} parent=11 // pred_check_branch
          %139 = sbr.rel (%p137) target = $region16
        $region15: #{convolution2d_forward.1} parent=11 // pred_region
          %s141 = ssub.s32 48, 48
          %142 = vsyncadd [#allocation4], %s141
          %s144 = sshll.u32 %s0, 4
          %s145 = int_to_ptr.vmem [resolvable:$true] %s144
          %147 = dma.vmem_to_smem %s145, 48, [#allocation2], [#allocation4]
        $region16: #{convolution2d_forward.1} parent=11 // pred_fallthru
          _
        // Predicated region
        $region17: #{convolution2d_forward.1} parent=11 // pred_check
          %p148 = pneg %p68
        $region18: #{convolution2d_forward.1} parent=11 // pred_check_branch
          %150 = sbr.rel (%p148) target = $region20
        $region19: #{convolution2d_forward.1} parent=11 // pred_region
          %s152 = ssub.s32 16, 16
          %153 = vsyncadd [#allocation6], %s152
          %s155 = sshll.u32 %s1, 4
          %s156 = int_to_ptr.vmem [resolvable:$true] %s155
          %158 = dma.vmem_to_smem %s156, 16, [#allocation5], [#allocation6]
        $region20: #{convolution2d_forward.1} parent=11 // pred_fallthru
          _
      $region12: #{convolution2d_forward.1} parent=5 // pred_fallthru
        _
      %p159 = scmp.lt.s32.totalorder %s14, 2
      // Predicated region
      $region21: #{convolution2d_forward.1} parent=5 // pred_check
        %p160 = pneg %p159
      $region22: #{convolution2d_forward.1} parent=5 // pred_check_branch
        %162 = sbr.rel (%p160) target = $region24
      $region23: #{convolution2d_forward.1} parent=5 // pred_region
        // Predicated region
        $region25: #{convolution2d_forward.1} parent=23 // pred_check
          %p163 = pneg %p88
        $region26: #{convolution2d_forward.1} parent=23 // pred_check_branch
          %165 = sbr.rel (%p163) target = $region28
        $region27: #{convolution2d_forward.1} parent=23 // pred_region
          %p166 = scmp.lt.s32.totalorder %s21, 1
          %s167 = scalar_select %p166, %s21, 1
          %s168 = smul.addr %s167, 12
          %s169 = smul.addr %s168, 8
          %s170 = scalar_lea.vmem %s2, %s169
        $region28: #{convolution2d_forward.1} parent=23 // pred_fallthru
          _
      $region24: #{convolution2d_forward.1} parent=5 // pred_fallthru
        _
      %p171 = scmp.le.s32.totalorder 1, %s14
      %p172 = scmp.lt.s32.totalorder %s14, 3
      %p173 = pnand %p171, %p172
      %p174 = pneg %p173
      // Predicated region
      $region29: #{convolution2d_forward.1} parent=5 // pred_check
        _
      $region30: #{convolution2d_forward.1} parent=5 // pred_check_branch
        %176 = sbr.rel (%p173) target = $region32
      $region31: #{convolution2d_forward.1} parent=5 // pred_region
        %s177 = ssub.s32 %s14, 1
        // Predicated region
        $region33: #{convolution2d_forward.1} parent=31 // pred_check
          %p178 = pneg %p47
        $region34: #{convolution2d_forward.1} parent=31 // pred_check_branch
          %180 = sbr.rel (%p178) target = $region36
        $region35: #{convolution2d_forward.1} parent=31 // pred_region
          %181 = dma.done [#allocation4], 48
        $region36: #{convolution2d_forward.1} parent=31 // pred_fallthru
          _
        // Predicated region
        $region37: #{convolution2d_forward.1} parent=31 // pred_check
          %p182 = pneg %p68
        $region38: #{convolution2d_forward.1} parent=31 // pred_check_branch
          %184 = sbr.rel (%p182) target = $region40
        $region39: #{convolution2d_forward.1} parent=31 // pred_region
          %185 = dma.done [#allocation6], 16
        $region40: #{convolution2d_forward.1} parent=31 // pred_fallthru
          _
        %186 = sfence
        %p187 = pneg %p47
        %p188 = pneg %p44
        %p189 = pneg %p68
        %p190 = pneg %p65
        %p191 = scmp.lt.s32.totalorder %s23, 1
        %s192 = scalar_select %p191, %s23, 1
        %s193 = smul.addr %s192, 12
        %s194 = smul.addr %s193, 8
        %s195 = scalar_lea.vmem %s2, %s194
        %p196 = pneg %p94
        %p197 = pneg %p91
        %p198 = pneg %p122
        %p199 = pneg %p119
        %s200 = sand.u32 %s109, 1
        %s201 = scalar_lea.sflag [#allocation3], %s200
        %s202 = sand.u32 %s109, 1
        %s203 = smul.addr %s202, 128
        %s204 = scalar_lea.vmem [#allocation7], %s203
        %p205 = scmp.lt.s32.totalorder %s23, 1
        %s206 = scalar_select %p205, %s23, 1
        %s207 = smul.addr %s206, 12
        %s208 = smul.addr %s207, 8
        %s209 = scalar_lea.vmem %s2, %s208
        %s210 = smul.u32 2, %s24
        %s211 = smul.u32 %s24, 16
        %s212 = sld [smem:[#allocation5]]
        %v213 = vstv %s212
        %s214 = sld [smem:[#allocation5 + $0x1]]
        %v215 = vstv %s214
        %s216 = sld [smem:[#allocation5 + $0x2]]
        %v217 = vstv %s216
        %s218 = sld [smem:[#allocation5 + $0x3]]
        %v219 = vstv %s218
        %s220 = sld [smem:[#allocation5 + $0x4]]
        %v221 = vstv %s220
        %s222 = sld [smem:[#allocation5 + $0x5]]
        %v223 = vstv %s222
        %s224 = sld [smem:[#allocation5 + $0x6]]
        %v225 = vstv %s224
        %s226 = sld [smem:[#allocation5 + $0x7]]
        %v227 = vstv %s226
        %s228 = scalar_lea.vmem %s209, %s211
        %v229 = vld [vmem:[%s228] sm:$0xff]
        %v230 = vld [vmem:[%s228 + $0x8] sm:$0xff]
        %v231 = vld [vmem:[%s228 + $0x18] sm:$0xff]
        %v232 = vld [vmem:[%s228 + $0x20] sm:$0xff]
        %v233 = vld [vmem:[%s228 + $0x30] sm:$0xff]
        %v234 = vld [vmem:[%s228 + $0x38] sm:$0xff]
        %v235 = vld [vmem:[%s228 + $0x48] sm:$0xff]
        %v236 = vld [vmem:[%s228 + $0x50] sm:$0xff]
        %s237 = sld [smem:[#allocation2]]
        %v238 = vstv %s237
        %v239 = vmul.f32 %v238, %v229
        %v240 = vmul.f32 %v238, %v230
        %v241 = vadd.f32 %v213, %v239
        %v242 = vadd.f32 %v213, %v240
        %s243 = sld [smem:[#allocation2 + $0x24]]
        %v244 = vstv %s243
        %v245 = vmul.f32 %v244, %v229
        %v246 = vmul.f32 %v244, %v230
        %v247 = vadd.f32 %v215, %v245
        %v248 = vadd.f32 %v215, %v246
        %s249 = sld [smem:[#allocation2 + $0x48]]
        %v250 = vstv %s249
        %v251 = vmul.f32 %v250, %v229
        %v252 = vmul.f32 %v250, %v230
        %v253 = vadd.f32 %v217, %v251
        %v254 = vadd.f32 %v217, %v252
        %s255 = sld [smem:[#allocation2 + $0x6c]]
        %v256 = vstv %s255
        %v257 = vmul.f32 %v256, %v229
        %v258 = vmul.f32 %v256, %v230
        %v259 = vadd.f32 %v219, %v257
        %v260 = vadd.f32 %v219, %v258
        %s261 = sld [smem:[#allocation2 + $0x90]]
        %v262 = vstv %s261
        %v263 = vmul.f32 %v262, %v229
        %v264 = vmul.f32 %v262, %v230
        %v265 = vadd.f32 %v221, %v263
        %v266 = vadd.f32 %v221, %v264
        %s267 = sld [smem:[#allocation2 + $0xb4]]
        %v268 = vstv %s267
        %v269 = vmul.f32 %v268, %v229
        %v270 = vmul.f32 %v268, %v230
        %v271 = vadd.f32 %v223, %v269
        %v272 = vadd.f32 %v223, %v270
        %s273 = sld [smem:[#allocation2 + $0xd8]]
        %v274 = vstv %s273
        %v275 = vmul.f32 %v274, %v229
        %v276 = vmul.f32 %v274, %v230
        %v277 = vadd.f32 %v225, %v275
        %v278 = vadd.f32 %v225, %v276
        %s279 = sld [smem:[#allocation2 + $0xfc]]
        %v280 = vstv %s279
        %v281 = vmul.f32 %v280, %v229
        %v282 = vmul.f32 %v280, %v230
        %v283 = vadd.f32 %v227, %v281
        %v284 = vadd.f32 %v227, %v282
        %s285 = sld [smem:[#allocation2 + $0x9]]
        %v286 = vstv %s285
        %v287 = vmul.f32 %v286, %v231
        %v288 = vmul.f32 %v286, %v232
        %v289 = vadd.f32 %v241, %v287
        %v290 = vadd.f32 %v242, %v288
        %s291 = sld [smem:[#allocation2 + $0x2d]]
        %v292 = vstv %s291
        %v293 = vmul.f32 %v292, %v231
        %v294 = vmul.f32 %v292, %v232
        %v295 = vadd.f32 %v247, %v293
        %v296 = vadd.f32 %v248, %v294
        %s297 = sld [smem:[#allocation2 + $0x51]]
        %v298 = vstv %s297
        %v299 = vmul.f32 %v298, %v231
        %v300 = vmul.f32 %v298, %v232
        %v301 = vadd.f32 %v253, %v299
        %v302 = vadd.f32 %v254, %v300
        %s303 = sld [smem:[#allocation2 + $0x75]]
        %v304 = vstv %s303
        %v305 = vmul.f32 %v304, %v231
        %v306 = vmul.f32 %v304, %v232
        %v307 = vadd.f32 %v259, %v305
        %v308 = vadd.f32 %v260, %v306
        %s309 = sld [smem:[#allocation2 + $0x99]]
        %v310 = vstv %s309
        %v311 = vmul.f32 %v310, %v231
        %v312 = vmul.f32 %v310, %v232
        %v313 = vadd.f32 %v265, %v311
        %v314 = vadd.f32 %v266, %v312
        %s315 = sld [smem:[#allocation2 + $0xbd]]
        %v316 = vstv %s315
        %v317 = vmul.f32 %v316, %v231
        %v318 = vmul.f32 %v316, %v232
        %v319 = vadd.f32 %v271, %v317
        %v320 = vadd.f32 %v272, %v318
        %s321 = sld [smem:[#allocation2 + $0xe1]]
        %v322 = vstv %s321
        %v323 = vmul.f32 %v322, %v231
        %v324 = vmul.f32 %v322, %v232
        %v325 = vadd.f32 %v277, %v323
        %v326 = vadd.f32 %v278, %v324
        %s327 = sld [smem:[#allocation2 + $0x105]]
        %v328 = vstv %s327
        %v329 = vmul.f32 %v328, %v231
        %v330 = vmul.f32 %v328, %v232
        %v331 = vadd.f32 %v283, %v329
        %v332 = vadd.f32 %v284, %v330
        %s333 = sld [smem:[#allocation2 + $0x12]]
        %v334 = vstv %s333
        %v335 = vmul.f32 %v334, %v233
        %v336 = vmul.f32 %v334, %v234
        %v337 = vadd.f32 %v289, %v335
        %v338 = vadd.f32 %v290, %v336
        %s339 = sld [smem:[#allocation2 + $0x36]]
        %v340 = vstv %s339
        %v341 = vmul.f32 %v340, %v233
        %v342 = vmul.f32 %v340, %v234
        %v343 = vadd.f32 %v295, %v341
        %v344 = vadd.f32 %v296, %v342
        %s345 = sld [smem:[#allocation2 + $0x5a]]
        %v346 = vstv %s345
        %v347 = vmul.f32 %v346, %v233
        %v348 = vmul.f32 %v346, %v234
        %v349 = vadd.f32 %v301, %v347
        %v350 = vadd.f32 %v302, %v348
        %s351 = sld [smem:[#allocation2 + $0x7e]]
        %v352 = vstv %s351
        %v353 = vmul.f32 %v352, %v233
        %v354 = vmul.f32 %v352, %v234
        %v355 = vadd.f32 %v307, %v353
        %v356 = vadd.f32 %v308, %v354
        %s357 = sld [smem:[#allocation2 + $0xa2]]
        %v358 = vstv %s357
        %v359 = vmul.f32 %v358, %v233
        %v360 = vmul.f32 %v358, %v234
        %v361 = vadd.f32 %v313, %v359
        %v362 = vadd.f32 %v314, %v360
        %s363 = sld [smem:[#allocation2 + $0xc6]]
        %v364 = vstv %s363
        %v365 = vmul.f32 %v364, %v233
        %v366 = vmul.f32 %v364, %v234
        %v367 = vadd.f32 %v319, %v365
        %v368 = vadd.f32 %v320, %v366
        %s369 = sld [smem:[#allocation2 + $0xea]]
        %v370 = vstv %s369
        %v371 = vmul.f32 %v370, %v233
        %v372 = vmul.f32 %v370, %v234
        %v373 = vadd.f32 %v325, %v371
        %v374 = vadd.f32 %v326, %v372
        %s375 = sld [smem:[#allocation2 + $0x10e]]
        %v376 = vstv %s375
        %v377 = vmul.f32 %v376, %v233
        %v378 = vmul.f32 %v376, %v234
        %v379 = vadd.f32 %v331, %v377
        %v380 = vadd.f32 %v332, %v378
        %s381 = sld [smem:[#allocation2 + $0x1b]]
        %v382 = vstv %s381
        %v383 = vmul.f32 %v382, %v235
        %v384 = vmul.f32 %v382, %v236
        %v385 = vadd.f32 %v337, %v383
        %v386 = vadd.f32 %v338, %v384
        %s387 = sld [smem:[#allocation2 + $0x3f]]
        %v388 = vstv %s387
        %v389 = vmul.f32 %v388, %v235
        %v390 = vmul.f32 %v388, %v236
        %v391 = vadd.f32 %v343, %v389
        %v392 = vadd.f32 %v344, %v390
        %s393 = sld [smem:[#allocation2 + $0x63]]
        %v394 = vstv %s393
        %v395 = vmul.f32 %v394, %v235
        %v396 = vmul.f32 %v394, %v236
        %v397 = vadd.f32 %v349, %v395
        %v398 = vadd.f32 %v350, %v396
        %s399 = sld [smem:[#allocation2 + $0x87]]
        %v400 = vstv %s399
        %v401 = vmul.f32 %v400, %v235
        %v402 = vmul.f32 %v400, %v236
        %v403 = vadd.f32 %v355, %v401
        %v404 = vadd.f32 %v356, %v402
        %s405 = sld [smem:[#allocation2 + $0xab]]
        %v406 = vstv %s405
        %v407 = vmul.f32 %v406, %v235
        %v408 = vmul.f32 %v406, %v236
        %v409 = vadd.f32 %v361, %v407
        %v410 = vadd.f32 %v362, %v408
        %s411 = sld [smem:[#allocation2 + $0xcf]]
        %v412 = vstv %s411
        %v413 = vmul.f32 %v412, %v235
        %v414 = vmul.f32 %v412, %v236
        %v415 = vadd.f32 %v367, %v413
        %v416 = vadd.f32 %v368, %v414
        %s417 = sld [smem:[#allocation2 + $0xf3]]
        %v418 = vstv %s417
        %v419 = vmul.f32 %v418, %v235
        %v420 = vmul.f32 %v418, %v236
        %v421 = vadd.f32 %v373, %v419
        %v422 = vadd.f32 %v374, %v420
        %s423 = sld [smem:[#allocation2 + $0x117]]
        %v424 = vstv %s423
        %v425 = vmul.f32 %v424, %v235
        %v426 = vmul.f32 %v424, %v236
        %v427 = vadd.f32 %v379, %v425
        %v428 = vadd.f32 %v380, %v426
        %s429 = sld [smem:[#allocation2 + $0x1]]
        %v430 = vstv %s429
        %v431 = vmul.f32 %v430, %v229
        %v432 = vmul.f32 %v430, %v230
        %435 = vrot.lane.b32.xlu0 %v431, 127
        %v436 = vpop.permute.xlu0 %435
        %437 = vrot.lane.b32.xlu0 %v432, 127
        %v438 = vpop.permute.xlu0 %437
        %v441 = vadd.f32 %v385, %v436
        %v442 = vadd.f32 %v386, %v438
        %s443 = sld [smem:[#allocation2 + $0x25]]
        %v444 = vstv %s443
        %v445 = vmul.f32 %v444, %v229
        %v446 = vmul.f32 %v444, %v230
        %449 = vrot.lane.b32.xlu0 %v445, 127
        %v450 = vpop.permute.xlu0 %449
        %451 = vrot.lane.b32.xlu0 %v446, 127
        %v452 = vpop.permute.xlu0 %451
        %v455 = vadd.f32 %v391, %v450
        %v456 = vadd.f32 %v392, %v452
        %s457 = sld [smem:[#allocation2 + $0x49]]
        %v458 = vstv %s457
        %v459 = vmul.f32 %v458, %v229
        %v460 = vmul.f32 %v458, %v230
        %463 = vrot.lane.b32.xlu0 %v459, 127
        %v464 = vpop.permute.xlu0 %463
        %465 = vrot.lane.b32.xlu0 %v460, 127
        %v466 = vpop.permute.xlu0 %465
        %v469 = vadd.f32 %v397, %v464
        %v470 = vadd.f32 %v398, %v466
        %s471 = sld [smem:[#allocation2 + $0x6d]]
        %v472 = vstv %s471
        %v473 = vmul.f32 %v472, %v229
        %v474 = vmul.f32 %v472, %v230
        %477 = vrot.lane.b32.xlu0 %v473, 127
        %v478 = vpop.permute.xlu0 %477
        %479 = vrot.lane.b32.xlu0 %v474, 127
        %v480 = vpop.permute.xlu0 %479
        %v483 = vadd.f32 %v403, %v478
        %v484 = vadd.f32 %v404, %v480
        %s485 = sld [smem:[#allocation2 + $0x91]]
        %v486 = vstv %s485
        %v487 = vmul.f32 %v486, %v229
        %v488 = vmul.f32 %v486, %v230
        %491 = vrot.lane.b32.xlu0 %v487, 127
        %v492 = vpop.permute.xlu0 %491
        %493 = vrot.lane.b32.xlu0 %v488, 127
        %v494 = vpop.permute.xlu0 %493
        %v497 = vadd.f32 %v409, %v492
        %v498 = vadd.f32 %v410, %v494
        %s499 = sld [smem:[#allocation2 + $0xb5]]
        %v500 = vstv %s499
        %v501 = vmul.f32 %v500, %v229
        %v502 = vmul.f32 %v500, %v230
        %505 = vrot.lane.b32.xlu0 %v501, 127
        %v506 = vpop.permute.xlu0 %505
        %507 = vrot.lane.b32.xlu0 %v502, 127
        %v508 = vpop.permute.xlu0 %507
        %v511 = vadd.f32 %v415, %v506
        %v512 = vadd.f32 %v416, %v508
        %s513 = sld [smem:[#allocation2 + $0xd9]]
        %v514 = vstv %s513
        %v515 = vmul.f32 %v514, %v229
        %v516 = vmul.f32 %v514, %v230
        %519 = vrot.lane.b32.xlu0 %v515, 127
        %v520 = vpop.permute.xlu0 %519
        %521 = vrot.lane.b32.xlu0 %v516, 127
        %v522 = vpop.permute.xlu0 %521
        %v525 = vadd.f32 %v421, %v520
        %v526 = vadd.f32 %v422, %v522
        %s527 = sld [smem:[#allocation2 + $0xfd]]
        %v528 = vstv %s527
        %v529 = vmul.f32 %v528, %v229
        %v530 = vmul.f32 %v528, %v230
        %533 = vrot.lane.b32.xlu0 %v529, 127
        %v534 = vpop.permute.xlu0 %533
        %535 = vrot.lane.b32.xlu0 %v530, 127
        %v536 = vpop.permute.xlu0 %535
        %v539 = vadd.f32 %v427, %v534
        %v540 = vadd.f32 %v428, %v536
        %s541 = sld [smem:[#allocation2 + $0xa]]
        %v542 = vstv %s541
        %v543 = vmul.f32 %v542, %v231
        %v544 = vmul.f32 %v542, %v232
        %547 = vrot.lane.b32.xlu0 %v543, 127
        %v548 = vpop.permute.xlu0 %547
        %549 = vrot.lane.b32.xlu0 %v544, 127
        %v550 = vpop.permute.xlu0 %549
        %v553 = vadd.f32 %v441, %v548
        %v554 = vadd.f32 %v442, %v550
        %s555 = sld [smem:[#allocation2 + $0x2e]]
        %v556 = vstv %s555
        %v557 = vmul.f32 %v556, %v231
        %v558 = vmul.f32 %v556, %v232
        %561 = vrot.lane.b32.xlu0 %v557, 127
        %v562 = vpop.permute.xlu0 %561
        %563 = vrot.lane.b32.xlu0 %v558, 127
        %v564 = vpop.permute.xlu0 %563
        %v567 = vadd.f32 %v455, %v562
        %v568 = vadd.f32 %v456, %v564
        %s569 = sld [smem:[#allocation2 + $0x52]]
        %v570 = vstv %s569
        %v571 = vmul.f32 %v570, %v231
        %v572 = vmul.f32 %v570, %v232
        %575 = vrot.lane.b32.xlu0 %v571, 127
        %v576 = vpop.permute.xlu0 %575
        %577 = vrot.lane.b32.xlu0 %v572, 127
        %v578 = vpop.permute.xlu0 %577
        %v581 = vadd.f32 %v469, %v576
        %v582 = vadd.f32 %v470, %v578
        %s583 = sld [smem:[#allocation2 + $0x76]]
        %v584 = vstv %s583
        %v585 = vmul.f32 %v584, %v231
        %v586 = vmul.f32 %v584, %v232
        %589 = vrot.lane.b32.xlu0 %v585, 127
        %v590 = vpop.permute.xlu0 %589
        %591 = vrot.lane.b32.xlu0 %v586, 127
        %v592 = vpop.permute.xlu0 %591
        %v595 = vadd.f32 %v483, %v590
        %v596 = vadd.f32 %v484, %v592
        %s597 = sld [smem:[#allocation2 + $0x9a]]
        %v598 = vstv %s597
        %v599 = vmul.f32 %v598, %v231
        %v600 = vmul.f32 %v598, %v232
        %603 = vrot.lane.b32.xlu0 %v599, 127
        %v604 = vpop.permute.xlu0 %603
        %605 = vrot.lane.b32.xlu0 %v600, 127
        %v606 = vpop.permute.xlu0 %605
        %v609 = vadd.f32 %v497, %v604
        %v610 = vadd.f32 %v498, %v606
        %s611 = sld [smem:[#allocation2 + $0xbe]]
        %v612 = vstv %s611
        %v613 = vmul.f32 %v612, %v231
        %v614 = vmul.f32 %v612, %v232
        %617 = vrot.lane.b32.xlu0 %v613, 127
        %v618 = vpop.permute.xlu0 %617
        %619 = vrot.lane.b32.xlu0 %v614, 127
        %v620 = vpop.permute.xlu0 %619
        %v623 = vadd.f32 %v511, %v618
        %v624 = vadd.f32 %v512, %v620
        %s625 = sld [smem:[#allocation2 + $0xe2]]
        %v626 = vstv %s625
        %v627 = vmul.f32 %v626, %v231
        %v628 = vmul.f32 %v626, %v232
        %631 = vrot.lane.b32.xlu0 %v627, 127
        %v632 = vpop.permute.xlu0 %631
        %633 = vrot.lane.b32.xlu0 %v628, 127
        %v634 = vpop.permute.xlu0 %633
        %v637 = vadd.f32 %v525, %v632
        %v638 = vadd.f32 %v526, %v634
        %s639 = sld [smem:[#allocation2 + $0x106]]
        %v640 = vstv %s639
        %v641 = vmul.f32 %v640, %v231
        %v642 = vmul.f32 %v640, %v232
        %645 = vrot.lane.b32.xlu0 %v641, 127
        %v646 = vpop.permute.xlu0 %645
        %647 = vrot.lane.b32.xlu0 %v642, 127
        %v648 = vpop.permute.xlu0 %647
        %v651 = vadd.f32 %v539, %v646
        %v652 = vadd.f32 %v540, %v648
        %s653 = sld [smem:[#allocation2 + $0x13]]
        %v654 = vstv %s653
        %v655 = vmul.f32 %v654, %v233
        %v656 = vmul.f32 %v654, %v234
        %659 = vrot.lane.b32.xlu0 %v655, 127
        %v660 = vpop.permute.xlu0 %659
        %661 = vrot.lane.b32.xlu0 %v656, 127
        %v662 = vpop.permute.xlu0 %661
        %v665 = vadd.f32 %v553, %v660
        %v666 = vadd.f32 %v554, %v662
        %s667 = sld [smem:[#allocation2 + $0x37]]
        %v668 = vstv %s667
        %v669 = vmul.f32 %v668, %v233
        %v670 = vmul.f32 %v668, %v234
        %673 = vrot.lane.b32.xlu0 %v669, 127
        %v674 = vpop.permute.xlu0 %673
        %675 = vrot.lane.b32.xlu0 %v670, 127
        %v676 = vpop.permute.xlu0 %675
        %v679 = vadd.f32 %v567, %v674
        %v680 = vadd.f32 %v568, %v676
        %s681 = sld [smem:[#allocation2 + $0x5b]]
        %v682 = vstv %s681
        %v683 = vmul.f32 %v682, %v233
        %v684 = vmul.f32 %v682, %v234
        %687 = vrot.lane.b32.xlu0 %v683, 127
        %v688 = vpop.permute.xlu0 %687
        %689 = vrot.lane.b32.xlu0 %v684, 127
        %v690 = vpop.permute.xlu0 %689
        %v693 = vadd.f32 %v581, %v688
        %v694 = vadd.f32 %v582, %v690
        %s695 = sld [smem:[#allocation2 + $0x7f]]
        %v696 = vstv %s695
        %v697 = vmul.f32 %v696, %v233
        %v698 = vmul.f32 %v696, %v234
        %701 = vrot.lane.b32.xlu0 %v697, 127
        %v702 = vpop.permute.xlu0 %701
        %703 = vrot.lane.b32.xlu0 %v698, 127
        %v704 = vpop.permute.xlu0 %703
        %v707 = vadd.f32 %v595, %v702
        %v708 = vadd.f32 %v596, %v704
        %s709 = sld [smem:[#allocation2 + $0xa3]]
        %v710 = vstv %s709
        %v711 = vmul.f32 %v710, %v233
        %v712 = vmul.f32 %v710, %v234
        %715 = vrot.lane.b32.xlu0 %v711, 127
        %v716 = vpop.permute.xlu0 %715
        %717 = vrot.lane.b32.xlu0 %v712, 127
        %v718 = vpop.permute.xlu0 %717
        %v721 = vadd.f32 %v609, %v716
        %v722 = vadd.f32 %v610, %v718
        %s723 = sld [smem:[#allocation2 + $0xc7]]
        %v724 = vstv %s723
        %v725 = vmul.f32 %v724, %v233
        %v726 = vmul.f32 %v724, %v234
        %729 = vrot.lane.b32.xlu0 %v725, 127
        %v730 = vpop.permute.xlu0 %729
        %731 = vrot.lane.b32.xlu0 %v726, 127
        %v732 = vpop.permute.xlu0 %731
        %v735 = vadd.f32 %v623, %v730
        %v736 = vadd.f32 %v624, %v732
        %s737 = sld [smem:[#allocation2 + $0xeb]]
        %v738 = vstv %s737
        %v739 = vmul.f32 %v738, %v233
        %v740 = vmul.f32 %v738, %v234
        %743 = vrot.lane.b32.xlu0 %v739, 127
        %v744 = vpop.permute.xlu0 %743
        %745 = vrot.lane.b32.xlu0 %v740, 127
        %v746 = vpop.permute.xlu0 %745
        %v749 = vadd.f32 %v637, %v744
        %v750 = vadd.f32 %v638, %v746
        %s751 = sld [smem:[#allocation2 + $0x10f]]
        %v752 = vstv %s751
        %v753 = vmul.f32 %v752, %v233
        %v754 = vmul.f32 %v752, %v234
        %757 = vrot.lane.b32.xlu0 %v753, 127
        %v758 = vpop.permute.xlu0 %757
        %759 = vrot.lane.b32.xlu0 %v754, 127
        %v760 = vpop.permute.xlu0 %759
        %v763 = vadd.f32 %v651, %v758
        %v764 = vadd.f32 %v652, %v760
        %s765 = sld [smem:[#allocation2 + $0x1c]]
        %v766 = vstv %s765
        %v767 = vmul.f32 %v766, %v235
        %v768 = vmul.f32 %v766, %v236
        %771 = vrot.lane.b32.xlu0 %v767, 127
        %v772 = vpop.permute.xlu0 %771
        %773 = vrot.lane.b32.xlu0 %v768, 127
        %v774 = vpop.permute.xlu0 %773
        %v777 = vadd.f32 %v665, %v772
        %v778 = vadd.f32 %v666, %v774
        %s779 = sld [smem:[#allocation2 + $0x40]]
        %v780 = vstv %s779
        %v781 = vmul.f32 %v780, %v235
        %v782 = vmul.f32 %v780, %v236
        %785 = vrot.lane.b32.xlu0 %v781, 127
        %v786 = vpop.permute.xlu0 %785
        %787 = vrot.lane.b32.xlu0 %v782, 127
        %v788 = vpop.permute.xlu0 %787
        %v791 = vadd.f32 %v679, %v786
        %v792 = vadd.f32 %v680, %v788
        %s793 = sld [smem:[#allocation2 + $0x64]]
        %v794 = vstv %s793
        %v795 = vmul.f32 %v794, %v235
        %v796 = vmul.f32 %v794, %v236
        %799 = vrot.lane.b32.xlu0 %v795, 127
        %v800 = vpop.permute.xlu0 %799
        %801 = vrot.lane.b32.xlu0 %v796, 127
        %v802 = vpop.permute.xlu0 %801
        %v805 = vadd.f32 %v693, %v800
        %v806 = vadd.f32 %v694, %v802
        %s807 = sld [smem:[#allocation2 + $0x88]]
        %v808 = vstv %s807
        %v809 = vmul.f32 %v808, %v235
        %v810 = vmul.f32 %v808, %v236
        %813 = vrot.lane.b32.xlu0 %v809, 127
        %v814 = vpop.permute.xlu0 %813
        %815 = vrot.lane.b32.xlu0 %v810, 127
        %v816 = vpop.permute.xlu0 %815
        %v819 = vadd.f32 %v707, %v814
        %v820 = vadd.f32 %v708, %v816
        %s821 = sld [smem:[#allocation2 + $0xac]]
        %v822 = vstv %s821
        %v823 = vmul.f32 %v822, %v235
        %v824 = vmul.f32 %v822, %v236
        %827 = vrot.lane.b32.xlu0 %v823, 127
        %v828 = vpop.permute.xlu0 %827
        %829 = vrot.lane.b32.xlu0 %v824, 127
        %v830 = vpop.permute.xlu0 %829
        %v833 = vadd.f32 %v721, %v828
        %v834 = vadd.f32 %v722, %v830
        %s835 = sld [smem:[#allocation2 + $0xd0]]
        %v836 = vstv %s835
        %v837 = vmul.f32 %v836, %v235
        %v838 = vmul.f32 %v836, %v236
        %841 = vrot.lane.b32.xlu0 %v837, 127
        %v842 = vpop.permute.xlu0 %841
        %843 = vrot.lane.b32.xlu0 %v838, 127
        %v844 = vpop.permute.xlu0 %843
        %v847 = vadd.f32 %v735, %v842
        %v848 = vadd.f32 %v736, %v844
        %s849 = sld [smem:[#allocation2 + $0xf4]]
        %v850 = vstv %s849
        %v851 = vmul.f32 %v850, %v235
        %v852 = vmul.f32 %v850, %v236
        %855 = vrot.lane.b32.xlu0 %v851, 127
        %v856 = vpop.permute.xlu0 %855
        %857 = vrot.lane.b32.xlu0 %v852, 127
        %v858 = vpop.permute.xlu0 %857
        %v861 = vadd.f32 %v749, %v856
        %v862 = vadd.f32 %v750, %v858
        %s863 = sld [smem:[#allocation2 + $0x118]]
        %v864 = vstv %s863
        %v865 = vmul.f32 %v864, %v235
        %v866 = vmul.f32 %v864, %v236
        %869 = vrot.lane.b32.xlu0 %v865, 127
        %v870 = vpop.permute.xlu0 %869
        %871 = vrot.lane.b32.xlu0 %v866, 127
        %v872 = vpop.permute.xlu0 %871
        %v875 = vadd.f32 %v763, %v870
        %v876 = vadd.f32 %v764, %v872
        %s877 = sld [smem:[#allocation2 + $0x2]]
        %v878 = vstv %s877
        %v879 = vmul.f32 %v878, %v229
        %v880 = vmul.f32 %v878, %v230
        %883 = vrot.lane.b32.xlu0 %v879, 126
        %v884 = vpop.permute.xlu0 %883
        %885 = vrot.lane.b32.xlu0 %v880, 126
        %v886 = vpop.permute.xlu0 %885
        %v889 = vadd.f32 %v777, %v884
        %v890 = vadd.f32 %v778, %v886
        %s891 = sld [smem:[#allocation2 + $0x26]]
        %v892 = vstv %s891
        %v893 = vmul.f32 %v892, %v229
        %v894 = vmul.f32 %v892, %v230
        %897 = vrot.lane.b32.xlu0 %v893, 126
        %v898 = vpop.permute.xlu0 %897
        %899 = vrot.lane.b32.xlu0 %v894, 126
        %v900 = vpop.permute.xlu0 %899
        %v903 = vadd.f32 %v791, %v898
        %v904 = vadd.f32 %v792, %v900
        %s905 = sld [smem:[#allocation2 + $0x4a]]
        %v906 = vstv %s905
        %v907 = vmul.f32 %v906, %v229
        %v908 = vmul.f32 %v906, %v230
        %911 = vrot.lane.b32.xlu0 %v907, 126
        %v912 = vpop.permute.xlu0 %911
        %913 = vrot.lane.b32.xlu0 %v908, 126
        %v914 = vpop.permute.xlu0 %913
        %v917 = vadd.f32 %v805, %v912
        %v918 = vadd.f32 %v806, %v914
        %s919 = sld [smem:[#allocation2 + $0x6e]]
        %v920 = vstv %s919
        %v921 = vmul.f32 %v920, %v229
        %v922 = vmul.f32 %v920, %v230
        %925 = vrot.lane.b32.xlu0 %v921, 126
        %v926 = vpop.permute.xlu0 %925
        %927 = vrot.lane.b32.xlu0 %v922, 126
        %v928 = vpop.permute.xlu0 %927
        %v931 = vadd.f32 %v819, %v926
        %v932 = vadd.f32 %v820, %v928
        %s933 = sld [smem:[#allocation2 + $0x92]]
        %v934 = vstv %s933
        %v935 = vmul.f32 %v934, %v229
        %v936 = vmul.f32 %v934, %v230
        %939 = vrot.lane.b32.xlu0 %v935, 126
        %v940 = vpop.permute.xlu0 %939
        %941 = vrot.lane.b32.xlu0 %v936, 126
        %v942 = vpop.permute.xlu0 %941
        %v945 = vadd.f32 %v833, %v940
        %v946 = vadd.f32 %v834, %v942
        %s947 = sld [smem:[#allocation2 + $0xb6]]
        %v948 = vstv %s947
        %v949 = vmul.f32 %v948, %v229
        %v950 = vmul.f32 %v948, %v230
        %953 = vrot.lane.b32.xlu0 %v949, 126
        %v954 = vpop.permute.xlu0 %953
        %955 = vrot.lane.b32.xlu0 %v950, 126
        %v956 = vpop.permute.xlu0 %955
        %v959 = vadd.f32 %v847, %v954
        %v960 = vadd.f32 %v848, %v956
        %s961 = sld [smem:[#allocation2 + $0xda]]
        %v962 = vstv %s961
        %v963 = vmul.f32 %v962, %v229
        %v964 = vmul.f32 %v962, %v230
        %967 = vrot.lane.b32.xlu0 %v963, 126
        %v968 = vpop.permute.xlu0 %967
        %969 = vrot.lane.b32.xlu0 %v964, 126
        %v970 = vpop.permute.xlu0 %969
        %v973 = vadd.f32 %v861, %v968
        %v974 = vadd.f32 %v862, %v970
        %s975 = sld [smem:[#allocation2 + $0xfe]]
        %v976 = vstv %s975
        %v977 = vmul.f32 %v976, %v229
        %v978 = vmul.f32 %v976, %v230
        %981 = vrot.lane.b32.xlu0 %v977, 126
        %v982 = vpop.permute.xlu0 %981
        %983 = vrot.lane.b32.xlu0 %v978, 126
        %v984 = vpop.permute.xlu0 %983
        %v987 = vadd.f32 %v875, %v982
        %v988 = vadd.f32 %v876, %v984
        %s989 = sld [smem:[#allocation2 + $0xb]]
        %v990 = vstv %s989
        %v991 = vmul.f32 %v990, %v231
        %v992 = vmul.f32 %v990, %v232
        %995 = vrot.lane.b32.xlu0 %v991, 126
        %v996 = vpop.permute.xlu0 %995
        %997 = vrot.lane.b32.xlu0 %v992, 126
        %v998 = vpop.permute.xlu0 %997
        %v1001 = vadd.f32 %v889, %v996
        %v1002 = vadd.f32 %v890, %v998
        %s1003 = sld [smem:[#allocation2 + $0x2f]]
        %v1004 = vstv %s1003
        %v1005 = vmul.f32 %v1004, %v231
        %v1006 = vmul.f32 %v1004, %v232
        %1009 = vrot.lane.b32.xlu0 %v1005, 126
        %v1010 = vpop.permute.xlu0 %1009
        %1011 = vrot.lane.b32.xlu0 %v1006, 126
        %v1012 = vpop.permute.xlu0 %1011
        %v1015 = vadd.f32 %v903, %v1010
        %v1016 = vadd.f32 %v904, %v1012
        %s1017 = sld [smem:[#allocation2 + $0x53]]
        %v1018 = vstv %s1017
        %v1019 = vmul.f32 %v1018, %v231
        %v1020 = vmul.f32 %v1018, %v232
        %1023 = vrot.lane.b32.xlu0 %v1019, 126
        %v1024 = vpop.permute.xlu0 %1023
        %1025 = vrot.lane.b32.xlu0 %v1020, 126
        %v1026 = vpop.permute.xlu0 %1025
        %v1029 = vadd.f32 %v917, %v1024
        %v1030 = vadd.f32 %v918, %v1026
        %s1031 = sld [smem:[#allocation2 + $0x77]]
        %v1032 = vstv %s1031
        %v1033 = vmul.f32 %v1032, %v231
        %v1034 = vmul.f32 %v1032, %v232
        %1037 = vrot.lane.b32.xlu0 %v1033, 126
        %v1038 = vpop.permute.xlu0 %1037
        %1039 = vrot.lane.b32.xlu0 %v1034, 126
        %v1040 = vpop.permute.xlu0 %1039
        %v1043 = vadd.f32 %v931, %v1038
        %v1044 = vadd.f32 %v932, %v1040
        %s1045 = sld [smem:[#allocation2 + $0x9b]]
        %v1046 = vstv %s1045
        %v1047 = vmul.f32 %v1046, %v231
        %v1048 = vmul.f32 %v1046, %v232
        %1051 = vrot.lane.b32.xlu0 %v1047, 126
        %v1052 = vpop.permute.xlu0 %1051
        %1053 = vrot.lane.b32.xlu0 %v1048, 126
        %v1054 = vpop.permute.xlu0 %1053
        %v1057 = vadd.f32 %v945, %v1052
        %v1058 = vadd.f32 %v946, %v1054
        %s1059 = sld [smem:[#allocation2 + $0xbf]]
        %v1060 = vstv %s1059
        %v1061 = vmul.f32 %v1060, %v231
        %v1062 = vmul.f32 %v1060, %v232
        %1065 = vrot.lane.b32.xlu0 %v1061, 126
        %v1066 = vpop.permute.xlu0 %1065
        %1067 = vrot.lane.b32.xlu0 %v1062, 126
        %v1068 = vpop.permute.xlu0 %1067
        %v1071 = vadd.f32 %v959, %v1066
        %v1072 = vadd.f32 %v960, %v1068
        %s1073 = sld [smem:[#allocation2 + $0xe3]]
        %v1074 = vstv %s1073
        %v1075 = vmul.f32 %v1074, %v231
        %v1076 = vmul.f32 %v1074, %v232
        %1079 = vrot.lane.b32.xlu0 %v1075, 126
        %v1080 = vpop.permute.xlu0 %1079
        %1081 = vrot.lane.b32.xlu0 %v1076, 126
        %v1082 = vpop.permute.xlu0 %1081
        %v1085 = vadd.f32 %v973, %v1080
        %v1086 = vadd.f32 %v974, %v1082
        %s1087 = sld [smem:[#allocation2 + $0x107]]
        %v1088 = vstv %s1087
        %v1089 = vmul.f32 %v1088, %v231
        %v1090 = vmul.f32 %v1088, %v232
        %1093 = vrot.lane.b32.xlu0 %v1089, 126
        %v1094 = vpop.permute.xlu0 %1093
        %1095 = vrot.lane.b32.xlu0 %v1090, 126
        %v1096 = vpop.permute.xlu0 %1095
        %v1099 = vadd.f32 %v987, %v1094
        %v1100 = vadd.f32 %v988, %v1096
        %s1101 = sld [smem:[#allocation2 + $0x14]]
        %v1102 = vstv %s1101
        %v1103 = vmul.f32 %v1102, %v233
        %v1104 = vmul.f32 %v1102, %v234
        %1107 = vrot.lane.b32.xlu0 %v1103, 126
        %v1108 = vpop.permute.xlu0 %1107
        %1109 = vrot.lane.b32.xlu0 %v1104, 126
        %v1110 = vpop.permute.xlu0 %1109
        %v1113 = vadd.f32 %v1001, %v1108
        %v1114 = vadd.f32 %v1002, %v1110
        %s1115 = sld [smem:[#allocation2 + $0x38]]
        %v1116 = vstv %s1115
        %v1117 = vmul.f32 %v1116, %v233
        %v1118 = vmul.f32 %v1116, %v234
        %1121 = vrot.lane.b32.xlu0 %v1117, 126
        %v1122 = vpop.permute.xlu0 %1121
        %1123 = vrot.lane.b32.xlu0 %v1118, 126
        %v1124 = vpop.permute.xlu0 %1123
        %v1127 = vadd.f32 %v1015, %v1122
        %v1128 = vadd.f32 %v1016, %v1124
        %s1129 = sld [smem:[#allocation2 + $0x5c]]
        %v1130 = vstv %s1129
        %v1131 = vmul.f32 %v1130, %v233
        %v1132 = vmul.f32 %v1130, %v234
        %1135 = vrot.lane.b32.xlu0 %v1131, 126
        %v1136 = vpop.permute.xlu0 %1135
        %1137 = vrot.lane.b32.xlu0 %v1132, 126
        %v1138 = vpop.permute.xlu0 %1137
        %v1141 = vadd.f32 %v1029, %v1136
        %v1142 = vadd.f32 %v1030, %v1138
        %s1143 = sld [smem:[#allocation2 + $0x80]]
        %v1144 = vstv %s1143
        %v1145 = vmul.f32 %v1144, %v233
        %v1146 = vmul.f32 %v1144, %v234
        %1149 = vrot.lane.b32.xlu0 %v1145, 126
        %v1150 = vpop.permute.xlu0 %1149
        %1151 = vrot.lane.b32.xlu0 %v1146, 126
        %v1152 = vpop.permute.xlu0 %1151
        %v1155 = vadd.f32 %v1043, %v1150
        %v1156 = vadd.f32 %v1044, %v1152
        %s1157 = sld [smem:[#allocation2 + $0xa4]]
        %v1158 = vstv %s1157
        %v1159 = vmul.f32 %v1158, %v233
        %v1160 = vmul.f32 %v1158, %v234
        %1163 = vrot.lane.b32.xlu0 %v1159, 126
        %v1164 = vpop.permute.xlu0 %1163
        %1165 = vrot.lane.b32.xlu0 %v1160, 126
        %v1166 = vpop.permute.xlu0 %1165
        %v1169 = vadd.f32 %v1057, %v1164
        %v1170 = vadd.f32 %v1058, %v1166
        %s1171 = sld [smem:[#allocation2 + $0xc8]]
        %v1172 = vstv %s1171
        %v1173 = vmul.f32 %v1172, %v233
        %v1174 = vmul.f32 %v1172, %v234
        %1177 = vrot.lane.b32.xlu0 %v1173, 126
        %v1178 = vpop.permute.xlu0 %1177
        %1179 = vrot.lane.b32.xlu0 %v1174, 126
        %v1180 = vpop.permute.xlu0 %1179
        %v1183 = vadd.f32 %v1071, %v1178
        %v1184 = vadd.f32 %v1072, %v1180
        %s1185 = sld [smem:[#allocation2 + $0xec]]
        %v1186 = vstv %s1185
        %v1187 = vmul.f32 %v1186, %v233
        %v1188 = vmul.f32 %v1186, %v234
        %1191 = vrot.lane.b32.xlu0 %v1187, 126
        %v1192 = vpop.permute.xlu0 %1191
        %1193 = vrot.lane.b32.xlu0 %v1188, 126
        %v1194 = vpop.permute.xlu0 %1193
        %v1197 = vadd.f32 %v1085, %v1192
        %v1198 = vadd.f32 %v1086, %v1194
        %s1199 = sld [smem:[#allocation2 + $0x110]]
        %v1200 = vstv %s1199
        %v1201 = vmul.f32 %v1200, %v233
        %v1202 = vmul.f32 %v1200, %v234
        %1205 = vrot.lane.b32.xlu0 %v1201, 126
        %v1206 = vpop.permute.xlu0 %1205
        %1207 = vrot.lane.b32.xlu0 %v1202, 126
        %v1208 = vpop.permute.xlu0 %1207
        %v1211 = vadd.f32 %v1099, %v1206
        %v1212 = vadd.f32 %v1100, %v1208
        %s1213 = sld [smem:[#allocation2 + $0x1d]]
        %v1214 = vstv %s1213
        %v1215 = vmul.f32 %v1214, %v235
        %v1216 = vmul.f32 %v1214, %v236
        %1219 = vrot.lane.b32.xlu0 %v1215, 126
        %v1220 = vpop.permute.xlu0 %1219
        %1221 = vrot.lane.b32.xlu0 %v1216, 126
        %v1222 = vpop.permute.xlu0 %1221
        %v1225 = vadd.f32 %v1113, %v1220
        %v1226 = vadd.f32 %v1114, %v1222
        %s1227 = sld [smem:[#allocation2 + $0x41]]
        %v1228 = vstv %s1227
        %v1229 = vmul.f32 %v1228, %v235
        %v1230 = vmul.f32 %v1228, %v236
        %1233 = vrot.lane.b32.xlu0 %v1229, 126
        %v1234 = vpop.permute.xlu0 %1233
        %1235 = vrot.lane.b32.xlu0 %v1230, 126
        %v1236 = vpop.permute.xlu0 %1235
        %v1239 = vadd.f32 %v1127, %v1234
        %v1240 = vadd.f32 %v1128, %v1236
        %s1241 = sld [smem:[#allocation2 + $0x65]]
        %v1242 = vstv %s1241
        %v1243 = vmul.f32 %v1242, %v235
        %v1244 = vmul.f32 %v1242, %v236
        %1247 = vrot.lane.b32.xlu0 %v1243, 126
        %v1248 = vpop.permute.xlu0 %1247
        %1249 = vrot.lane.b32.xlu0 %v1244, 126
        %v1250 = vpop.permute.xlu0 %1249
        %v1253 = vadd.f32 %v1141, %v1248
        %v1254 = vadd.f32 %v1142, %v1250
        %s1255 = sld [smem:[#allocation2 + $0x89]]
        %v1256 = vstv %s1255
        %v1257 = vmul.f32 %v1256, %v235
        %v1258 = vmul.f32 %v1256, %v236
        %1261 = vrot.lane.b32.xlu0 %v1257, 126
        %v1262 = vpop.permute.xlu0 %1261
        %1263 = vrot.lane.b32.xlu0 %v1258, 126
        %v1264 = vpop.permute.xlu0 %1263
        %v1267 = vadd.f32 %v1155, %v1262
        %v1268 = vadd.f32 %v1156, %v1264
        %s1269 = sld [smem:[#allocation2 + $0xad]]
        %v1270 = vstv %s1269
        %v1271 = vmul.f32 %v1270, %v235
        %v1272 = vmul.f32 %v1270, %v236
        %1275 = vrot.lane.b32.xlu0 %v1271, 126
        %v1276 = vpop.permute.xlu0 %1275
        %1277 = vrot.lane.b32.xlu0 %v1272, 126
        %v1278 = vpop.permute.xlu0 %1277
        %v1281 = vadd.f32 %v1169, %v1276
        %v1282 = vadd.f32 %v1170, %v1278
        %s1283 = sld [smem:[#allocation2 + $0xd1]]
        %v1284 = vstv %s1283
        %v1285 = vmul.f32 %v1284, %v235
        %v1286 = vmul.f32 %v1284, %v236
        %1289 = vrot.lane.b32.xlu0 %v1285, 126
        %v1290 = vpop.permute.xlu0 %1289
        %1291 = vrot.lane.b32.xlu0 %v1286, 126
        %v1292 = vpop.permute.xlu0 %1291
        %v1295 = vadd.f32 %v1183, %v1290
        %v1296 = vadd.f32 %v1184, %v1292
        %s1297 = sld [smem:[#allocation2 + $0xf5]]
        %v1298 = vstv %s1297
        %v1299 = vmul.f32 %v1298, %v235
        %v1300 = vmul.f32 %v1298, %v236
        %1303 = vrot.lane.b32.xlu0 %v1299, 126
        %v1304 = vpop.permute.xlu0 %1303
        %1305 = vrot.lane.b32.xlu0 %v1300, 126
        %v1306 = vpop.permute.xlu0 %1305
        %v1309 = vadd.f32 %v1197, %v1304
        %v1310 = vadd.f32 %v1198, %v1306
        %s1311 = sld [smem:[#allocation2 + $0x119]]
        %v1312 = vstv %s1311
        %v1313 = vmul.f32 %v1312, %v235
        %v1314 = vmul.f32 %v1312, %v236
        %1317 = vrot.lane.b32.xlu0 %v1313, 126
        %v1318 = vpop.permute.xlu0 %1317
        %1319 = vrot.lane.b32.xlu0 %v1314, 126
        %v1320 = vpop.permute.xlu0 %1319
        %v1323 = vadd.f32 %v1211, %v1318
        %v1324 = vadd.f32 %v1212, %v1320
        %s1325 = sadd.s32 %s211, 1
        %s1326 = scalar_lea.vmem %s209, %s1325
        %v1327 = vld [vmem:[%s1326] sm:$0xff]
        %v1328 = vld [vmem:[%s1326 + $0x8] sm:$0xff]
        %v1329 = vld [vmem:[%s1326 + $0x18] sm:$0xff]
        %v1330 = vld [vmem:[%s1326 + $0x20] sm:$0xff]
        %v1331 = vld [vmem:[%s1326 + $0x30] sm:$0xff]
        %v1332 = vld [vmem:[%s1326 + $0x38] sm:$0xff]
        %v1333 = vld [vmem:[%s1326 + $0x48] sm:$0xff]
        %v1334 = vld [vmem:[%s1326 + $0x50] sm:$0xff]
        %s1335 = sld [smem:[#allocation2 + $0x3]]
        %v1336 = vstv %s1335
        %v1337 = vmul.f32 %v1336, %v1327
        %v1338 = vmul.f32 %v1336, %v1328
        %v1339 = vadd.f32 %v1225, %v1337
        %v1340 = vadd.f32 %v1226, %v1338
        %s1341 = sld [smem:[#allocation2 + $0x27]]
        %v1342 = vstv %s1341
        %v1343 = vmul.f32 %v1342, %v1327
        %v1344 = vmul.f32 %v1342, %v1328
        %v1345 = vadd.f32 %v1239, %v1343
        %v1346 = vadd.f32 %v1240, %v1344
        %s1347 = sld [smem:[#allocation2 + $0x4b]]
        %v1348 = vstv %s1347
        %v1349 = vmul.f32 %v1348, %v1327
        %v1350 = vmul.f32 %v1348, %v1328
        %v1351 = vadd.f32 %v1253, %v1349
        %v1352 = vadd.f32 %v1254, %v1350
        %s1353 = sld [smem:[#allocation2 + $0x6f]]
        %v1354 = vstv %s1353
        %v1355 = vmul.f32 %v1354, %v1327
        %v1356 = vmul.f32 %v1354, %v1328
        %v1357 = vadd.f32 %v1267, %v1355
        %v1358 = vadd.f32 %v1268, %v1356
        %s1359 = sld [smem:[#allocation2 + $0x93]]
        %v1360 = vstv %s1359
        %v1361 = vmul.f32 %v1360, %v1327
        %v1362 = vmul.f32 %v1360, %v1328
        %v1363 = vadd.f32 %v1281, %v1361
        %v1364 = vadd.f32 %v1282, %v1362
        %s1365 = sld [smem:[#allocation2 + $0xb7]]
        %v1366 = vstv %s1365
        %v1367 = vmul.f32 %v1366, %v1327
        %v1368 = vmul.f32 %v1366, %v1328
        %v1369 = vadd.f32 %v1295, %v1367
        %v1370 = vadd.f32 %v1296, %v1368
        %s1371 = sld [smem:[#allocation2 + $0xdb]]
        %v1372 = vstv %s1371
        %v1373 = vmul.f32 %v1372, %v1327
        %v1374 = vmul.f32 %v1372, %v1328
        %v1375 = vadd.f32 %v1309, %v1373
        %v1376 = vadd.f32 %v1310, %v1374
        %s1377 = sld [smem:[#allocation2 + $0xff]]
        %v1378 = vstv %s1377
        %v1379 = vmul.f32 %v1378, %v1327
        %v1380 = vmul.f32 %v1378, %v1328
        %v1381 = vadd.f32 %v1323, %v1379
        %v1382 = vadd.f32 %v1324, %v1380
        %s1383 = sld [smem:[#allocation2 + $0xc]]
        %v1384 = vstv %s1383
        %v1385 = vmul.f32 %v1384, %v1329
        %v1386 = vmul.f32 %v1384, %v1330
        %v1387 = vadd.f32 %v1339, %v1385
        %v1388 = vadd.f32 %v1340, %v1386
        %s1389 = sld [smem:[#allocation2 + $0x30]]
        %v1390 = vstv %s1389
        %v1391 = vmul.f32 %v1390, %v1329
        %v1392 = vmul.f32 %v1390, %v1330
        %v1393 = vadd.f32 %v1345, %v1391
        %v1394 = vadd.f32 %v1346, %v1392
        %s1395 = sld [smem:[#allocation2 + $0x54]]
        %v1396 = vstv %s1395
        %v1397 = vmul.f32 %v1396, %v1329
        %v1398 = vmul.f32 %v1396, %v1330
        %v1399 = vadd.f32 %v1351, %v1397
        %v1400 = vadd.f32 %v1352, %v1398
        %s1401 = sld [smem:[#allocation2 + $0x78]]
        %v1402 = vstv %s1401
        %v1403 = vmul.f32 %v1402, %v1329
        %v1404 = vmul.f32 %v1402, %v1330
        %v1405 = vadd.f32 %v1357, %v1403
        %v1406 = vadd.f32 %v1358, %v1404
        %s1407 = sld [smem:[#allocation2 + $0x9c]]
        %v1408 = vstv %s1407
        %v1409 = vmul.f32 %v1408, %v1329
        %v1410 = vmul.f32 %v1408, %v1330
        %v1411 = vadd.f32 %v1363, %v1409
        %v1412 = vadd.f32 %v1364, %v1410
        %s1413 = sld [smem:[#allocation2 + $0xc0]]
        %v1414 = vstv %s1413
        %v1415 = vmul.f32 %v1414, %v1329
        %v1416 = vmul.f32 %v1414, %v1330
        %v1417 = vadd.f32 %v1369, %v1415
        %v1418 = vadd.f32 %v1370, %v1416
        %s1419 = sld [smem:[#allocation2 + $0xe4]]
        %v1420 = vstv %s1419
        %v1421 = vmul.f32 %v1420, %v1329
        %v1422 = vmul.f32 %v1420, %v1330
        %v1423 = vadd.f32 %v1375, %v1421
        %v1424 = vadd.f32 %v1376, %v1422
        %s1425 = sld [smem:[#allocation2 + $0x108]]
        %v1426 = vstv %s1425
        %v1427 = vmul.f32 %v1426, %v1329
        %v1428 = vmul.f32 %v1426, %v1330
        %v1429 = vadd.f32 %v1381, %v1427
        %v1430 = vadd.f32 %v1382, %v1428
        %s1431 = sld [smem:[#allocation2 + $0x15]]
        %v1432 = vstv %s1431
        %v1433 = vmul.f32 %v1432, %v1331
        %v1434 = vmul.f32 %v1432, %v1332
        %v1435 = vadd.f32 %v1387, %v1433
        %v1436 = vadd.f32 %v1388, %v1434
        %s1437 = sld [smem:[#allocation2 + $0x39]]
        %v1438 = vstv %s1437
        %v1439 = vmul.f32 %v1438, %v1331
        %v1440 = vmul.f32 %v1438, %v1332
        %v1441 = vadd.f32 %v1393, %v1439
        %v1442 = vadd.f32 %v1394, %v1440
        %s1443 = sld [smem:[#allocation2 + $0x5d]]
        %v1444 = vstv %s1443
        %v1445 = vmul.f32 %v1444, %v1331
        %v1446 = vmul.f32 %v1444, %v1332
        %v1447 = vadd.f32 %v1399, %v1445
        %v1448 = vadd.f32 %v1400, %v1446
        %s1449 = sld [smem:[#allocation2 + $0x81]]
        %v1450 = vstv %s1449
        %v1451 = vmul.f32 %v1450, %v1331
        %v1452 = vmul.f32 %v1450, %v1332
        %v1453 = vadd.f32 %v1405, %v1451
        %v1454 = vadd.f32 %v1406, %v1452
        %s1455 = sld [smem:[#allocation2 + $0xa5]]
        %v1456 = vstv %s1455
        %v1457 = vmul.f32 %v1456, %v1331
        %v1458 = vmul.f32 %v1456, %v1332
        %v1459 = vadd.f32 %v1411, %v1457
        %v1460 = vadd.f32 %v1412, %v1458
        %s1461 = sld [smem:[#allocation2 + $0xc9]]
        %v1462 = vstv %s1461
        %v1463 = vmul.f32 %v1462, %v1331
        %v1464 = vmul.f32 %v1462, %v1332
        %v1465 = vadd.f32 %v1417, %v1463
        %v1466 = vadd.f32 %v1418, %v1464
        %s1467 = sld [smem:[#allocation2 + $0xed]]
        %v1468 = vstv %s1467
        %v1469 = vmul.f32 %v1468, %v1331
        %v1470 = vmul.f32 %v1468, %v1332
        %v1471 = vadd.f32 %v1423, %v1469
        %v1472 = vadd.f32 %v1424, %v1470
        %s1473 = sld [smem:[#allocation2 + $0x111]]
        %v1474 = vstv %s1473
        %v1475 = vmul.f32 %v1474, %v1331
        %v1476 = vmul.f32 %v1474, %v1332
        %v1477 = vadd.f32 %v1429, %v1475
        %v1478 = vadd.f32 %v1430, %v1476
        %s1479 = sld [smem:[#allocation2 + $0x1e]]
        %v1480 = vstv %s1479
        %v1481 = vmul.f32 %v1480, %v1333
        %v1482 = vmul.f32 %v1480, %v1334
        %v1483 = vadd.f32 %v1435, %v1481
        %v1484 = vadd.f32 %v1436, %v1482
        %s1485 = sld [smem:[#allocation2 + $0x42]]
        %v1486 = vstv %s1485
        %v1487 = vmul.f32 %v1486, %v1333
        %v1488 = vmul.f32 %v1486, %v1334
        %v1489 = vadd.f32 %v1441, %v1487
        %v1490 = vadd.f32 %v1442, %v1488
        %s1491 = sld [smem:[#allocation2 + $0x66]]
        %v1492 = vstv %s1491
        %v1493 = vmul.f32 %v1492, %v1333
        %v1494 = vmul.f32 %v1492, %v1334
        %v1495 = vadd.f32 %v1447, %v1493
        %v1496 = vadd.f32 %v1448, %v1494
        %s1497 = sld [smem:[#allocation2 + $0x8a]]
        %v1498 = vstv %s1497
        %v1499 = vmul.f32 %v1498, %v1333
        %v1500 = vmul.f32 %v1498, %v1334
        %v1501 = vadd.f32 %v1453, %v1499
        %v1502 = vadd.f32 %v1454, %v1500
        %s1503 = sld [smem:[#allocation2 + $0xae]]
        %v1504 = vstv %s1503
        %v1505 = vmul.f32 %v1504, %v1333
        %v1506 = vmul.f32 %v1504, %v1334
        %v1507 = vadd.f32 %v1459, %v1505
        %v1508 = vadd.f32 %v1460, %v1506
        %s1509 = sld [smem:[#allocation2 + $0xd2]]
        %v1510 = vstv %s1509
        %v1511 = vmul.f32 %v1510, %v1333
        %v1512 = vmul.f32 %v1510, %v1334
        %v1513 = vadd.f32 %v1465, %v1511
        %v1514 = vadd.f32 %v1466, %v1512
        %s1515 = sld [smem:[#allocation2 + $0xf6]]
        %v1516 = vstv %s1515
        %v1517 = vmul.f32 %v1516, %v1333
        %v1518 = vmul.f32 %v1516, %v1334
        %v1519 = vadd.f32 %v1471, %v1517
        %v1520 = vadd.f32 %v1472, %v1518
        %s1521 = sld [smem:[#allocation2 + $0x11a]]
        %v1522 = vstv %s1521
        %v1523 = vmul.f32 %v1522, %v1333
        %v1524 = vmul.f32 %v1522, %v1334
        %v1525 = vadd.f32 %v1477, %v1523
        %v1526 = vadd.f32 %v1478, %v1524
        %s1527 = sld [smem:[#allocation2 + $0x4]]
        %v1528 = vstv %s1527
        %v1529 = vmul.f32 %v1528, %v1327
        %v1530 = vmul.f32 %v1528, %v1328
        %1533 = vrot.lane.b32.xlu0 %v1529, 127
        %v1534 = vpop.permute.xlu0 %1533
        %1535 = vrot.lane.b32.xlu0 %v1530, 127
        %v1536 = vpop.permute.xlu0 %1535
        %v1539 = vadd.f32 %v1483, %v1534
        %v1540 = vadd.f32 %v1484, %v1536
        %s1541 = sld [smem:[#allocation2 + $0x28]]
        %v1542 = vstv %s1541
        %v1543 = vmul.f32 %v1542, %v1327
        %v1544 = vmul.f32 %v1542, %v1328
        %1547 = vrot.lane.b32.xlu0 %v1543, 127
        %v1548 = vpop.permute.xlu0 %1547
        %1549 = vrot.lane.b32.xlu0 %v1544, 127
        %v1550 = vpop.permute.xlu0 %1549
        %v1553 = vadd.f32 %v1489, %v1548
        %v1554 = vadd.f32 %v1490, %v1550
        %s1555 = sld [smem:[#allocation2 + $0x4c]]
        %v1556 = vstv %s1555
        %v1557 = vmul.f32 %v1556, %v1327
        %v1558 = vmul.f32 %v1556, %v1328
        %1561 = vrot.lane.b32.xlu0 %v1557, 127
        %v1562 = vpop.permute.xlu0 %1561
        %1563 = vrot.lane.b32.xlu0 %v1558, 127
        %v1564 = vpop.permute.xlu0 %1563
        %v1567 = vadd.f32 %v1495, %v1562
        %v1568 = vadd.f32 %v1496, %v1564
        %s1569 = sld [smem:[#allocation2 + $0x70]]
        %v1570 = vstv %s1569
        %v1571 = vmul.f32 %v1570, %v1327
        %v1572 = vmul.f32 %v1570, %v1328
        %1575 = vrot.lane.b32.xlu0 %v1571, 127
        %v1576 = vpop.permute.xlu0 %1575
        %1577 = vrot.lane.b32.xlu0 %v1572, 127
        %v1578 = vpop.permute.xlu0 %1577
        %v1581 = vadd.f32 %v1501, %v1576
        %v1582 = vadd.f32 %v1502, %v1578
        %s1583 = sld [smem:[#allocation2 + $0x94]]
        %v1584 = vstv %s1583
        %v1585 = vmul.f32 %v1584, %v1327
        %v1586 = vmul.f32 %v1584, %v1328
        %1589 = vrot.lane.b32.xlu0 %v1585, 127
        %v1590 = vpop.permute.xlu0 %1589
        %1591 = vrot.lane.b32.xlu0 %v1586, 127
        %v1592 = vpop.permute.xlu0 %1591
        %v1595 = vadd.f32 %v1507, %v1590
        %v1596 = vadd.f32 %v1508, %v1592
        %s1597 = sld [smem:[#allocation2 + $0xb8]]
        %v1598 = vstv %s1597
        %v1599 = vmul.f32 %v1598, %v1327
        %v1600 = vmul.f32 %v1598, %v1328
        %1603 = vrot.lane.b32.xlu0 %v1599, 127
        %v1604 = vpop.permute.xlu0 %1603
        %1605 = vrot.lane.b32.xlu0 %v1600, 127
        %v1606 = vpop.permute.xlu0 %1605
        %v1609 = vadd.f32 %v1513, %v1604
        %v1610 = vadd.f32 %v1514, %v1606
        %s1611 = sld [smem:[#allocation2 + $0xdc]]
        %v1612 = vstv %s1611
        %v1613 = vmul.f32 %v1612, %v1327
        %v1614 = vmul.f32 %v1612, %v1328
        %1617 = vrot.lane.b32.xlu0 %v1613, 127
        %v1618 = vpop.permute.xlu0 %1617
        %1619 = vrot.lane.b32.xlu0 %v1614, 127
        %v1620 = vpop.permute.xlu0 %1619
        %v1623 = vadd.f32 %v1519, %v1618
        %v1624 = vadd.f32 %v1520, %v1620
        %s1625 = sld [smem:[#allocation2 + $0x100]]
        %v1626 = vstv %s1625
        %v1627 = vmul.f32 %v1626, %v1327
        %v1628 = vmul.f32 %v1626, %v1328
        %1631 = vrot.lane.b32.xlu0 %v1627, 127
        %v1632 = vpop.permute.xlu0 %1631
        %1633 = vrot.lane.b32.xlu0 %v1628, 127
        %v1634 = vpop.permute.xlu0 %1633
        %v1637 = vadd.f32 %v1525, %v1632
        %v1638 = vadd.f32 %v1526, %v1634
        %s1639 = sld [smem:[#allocation2 + $0xd]]
        %v1640 = vstv %s1639
        %v1641 = vmul.f32 %v1640, %v1329
        %v1642 = vmul.f32 %v1640, %v1330
        %1645 = vrot.lane.b32.xlu0 %v1641, 127
        %v1646 = vpop.permute.xlu0 %1645
        %1647 = vrot.lane.b32.xlu0 %v1642, 127
        %v1648 = vpop.permute.xlu0 %1647
        %v1651 = vadd.f32 %v1539, %v1646
        %v1652 = vadd.f32 %v1540, %v1648
        %s1653 = sld [smem:[#allocation2 + $0x31]]
        %v1654 = vstv %s1653
        %v1655 = vmul.f32 %v1654, %v1329
        %v1656 = vmul.f32 %v1654, %v1330
        %1659 = vrot.lane.b32.xlu0 %v1655, 127
        %v1660 = vpop.permute.xlu0 %1659
        %1661 = vrot.lane.b32.xlu0 %v1656, 127
        %v1662 = vpop.permute.xlu0 %1661
        %v1665 = vadd.f32 %v1553, %v1660
        %v1666 = vadd.f32 %v1554, %v1662
        %s1667 = sld [smem:[#allocation2 + $0x55]]
        %v1668 = vstv %s1667
        %v1669 = vmul.f32 %v1668, %v1329
        %v1670 = vmul.f32 %v1668, %v1330
        %1673 = vrot.lane.b32.xlu0 %v1669, 127
        %v1674 = vpop.permute.xlu0 %1673
        %1675 = vrot.lane.b32.xlu0 %v1670, 127
        %v1676 = vpop.permute.xlu0 %1675
        %v1679 = vadd.f32 %v1567, %v1674
        %v1680 = vadd.f32 %v1568, %v1676
        %s1681 = sld [smem:[#allocation2 + $0x79]]
        %v1682 = vstv %s1681
        %v1683 = vmul.f32 %v1682, %v1329
        %v1684 = vmul.f32 %v1682, %v1330
        %1687 = vrot.lane.b32.xlu0 %v1683, 127
        %v1688 = vpop.permute.xlu0 %1687
        %1689 = vrot.lane.b32.xlu0 %v1684, 127
        %v1690 = vpop.permute.xlu0 %1689
        %v1693 = vadd.f32 %v1581, %v1688
        %v1694 = vadd.f32 %v1582, %v1690
        %s1695 = sld [smem:[#allocation2 + $0x9d]]
        %v1696 = vstv %s1695
        %v1697 = vmul.f32 %v1696, %v1329
        %v1698 = vmul.f32 %v1696, %v1330
        %1701 = vrot.lane.b32.xlu0 %v1697, 127
        %v1702 = vpop.permute.xlu0 %1701
        %1703 = vrot.lane.b32.xlu0 %v1698, 127
        %v1704 = vpop.permute.xlu0 %1703
        %v1707 = vadd.f32 %v1595, %v1702
        %v1708 = vadd.f32 %v1596, %v1704
        %s1709 = sld [smem:[#allocation2 + $0xc1]]
        %v1710 = vstv %s1709
        %v1711 = vmul.f32 %v1710, %v1329
        %v1712 = vmul.f32 %v1710, %v1330
        %1715 = vrot.lane.b32.xlu0 %v1711, 127
        %v1716 = vpop.permute.xlu0 %1715
        %1717 = vrot.lane.b32.xlu0 %v1712, 127
        %v1718 = vpop.permute.xlu0 %1717
        %v1721 = vadd.f32 %v1609, %v1716
        %v1722 = vadd.f32 %v1610, %v1718
        %s1723 = sld [smem:[#allocation2 + $0xe5]]
        %v1724 = vstv %s1723
        %v1725 = vmul.f32 %v1724, %v1329
        %v1726 = vmul.f32 %v1724, %v1330
        %1729 = vrot.lane.b32.xlu0 %v1725, 127
        %v1730 = vpop.permute.xlu0 %1729
        %1731 = vrot.lane.b32.xlu0 %v1726, 127
        %v1732 = vpop.permute.xlu0 %1731
        %v1735 = vadd.f32 %v1623, %v1730
        %v1736 = vadd.f32 %v1624, %v1732
        %s1737 = sld [smem:[#allocation2 + $0x109]]
        %v1738 = vstv %s1737
        %v1739 = vmul.f32 %v1738, %v1329
        %v1740 = vmul.f32 %v1738, %v1330
        %1743 = vrot.lane.b32.xlu0 %v1739, 127
        %v1744 = vpop.permute.xlu0 %1743
        %1745 = vrot.lane.b32.xlu0 %v1740, 127
        %v1746 = vpop.permute.xlu0 %1745
        %v1749 = vadd.f32 %v1637, %v1744
        %v1750 = vadd.f32 %v1638, %v1746
        %s1751 = sld [smem:[#allocation2 + $0x16]]
        %v1752 = vstv %s1751
        %v1753 = vmul.f32 %v1752, %v1331
        %v1754 = vmul.f32 %v1752, %v1332
        %1757 = vrot.lane.b32.xlu0 %v1753, 127
        %v1758 = vpop.permute.xlu0 %1757
        %1759 = vrot.lane.b32.xlu0 %v1754, 127
        %v1760 = vpop.permute.xlu0 %1759
        %v1763 = vadd.f32 %v1651, %v1758
        %v1764 = vadd.f32 %v1652, %v1760
        %s1765 = sld [smem:[#allocation2 + $0x3a]]
        %v1766 = vstv %s1765
        %v1767 = vmul.f32 %v1766, %v1331
        %v1768 = vmul.f32 %v1766, %v1332
        %1771 = vrot.lane.b32.xlu0 %v1767, 127
        %v1772 = vpop.permute.xlu0 %1771
        %1773 = vrot.lane.b32.xlu0 %v1768, 127
        %v1774 = vpop.permute.xlu0 %1773
        %v1777 = vadd.f32 %v1665, %v1772
        %v1778 = vadd.f32 %v1666, %v1774
        %s1779 = sld [smem:[#allocation2 + $0x5e]]
        %v1780 = vstv %s1779
        %v1781 = vmul.f32 %v1780, %v1331
        %v1782 = vmul.f32 %v1780, %v1332
        %1785 = vrot.lane.b32.xlu0 %v1781, 127
        %v1786 = vpop.permute.xlu0 %1785
        %1787 = vrot.lane.b32.xlu0 %v1782, 127
        %v1788 = vpop.permute.xlu0 %1787
        %v1791 = vadd.f32 %v1679, %v1786
        %v1792 = vadd.f32 %v1680, %v1788
        %s1793 = sld [smem:[#allocation2 + $0x82]]
        %v1794 = vstv %s1793
        %v1795 = vmul.f32 %v1794, %v1331
        %v1796 = vmul.f32 %v1794, %v1332
        %1799 = vrot.lane.b32.xlu0 %v1795, 127
        %v1800 = vpop.permute.xlu0 %1799
        %1801 = vrot.lane.b32.xlu0 %v1796, 127
        %v1802 = vpop.permute.xlu0 %1801
        %v1805 = vadd.f32 %v1693, %v1800
        %v1806 = vadd.f32 %v1694, %v1802
        %s1807 = sld [smem:[#allocation2 + $0xa6]]
        %v1808 = vstv %s1807
        %v1809 = vmul.f32 %v1808, %v1331
        %v1810 = vmul.f32 %v1808, %v1332
        %1813 = vrot.lane.b32.xlu0 %v1809, 127
        %v1814 = vpop.permute.xlu0 %1813
        %1815 = vrot.lane.b32.xlu0 %v1810, 127
        %v1816 = vpop.permute.xlu0 %1815
        %v1819 = vadd.f32 %v1707, %v1814
        %v1820 = vadd.f32 %v1708, %v1816
        %s1821 = sld [smem:[#allocation2 + $0xca]]
        %v1822 = vstv %s1821
        %v1823 = vmul.f32 %v1822, %v1331
        %v1824 = vmul.f32 %v1822, %v1332
        %1827 = vrot.lane.b32.xlu0 %v1823, 127
        %v1828 = vpop.permute.xlu0 %1827
        %1829 = vrot.lane.b32.xlu0 %v1824, 127
        %v1830 = vpop.permute.xlu0 %1829
        %v1833 = vadd.f32 %v1721, %v1828
        %v1834 = vadd.f32 %v1722, %v1830
        %s1835 = sld [smem:[#allocation2 + $0xee]]
        %v1836 = vstv %s1835
        %v1837 = vmul.f32 %v1836, %v1331
        %v1838 = vmul.f32 %v1836, %v1332
        %1841 = vrot.lane.b32.xlu0 %v1837, 127
        %v1842 = vpop.permute.xlu0 %1841
        %1843 = vrot.lane.b32.xlu0 %v1838, 127
        %v1844 = vpop.permute.xlu0 %1843
        %v1847 = vadd.f32 %v1735, %v1842
        %v1848 = vadd.f32 %v1736, %v1844
        %s1849 = sld [smem:[#allocation2 + $0x112]]
        %v1850 = vstv %s1849
        %v1851 = vmul.f32 %v1850, %v1331
        %v1852 = vmul.f32 %v1850, %v1332
        %1855 = vrot.lane.b32.xlu0 %v1851, 127
        %v1856 = vpop.permute.xlu0 %1855
        %1857 = vrot.lane.b32.xlu0 %v1852, 127
        %v1858 = vpop.permute.xlu0 %1857
        %v1861 = vadd.f32 %v1749, %v1856
        %v1862 = vadd.f32 %v1750, %v1858
        %s1863 = sld [smem:[#allocation2 + $0x1f]]
        %v1864 = vstv %s1863
        %v1865 = vmul.f32 %v1864, %v1333
        %v1866 = vmul.f32 %v1864, %v1334
        %1869 = vrot.lane.b32.xlu0 %v1865, 127
        %v1870 = vpop.permute.xlu0 %1869
        %1871 = vrot.lane.b32.xlu0 %v1866, 127
        %v1872 = vpop.permute.xlu0 %1871
        %v1875 = vadd.f32 %v1763, %v1870
        %v1876 = vadd.f32 %v1764, %v1872
        %s1877 = sld [smem:[#allocation2 + $0x43]]
        %v1878 = vstv %s1877
        %v1879 = vmul.f32 %v1878, %v1333
        %v1880 = vmul.f32 %v1878, %v1334
        %1883 = vrot.lane.b32.xlu0 %v1879, 127
        %v1884 = vpop.permute.xlu0 %1883
        %1885 = vrot.lane.b32.xlu0 %v1880, 127
        %v1886 = vpop.permute.xlu0 %1885
        %v1889 = vadd.f32 %v1777, %v1884
        %v1890 = vadd.f32 %v1778, %v1886
        %s1891 = sld [smem:[#allocation2 + $0x67]]
        %v1892 = vstv %s1891
        %v1893 = vmul.f32 %v1892, %v1333
        %v1894 = vmul.f32 %v1892, %v1334
        %1897 = vrot.lane.b32.xlu0 %v1893, 127
        %v1898 = vpop.permute.xlu0 %1897
        %1899 = vrot.lane.b32.xlu0 %v1894, 127
        %v1900 = vpop.permute.xlu0 %1899
        %v1903 = vadd.f32 %v1791, %v1898
        %v1904 = vadd.f32 %v1792, %v1900
        %s1905 = sld [smem:[#allocation2 + $0x8b]]
        %v1906 = vstv %s1905
        %v1907 = vmul.f32 %v1906, %v1333
        %v1908 = vmul.f32 %v1906, %v1334
        %1911 = vrot.lane.b32.xlu0 %v1907, 127
        %v1912 = vpop.permute.xlu0 %1911
        %1913 = vrot.lane.b32.xlu0 %v1908, 127
        %v1914 = vpop.permute.xlu0 %1913
        %v1917 = vadd.f32 %v1805, %v1912
        %v1918 = vadd.f32 %v1806, %v1914
        %s1919 = sld [smem:[#allocation2 + $0xaf]]
        %v1920 = vstv %s1919
        %v1921 = vmul.f32 %v1920, %v1333
        %v1922 = vmul.f32 %v1920, %v1334
        %1925 = vrot.lane.b32.xlu0 %v1921, 127
        %v1926 = vpop.permute.xlu0 %1925
        %1927 = vrot.lane.b32.xlu0 %v1922, 127
        %v1928 = vpop.permute.xlu0 %1927
        %v1931 = vadd.f32 %v1819, %v1926
        %v1932 = vadd.f32 %v1820, %v1928
        %s1933 = sld [smem:[#allocation2 + $0xd3]]
        %v1934 = vstv %s1933
        %v1935 = vmul.f32 %v1934, %v1333
        %v1936 = vmul.f32 %v1934, %v1334
        %1939 = vrot.lane.b32.xlu0 %v1935, 127
        %v1940 = vpop.permute.xlu0 %1939
        %1941 = vrot.lane.b32.xlu0 %v1936, 127
        %v1942 = vpop.permute.xlu0 %1941
        %v1945 = vadd.f32 %v1833, %v1940
        %v1946 = vadd.f32 %v1834, %v1942
        %s1947 = sld [smem:[#allocation2 + $0xf7]]
        %v1948 = vstv %s1947
        %v1949 = vmul.f32 %v1948, %v1333
        %v1950 = vmul.f32 %v1948, %v1334
        %1953 = vrot.lane.b32.xlu0 %v1949, 127
        %v1954 = vpop.permute.xlu0 %1953
        %1955 = vrot.lane.b32.xlu0 %v1950, 127
        %v1956 = vpop.permute.xlu0 %1955
        %v1959 = vadd.f32 %v1847, %v1954
        %v1960 = vadd.f32 %v1848, %v1956
        %s1961 = sld [smem:[#allocation2 + $0x11b]]
        %v1962 = vstv %s1961
        %v1963 = vmul.f32 %v1962, %v1333
        %v1964 = vmul.f32 %v1962, %v1334
        %1967 = vrot.lane.b32.xlu0 %v1963, 127
        %v1968 = vpop.permute.xlu0 %1967
        %1969 = vrot.lane.b32.xlu0 %v1964, 127
        %v1970 = vpop.permute.xlu0 %1969
        %v1973 = vadd.f32 %v1861, %v1968
        %v1974 = vadd.f32 %v1862, %v1970
        %s1975 = sld [smem:[#allocation2 + $0x5]]
        %v1976 = vstv %s1975
        %v1977 = vmul.f32 %v1976, %v1327
        %v1978 = vmul.f32 %v1976, %v1328
        %1981 = vrot.lane.b32.xlu0 %v1977, 126
        %v1982 = vpop.permute.xlu0 %1981
        %1983 = vrot.lane.b32.xlu0 %v1978, 126
        %v1984 = vpop.permute.xlu0 %1983
        %v1987 = vadd.f32 %v1875, %v1982
        %v1988 = vadd.f32 %v1876, %v1984
        %s1989 = sld [smem:[#allocation2 + $0x29]]
        %v1990 = vstv %s1989
        %v1991 = vmul.f32 %v1990, %v1327
        %v1992 = vmul.f32 %v1990, %v1328
        %1995 = vrot.lane.b32.xlu0 %v1991, 126
        %v1996 = vpop.permute.xlu0 %1995
        %1997 = vrot.lane.b32.xlu0 %v1992, 126
        %v1998 = vpop.permute.xlu0 %1997
        %v2001 = vadd.f32 %v1889, %v1996
        %v2002 = vadd.f32 %v1890, %v1998
        %s2003 = sld [smem:[#allocation2 + $0x4d]]
        %v2004 = vstv %s2003
        %v2005 = vmul.f32 %v2004, %v1327
        %v2006 = vmul.f32 %v2004, %v1328
        %2009 = vrot.lane.b32.xlu0 %v2005, 126
        %v2010 = vpop.permute.xlu0 %2009
        %2011 = vrot.lane.b32.xlu0 %v2006, 126
        %v2012 = vpop.permute.xlu0 %2011
        %v2015 = vadd.f32 %v1903, %v2010
        %v2016 = vadd.f32 %v1904, %v2012
        %s2017 = sld [smem:[#allocation2 + $0x71]]
        %v2018 = vstv %s2017
        %v2019 = vmul.f32 %v2018, %v1327
        %v2020 = vmul.f32 %v2018, %v1328
        %2023 = vrot.lane.b32.xlu0 %v2019, 126
        %v2024 = vpop.permute.xlu0 %2023
        %2025 = vrot.lane.b32.xlu0 %v2020, 126
        %v2026 = vpop.permute.xlu0 %2025
        %v2029 = vadd.f32 %v1917, %v2024
        %v2030 = vadd.f32 %v1918, %v2026
        %s2031 = sld [smem:[#allocation2 + $0x95]]
        %v2032 = vstv %s2031
        %v2033 = vmul.f32 %v2032, %v1327
        %v2034 = vmul.f32 %v2032, %v1328
        %2037 = vrot.lane.b32.xlu0 %v2033, 126
        %v2038 = vpop.permute.xlu0 %2037
        %2039 = vrot.lane.b32.xlu0 %v2034, 126
        %v2040 = vpop.permute.xlu0 %2039
        %v2043 = vadd.f32 %v1931, %v2038
        %v2044 = vadd.f32 %v1932, %v2040
        %s2045 = sld [smem:[#allocation2 + $0xb9]]
        %v2046 = vstv %s2045
        %v2047 = vmul.f32 %v2046, %v1327
        %v2048 = vmul.f32 %v2046, %v1328
        %2051 = vrot.lane.b32.xlu0 %v2047, 126
        %v2052 = vpop.permute.xlu0 %2051
        %2053 = vrot.lane.b32.xlu0 %v2048, 126
        %v2054 = vpop.permute.xlu0 %2053
        %v2057 = vadd.f32 %v1945, %v2052
        %v2058 = vadd.f32 %v1946, %v2054
        %s2059 = sld [smem:[#allocation2 + $0xdd]]
        %v2060 = vstv %s2059
        %v2061 = vmul.f32 %v2060, %v1327
        %v2062 = vmul.f32 %v2060, %v1328
        %2065 = vrot.lane.b32.xlu0 %v2061, 126
        %v2066 = vpop.permute.xlu0 %2065
        %2067 = vrot.lane.b32.xlu0 %v2062, 126
        %v2068 = vpop.permute.xlu0 %2067
        %v2071 = vadd.f32 %v1959, %v2066
        %v2072 = vadd.f32 %v1960, %v2068
        %s2073 = sld [smem:[#allocation2 + $0x101]]
        %v2074 = vstv %s2073
        %v2075 = vmul.f32 %v2074, %v1327
        %v2076 = vmul.f32 %v2074, %v1328
        %2079 = vrot.lane.b32.xlu0 %v2075, 126
        %v2080 = vpop.permute.xlu0 %2079
        %2081 = vrot.lane.b32.xlu0 %v2076, 126
        %v2082 = vpop.permute.xlu0 %2081
        %v2085 = vadd.f32 %v1973, %v2080
        %v2086 = vadd.f32 %v1974, %v2082
        %s2087 = sld [smem:[#allocation2 + $0xe]]
        %v2088 = vstv %s2087
        %v2089 = vmul.f32 %v2088, %v1329
        %v2090 = vmul.f32 %v2088, %v1330
        %2093 = vrot.lane.b32.xlu0 %v2089, 126
        %v2094 = vpop.permute.xlu0 %2093
        %2095 = vrot.lane.b32.xlu0 %v2090, 126
        %v2096 = vpop.permute.xlu0 %2095
        %v2099 = vadd.f32 %v1987, %v2094
        %v2100 = vadd.f32 %v1988, %v2096
        %s2101 = sld [smem:[#allocation2 + $0x32]]
        %v2102 = vstv %s2101
        %v2103 = vmul.f32 %v2102, %v1329
        %v2104 = vmul.f32 %v2102, %v1330
        %2107 = vrot.lane.b32.xlu0 %v2103, 126
        %v2108 = vpop.permute.xlu0 %2107
        %2109 = vrot.lane.b32.xlu0 %v2104, 126
        %v2110 = vpop.permute.xlu0 %2109
        %v2113 = vadd.f32 %v2001, %v2108
        %v2114 = vadd.f32 %v2002, %v2110
        %s2115 = sld [smem:[#allocation2 + $0x56]]
        %v2116 = vstv %s2115
        %v2117 = vmul.f32 %v2116, %v1329
        %v2118 = vmul.f32 %v2116, %v1330
        %2121 = vrot.lane.b32.xlu0 %v2117, 126
        %v2122 = vpop.permute.xlu0 %2121
        %2123 = vrot.lane.b32.xlu0 %v2118, 126
        %v2124 = vpop.permute.xlu0 %2123
        %v2127 = vadd.f32 %v2015, %v2122
        %v2128 = vadd.f32 %v2016, %v2124
        %s2129 = sld [smem:[#allocation2 + $0x7a]]
        %v2130 = vstv %s2129
        %v2131 = vmul.f32 %v2130, %v1329
        %v2132 = vmul.f32 %v2130, %v1330
        %2135 = vrot.lane.b32.xlu0 %v2131, 126
        %v2136 = vpop.permute.xlu0 %2135
        %2137 = vrot.lane.b32.xlu0 %v2132, 126
        %v2138 = vpop.permute.xlu0 %2137
        %v2141 = vadd.f32 %v2029, %v2136
        %v2142 = vadd.f32 %v2030, %v2138
        %s2143 = sld [smem:[#allocation2 + $0x9e]]
        %v2144 = vstv %s2143
        %v2145 = vmul.f32 %v2144, %v1329
        %v2146 = vmul.f32 %v2144, %v1330
        %2149 = vrot.lane.b32.xlu0 %v2145, 126
        %v2150 = vpop.permute.xlu0 %2149
        %2151 = vrot.lane.b32.xlu0 %v2146, 126
        %v2152 = vpop.permute.xlu0 %2151
        %v2155 = vadd.f32 %v2043, %v2150
        %v2156 = vadd.f32 %v2044, %v2152
        %s2157 = sld [smem:[#allocation2 + $0xc2]]
        %v2158 = vstv %s2157
        %v2159 = vmul.f32 %v2158, %v1329
        %v2160 = vmul.f32 %v2158, %v1330
        %2163 = vrot.lane.b32.xlu0 %v2159, 126
        %v2164 = vpop.permute.xlu0 %2163
        %2165 = vrot.lane.b32.xlu0 %v2160, 126
        %v2166 = vpop.permute.xlu0 %2165
        %v2169 = vadd.f32 %v2057, %v2164
        %v2170 = vadd.f32 %v2058, %v2166
        %s2171 = sld [smem:[#allocation2 + $0xe6]]
        %v2172 = vstv %s2171
        %v2173 = vmul.f32 %v2172, %v1329
        %v2174 = vmul.f32 %v2172, %v1330
        %2177 = vrot.lane.b32.xlu0 %v2173, 126
        %v2178 = vpop.permute.xlu0 %2177
        %2179 = vrot.lane.b32.xlu0 %v2174, 126
        %v2180 = vpop.permute.xlu0 %2179
        %v2183 = vadd.f32 %v2071, %v2178
        %v2184 = vadd.f32 %v2072, %v2180
        %s2185 = sld [smem:[#allocation2 + $0x10a]]
        %v2186 = vstv %s2185
        %v2187 = vmul.f32 %v2186, %v1329
        %v2188 = vmul.f32 %v2186, %v1330
        %2191 = vrot.lane.b32.xlu0 %v2187, 126
        %v2192 = vpop.permute.xlu0 %2191
        %2193 = vrot.lane.b32.xlu0 %v2188, 126
        %v2194 = vpop.permute.xlu0 %2193
        %v2197 = vadd.f32 %v2085, %v2192
        %v2198 = vadd.f32 %v2086, %v2194
        %s2199 = sld [smem:[#allocation2 + $0x17]]
        %v2200 = vstv %s2199
        %v2201 = vmul.f32 %v2200, %v1331
        %v2202 = vmul.f32 %v2200, %v1332
        %2205 = vrot.lane.b32.xlu0 %v2201, 126
        %v2206 = vpop.permute.xlu0 %2205
        %2207 = vrot.lane.b32.xlu0 %v2202, 126
        %v2208 = vpop.permute.xlu0 %2207
        %v2211 = vadd.f32 %v2099, %v2206
        %v2212 = vadd.f32 %v2100, %v2208
        %s2213 = sld [smem:[#allocation2 + $0x3b]]
        %v2214 = vstv %s2213
        %v2215 = vmul.f32 %v2214, %v1331
        %v2216 = vmul.f32 %v2214, %v1332
        %2219 = vrot.lane.b32.xlu0 %v2215, 126
        %v2220 = vpop.permute.xlu0 %2219
        %2221 = vrot.lane.b32.xlu0 %v2216, 126
        %v2222 = vpop.permute.xlu0 %2221
        %v2225 = vadd.f32 %v2113, %v2220
        %v2226 = vadd.f32 %v2114, %v2222
        %s2227 = sld [smem:[#allocation2 + $0x5f]]
        %v2228 = vstv %s2227
        %v2229 = vmul.f32 %v2228, %v1331
        %v2230 = vmul.f32 %v2228, %v1332
        %2233 = vrot.lane.b32.xlu0 %v2229, 126
        %v2234 = vpop.permute.xlu0 %2233
        %2235 = vrot.lane.b32.xlu0 %v2230, 126
        %v2236 = vpop.permute.xlu0 %2235
        %v2239 = vadd.f32 %v2127, %v2234
        %v2240 = vadd.f32 %v2128, %v2236
        %s2241 = sld [smem:[#allocation2 + $0x83]]
        %v2242 = vstv %s2241
        %v2243 = vmul.f32 %v2242, %v1331
        %v2244 = vmul.f32 %v2242, %v1332
        %2247 = vrot.lane.b32.xlu0 %v2243, 126
        %v2248 = vpop.permute.xlu0 %2247
        %2249 = vrot.lane.b32.xlu0 %v2244, 126
        %v2250 = vpop.permute.xlu0 %2249
        %v2253 = vadd.f32 %v2141, %v2248
        %v2254 = vadd.f32 %v2142, %v2250
        %s2255 = sld [smem:[#allocation2 + $0xa7]]
        %v2256 = vstv %s2255
        %v2257 = vmul.f32 %v2256, %v1331
        %v2258 = vmul.f32 %v2256, %v1332
        %2261 = vrot.lane.b32.xlu0 %v2257, 126
        %v2262 = vpop.permute.xlu0 %2261
        %2263 = vrot.lane.b32.xlu0 %v2258, 126
        %v2264 = vpop.permute.xlu0 %2263
        %v2267 = vadd.f32 %v2155, %v2262
        %v2268 = vadd.f32 %v2156, %v2264
        %s2269 = sld [smem:[#allocation2 + $0xcb]]
        %v2270 = vstv %s2269
        %v2271 = vmul.f32 %v2270, %v1331
        %v2272 = vmul.f32 %v2270, %v1332
        %2275 = vrot.lane.b32.xlu0 %v2271, 126
        %v2276 = vpop.permute.xlu0 %2275
        %2277 = vrot.lane.b32.xlu0 %v2272, 126
        %v2278 = vpop.permute.xlu0 %2277
        %v2281 = vadd.f32 %v2169, %v2276
        %v2282 = vadd.f32 %v2170, %v2278
        %s2283 = sld [smem:[#allocation2 + $0xef]]
        %v2284 = vstv %s2283
        %v2285 = vmul.f32 %v2284, %v1331
        %v2286 = vmul.f32 %v2284, %v1332
        %2289 = vrot.lane.b32.xlu0 %v2285, 126
        %v2290 = vpop.permute.xlu0 %2289
        %2291 = vrot.lane.b32.xlu0 %v2286, 126
        %v2292 = vpop.permute.xlu0 %2291
        %v2295 = vadd.f32 %v2183, %v2290
        %v2296 = vadd.f32 %v2184, %v2292
        %s2297 = sld [smem:[#allocation2 + $0x113]]
        %v2298 = vstv %s2297
        %v2299 = vmul.f32 %v2298, %v1331
        %v2300 = vmul.f32 %v2298, %v1332
        %2303 = vrot.lane.b32.xlu0 %v2299, 126
        %v2304 = vpop.permute.xlu0 %2303
        %2305 = vrot.lane.b32.xlu0 %v2300, 126
        %v2306 = vpop.permute.xlu0 %2305
        %v2309 = vadd.f32 %v2197, %v2304
        %v2310 = vadd.f32 %v2198, %v2306
        %s2311 = sld [smem:[#allocation2 + $0x20]]
        %v2312 = vstv %s2311
        %v2313 = vmul.f32 %v2312, %v1333
        %v2314 = vmul.f32 %v2312, %v1334
        %2317 = vrot.lane.b32.xlu0 %v2313, 126
        %v2318 = vpop.permute.xlu0 %2317
        %2319 = vrot.lane.b32.xlu0 %v2314, 126
        %v2320 = vpop.permute.xlu0 %2319
        %v2323 = vadd.f32 %v2211, %v2318
        %v2324 = vadd.f32 %v2212, %v2320
        %s2325 = sld [smem:[#allocation2 + $0x44]]
        %v2326 = vstv %s2325
        %v2327 = vmul.f32 %v2326, %v1333
        %v2328 = vmul.f32 %v2326, %v1334
        %2331 = vrot.lane.b32.xlu0 %v2327, 126
        %v2332 = vpop.permute.xlu0 %2331
        %2333 = vrot.lane.b32.xlu0 %v2328, 126
        %v2334 = vpop.permute.xlu0 %2333
        %v2337 = vadd.f32 %v2225, %v2332
        %v2338 = vadd.f32 %v2226, %v2334
        %s2339 = sld [smem:[#allocation2 + $0x68]]
        %v2340 = vstv %s2339
        %v2341 = vmul.f32 %v2340, %v1333
        %v2342 = vmul.f32 %v2340, %v1334
        %2345 = vrot.lane.b32.xlu0 %v2341, 126
        %v2346 = vpop.permute.xlu0 %2345
        %2347 = vrot.lane.b32.xlu0 %v2342, 126
        %v2348 = vpop.permute.xlu0 %2347
        %v2351 = vadd.f32 %v2239, %v2346
        %v2352 = vadd.f32 %v2240, %v2348
        %s2353 = sld [smem:[#allocation2 + $0x8c]]
        %v2354 = vstv %s2353
        %v2355 = vmul.f32 %v2354, %v1333
        %v2356 = vmul.f32 %v2354, %v1334
        %2359 = vrot.lane.b32.xlu0 %v2355, 126
        %v2360 = vpop.permute.xlu0 %2359
        %2361 = vrot.lane.b32.xlu0 %v2356, 126
        %v2362 = vpop.permute.xlu0 %2361
        %v2365 = vadd.f32 %v2253, %v2360
        %v2366 = vadd.f32 %v2254, %v2362
        %s2367 = sld [smem:[#allocation2 + $0xb0]]
        %v2368 = vstv %s2367
        %v2369 = vmul.f32 %v2368, %v1333
        %v2370 = vmul.f32 %v2368, %v1334
        %2373 = vrot.lane.b32.xlu0 %v2369, 126
        %v2374 = vpop.permute.xlu0 %2373
        %2375 = vrot.lane.b32.xlu0 %v2370, 126
        %v2376 = vpop.permute.xlu0 %2375
        %v2379 = vadd.f32 %v2267, %v2374
        %v2380 = vadd.f32 %v2268, %v2376
        %s2381 = sld [smem:[#allocation2 + $0xd4]]
        %v2382 = vstv %s2381
        %v2383 = vmul.f32 %v2382, %v1333
        %v2384 = vmul.f32 %v2382, %v1334
        %2387 = vrot.lane.b32.xlu0 %v2383, 126
        %v2388 = vpop.permute.xlu0 %2387
        %2389 = vrot.lane.b32.xlu0 %v2384, 126
        %v2390 = vpop.permute.xlu0 %2389
        %v2393 = vadd.f32 %v2281, %v2388
        %v2394 = vadd.f32 %v2282, %v2390
        %s2395 = sld [smem:[#allocation2 + $0xf8]]
        %v2396 = vstv %s2395
        %v2397 = vmul.f32 %v2396, %v1333
        %v2398 = vmul.f32 %v2396, %v1334
        %2401 = vrot.lane.b32.xlu0 %v2397, 126
        %v2402 = vpop.permute.xlu0 %2401
        %2403 = vrot.lane.b32.xlu0 %v2398, 126
        %v2404 = vpop.permute.xlu0 %2403
        %v2407 = vadd.f32 %v2295, %v2402
        %v2408 = vadd.f32 %v2296, %v2404
        %s2409 = sld [smem:[#allocation2 + $0x11c]]
        %v2410 = vstv %s2409
        %v2411 = vmul.f32 %v2410, %v1333
        %v2412 = vmul.f32 %v2410, %v1334
        %2415 = vrot.lane.b32.xlu0 %v2411, 126
        %v2416 = vpop.permute.xlu0 %2415
        %2417 = vrot.lane.b32.xlu0 %v2412, 126
        %v2418 = vpop.permute.xlu0 %2417
        %v2421 = vadd.f32 %v2309, %v2416
        %v2422 = vadd.f32 %v2310, %v2418
        %s2423 = sadd.s32 %s211, 2
        %s2424 = scalar_lea.vmem %s209, %s2423
        %v2425 = vld [vmem:[%s2424] sm:$0xff]
        %v2426 = vld [vmem:[%s2424 + $0x8] sm:$0xff]
        %v2427 = vld [vmem:[%s2424 + $0x18] sm:$0xff]
        %v2428 = vld [vmem:[%s2424 + $0x20] sm:$0xff]
        %v2429 = vld [vmem:[%s2424 + $0x30] sm:$0xff]
        %v2430 = vld [vmem:[%s2424 + $0x38] sm:$0xff]
        %v2431 = vld [vmem:[%s2424 + $0x48] sm:$0xff]
        %v2432 = vld [vmem:[%s2424 + $0x50] sm:$0xff]
        %s2433 = sld [smem:[#allocation2 + $0x6]]
        %v2434 = vstv %s2433
        %v2435 = vmul.f32 %v2434, %v2425
        %v2436 = vmul.f32 %v2434, %v2426
        %v2437 = vadd.f32 %v2323, %v2435
        %v2438 = vadd.f32 %v2324, %v2436
        %s2439 = sld [smem:[#allocation2 + $0x2a]]
        %v2440 = vstv %s2439
        %v2441 = vmul.f32 %v2440, %v2425
        %v2442 = vmul.f32 %v2440, %v2426
        %v2443 = vadd.f32 %v2337, %v2441
        %v2444 = vadd.f32 %v2338, %v2442
        %s2445 = sld [smem:[#allocation2 + $0x4e]]
        %v2446 = vstv %s2445
        %v2447 = vmul.f32 %v2446, %v2425
        %v2448 = vmul.f32 %v2446, %v2426
        %v2449 = vadd.f32 %v2351, %v2447
        %v2450 = vadd.f32 %v2352, %v2448
        %s2451 = sld [smem:[#allocation2 + $0x72]]
        %v2452 = vstv %s2451
        %v2453 = vmul.f32 %v2452, %v2425
        %v2454 = vmul.f32 %v2452, %v2426
        %v2455 = vadd.f32 %v2365, %v2453
        %v2456 = vadd.f32 %v2366, %v2454
        %s2457 = sld [smem:[#allocation2 + $0x96]]
        %v2458 = vstv %s2457
        %v2459 = vmul.f32 %v2458, %v2425
        %v2460 = vmul.f32 %v2458, %v2426
        %v2461 = vadd.f32 %v2379, %v2459
        %v2462 = vadd.f32 %v2380, %v2460
        %s2463 = sld [smem:[#allocation2 + $0xba]]
        %v2464 = vstv %s2463
        %v2465 = vmul.f32 %v2464, %v2425
        %v2466 = vmul.f32 %v2464, %v2426
        %v2467 = vadd.f32 %v2393, %v2465
        %v2468 = vadd.f32 %v2394, %v2466
        %s2469 = sld [smem:[#allocation2 + $0xde]]
        %v2470 = vstv %s2469
        %v2471 = vmul.f32 %v2470, %v2425
        %v2472 = vmul.f32 %v2470, %v2426
        %v2473 = vadd.f32 %v2407, %v2471
        %v2474 = vadd.f32 %v2408, %v2472
        %s2475 = sld [smem:[#allocation2 + $0x102]]
        %v2476 = vstv %s2475
        %v2477 = vmul.f32 %v2476, %v2425
        %v2478 = vmul.f32 %v2476, %v2426
        %v2479 = vadd.f32 %v2421, %v2477
        %v2480 = vadd.f32 %v2422, %v2478
        %s2481 = sld [smem:[#allocation2 + $0xf]]
        %v2482 = vstv %s2481
        %v2483 = vmul.f32 %v2482, %v2427
        %v2484 = vmul.f32 %v2482, %v2428
        %v2485 = vadd.f32 %v2437, %v2483
        %v2486 = vadd.f32 %v2438, %v2484
        %s2487 = sld [smem:[#allocation2 + $0x33]]
        %v2488 = vstv %s2487
        %v2489 = vmul.f32 %v2488, %v2427
        %v2490 = vmul.f32 %v2488, %v2428
        %v2491 = vadd.f32 %v2443, %v2489
        %v2492 = vadd.f32 %v2444, %v2490
        %s2493 = sld [smem:[#allocation2 + $0x57]]
        %v2494 = vstv %s2493
        %v2495 = vmul.f32 %v2494, %v2427
        %v2496 = vmul.f32 %v2494, %v2428
        %v2497 = vadd.f32 %v2449, %v2495
        %v2498 = vadd.f32 %v2450, %v2496
        %s2499 = sld [smem:[#allocation2 + $0x7b]]
        %v2500 = vstv %s2499
        %v2501 = vmul.f32 %v2500, %v2427
        %v2502 = vmul.f32 %v2500, %v2428
        %v2503 = vadd.f32 %v2455, %v2501
        %v2504 = vadd.f32 %v2456, %v2502
        %s2505 = sld [smem:[#allocation2 + $0x9f]]
        %v2506 = vstv %s2505
        %v2507 = vmul.f32 %v2506, %v2427
        %v2508 = vmul.f32 %v2506, %v2428
        %v2509 = vadd.f32 %v2461, %v2507
        %v2510 = vadd.f32 %v2462, %v2508
        %s2511 = sld [smem:[#allocation2 + $0xc3]]
        %v2512 = vstv %s2511
        %v2513 = vmul.f32 %v2512, %v2427
        %v2514 = vmul.f32 %v2512, %v2428
        %v2515 = vadd.f32 %v2467, %v2513
        %v2516 = vadd.f32 %v2468, %v2514
        %s2517 = sld [smem:[#allocation2 + $0xe7]]
        %v2518 = vstv %s2517
        %v2519 = vmul.f32 %v2518, %v2427
        %v2520 = vmul.f32 %v2518, %v2428
        %v2521 = vadd.f32 %v2473, %v2519
        %v2522 = vadd.f32 %v2474, %v2520
        %s2523 = sld [smem:[#allocation2 + $0x10b]]
        %v2524 = vstv %s2523
        %v2525 = vmul.f32 %v2524, %v2427
        %v2526 = vmul.f32 %v2524, %v2428
        %v2527 = vadd.f32 %v2479, %v2525
        %v2528 = vadd.f32 %v2480, %v2526
        %s2529 = sld [smem:[#allocation2 + $0x18]]
        %v2530 = vstv %s2529
        %v2531 = vmul.f32 %v2530, %v2429
        %v2532 = vmul.f32 %v2530, %v2430
        %v2533 = vadd.f32 %v2485, %v2531
        %v2534 = vadd.f32 %v2486, %v2532
        %s2535 = sld [smem:[#allocation2 + $0x3c]]
        %v2536 = vstv %s2535
        %v2537 = vmul.f32 %v2536, %v2429
        %v2538 = vmul.f32 %v2536, %v2430
        %v2539 = vadd.f32 %v2491, %v2537
        %v2540 = vadd.f32 %v2492, %v2538
        %s2541 = sld [smem:[#allocation2 + $0x60]]
        %v2542 = vstv %s2541
        %v2543 = vmul.f32 %v2542, %v2429
        %v2544 = vmul.f32 %v2542, %v2430
        %v2545 = vadd.f32 %v2497, %v2543
        %v2546 = vadd.f32 %v2498, %v2544
        %s2547 = sld [smem:[#allocation2 + $0x84]]
        %v2548 = vstv %s2547
        %v2549 = vmul.f32 %v2548, %v2429
        %v2550 = vmul.f32 %v2548, %v2430
        %v2551 = vadd.f32 %v2503, %v2549
        %v2552 = vadd.f32 %v2504, %v2550
        %s2553 = sld [smem:[#allocation2 + $0xa8]]
        %v2554 = vstv %s2553
        %v2555 = vmul.f32 %v2554, %v2429
        %v2556 = vmul.f32 %v2554, %v2430
        %v2557 = vadd.f32 %v2509, %v2555
        %v2558 = vadd.f32 %v2510, %v2556
        %s2559 = sld [smem:[#allocation2 + $0xcc]]
        %v2560 = vstv %s2559
        %v2561 = vmul.f32 %v2560, %v2429
        %v2562 = vmul.f32 %v2560, %v2430
        %v2563 = vadd.f32 %v2515, %v2561
        %v2564 = vadd.f32 %v2516, %v2562
        %s2565 = sld [smem:[#allocation2 + $0xf0]]
        %v2566 = vstv %s2565
        %v2567 = vmul.f32 %v2566, %v2429
        %v2568 = vmul.f32 %v2566, %v2430
        %v2569 = vadd.f32 %v2521, %v2567
        %v2570 = vadd.f32 %v2522, %v2568
        %s2571 = sld [smem:[#allocation2 + $0x114]]
        %v2572 = vstv %s2571
        %v2573 = vmul.f32 %v2572, %v2429
        %v2574 = vmul.f32 %v2572, %v2430
        %v2575 = vadd.f32 %v2527, %v2573
        %v2576 = vadd.f32 %v2528, %v2574
        %s2577 = sld [smem:[#allocation2 + $0x21]]
        %v2578 = vstv %s2577
        %v2579 = vmul.f32 %v2578, %v2431
        %v2580 = vmul.f32 %v2578, %v2432
        %v2581 = vadd.f32 %v2533, %v2579
        %v2582 = vadd.f32 %v2534, %v2580
        %s2583 = sld [smem:[#allocation2 + $0x45]]
        %v2584 = vstv %s2583
        %v2585 = vmul.f32 %v2584, %v2431
        %v2586 = vmul.f32 %v2584, %v2432
        %v2587 = vadd.f32 %v2539, %v2585
        %v2588 = vadd.f32 %v2540, %v2586
        %s2589 = sld [smem:[#allocation2 + $0x69]]
        %v2590 = vstv %s2589
        %v2591 = vmul.f32 %v2590, %v2431
        %v2592 = vmul.f32 %v2590, %v2432
        %v2593 = vadd.f32 %v2545, %v2591
        %v2594 = vadd.f32 %v2546, %v2592
        %s2595 = sld [smem:[#allocation2 + $0x8d]]
        %v2596 = vstv %s2595
        %v2597 = vmul.f32 %v2596, %v2431
        %v2598 = vmul.f32 %v2596, %v2432
        %v2599 = vadd.f32 %v2551, %v2597
        %v2600 = vadd.f32 %v2552, %v2598
        %s2601 = sld [smem:[#allocation2 + $0xb1]]
        %v2602 = vstv %s2601
        %v2603 = vmul.f32 %v2602, %v2431
        %v2604 = vmul.f32 %v2602, %v2432
        %v2605 = vadd.f32 %v2557, %v2603
        %v2606 = vadd.f32 %v2558, %v2604
        %s2607 = sld [smem:[#allocation2 + $0xd5]]
        %v2608 = vstv %s2607
        %v2609 = vmul.f32 %v2608, %v2431
        %v2610 = vmul.f32 %v2608, %v2432
        %v2611 = vadd.f32 %v2563, %v2609
        %v2612 = vadd.f32 %v2564, %v2610
        %s2613 = sld [smem:[#allocation2 + $0xf9]]
        %v2614 = vstv %s2613
        %v2615 = vmul.f32 %v2614, %v2431
        %v2616 = vmul.f32 %v2614, %v2432
        %v2617 = vadd.f32 %v2569, %v2615
        %v2618 = vadd.f32 %v2570, %v2616
        %s2619 = sld [smem:[#allocation2 + $0x11d]]
        %v2620 = vstv %s2619
        %v2621 = vmul.f32 %v2620, %v2431
        %v2622 = vmul.f32 %v2620, %v2432
        %v2623 = vadd.f32 %v2575, %v2621
        %v2624 = vadd.f32 %v2576, %v2622
        %s2625 = sld [smem:[#allocation2 + $0x7]]
        %v2626 = vstv %s2625
        %v2627 = vmul.f32 %v2626, %v2425
        %v2628 = vmul.f32 %v2626, %v2426
        %2631 = vrot.lane.b32.xlu0 %v2627, 127
        %v2632 = vpop.permute.xlu0 %2631
        %2633 = vrot.lane.b32.xlu0 %v2628, 127
        %v2634 = vpop.permute.xlu0 %2633
        %v2637 = vadd.f32 %v2581, %v2632
        %v2638 = vadd.f32 %v2582, %v2634
        %s2639 = sld [smem:[#allocation2 + $0x2b]]
        %v2640 = vstv %s2639
        %v2641 = vmul.f32 %v2640, %v2425
        %v2642 = vmul.f32 %v2640, %v2426
        %2645 = vrot.lane.b32.xlu0 %v2641, 127
        %v2646 = vpop.permute.xlu0 %2645
        %2647 = vrot.lane.b32.xlu0 %v2642, 127
        %v2648 = vpop.permute.xlu0 %2647
        %v2651 = vadd.f32 %v2587, %v2646
        %v2652 = vadd.f32 %v2588, %v2648
        %s2653 = sld [smem:[#allocation2 + $0x4f]]
        %v2654 = vstv %s2653
        %v2655 = vmul.f32 %v2654, %v2425
        %v2656 = vmul.f32 %v2654, %v2426
        %2659 = vrot.lane.b32.xlu0 %v2655, 127
        %v2660 = vpop.permute.xlu0 %2659
        %2661 = vrot.lane.b32.xlu0 %v2656, 127
        %v2662 = vpop.permute.xlu0 %2661
        %v2665 = vadd.f32 %v2593, %v2660
        %v2666 = vadd.f32 %v2594, %v2662
        %s2667 = sld [smem:[#allocation2 + $0x73]]
        %v2668 = vstv %s2667
        %v2669 = vmul.f32 %v2668, %v2425
        %v2670 = vmul.f32 %v2668, %v2426
        %2673 = vrot.lane.b32.xlu0 %v2669, 127
        %v2674 = vpop.permute.xlu0 %2673
        %2675 = vrot.lane.b32.xlu0 %v2670, 127
        %v2676 = vpop.permute.xlu0 %2675
        %v2679 = vadd.f32 %v2599, %v2674
        %v2680 = vadd.f32 %v2600, %v2676
        %s2681 = sld [smem:[#allocation2 + $0x97]]
        %v2682 = vstv %s2681
        %v2683 = vmul.f32 %v2682, %v2425
        %v2684 = vmul.f32 %v2682, %v2426
        %2687 = vrot.lane.b32.xlu0 %v2683, 127
        %v2688 = vpop.permute.xlu0 %2687
        %2689 = vrot.lane.b32.xlu0 %v2684, 127
        %v2690 = vpop.permute.xlu0 %2689
        %v2693 = vadd.f32 %v2605, %v2688
        %v2694 = vadd.f32 %v2606, %v2690
        %s2695 = sld [smem:[#allocation2 + $0xbb]]
        %v2696 = vstv %s2695
        %v2697 = vmul.f32 %v2696, %v2425
        %v2698 = vmul.f32 %v2696, %v2426
        %2701 = vrot.lane.b32.xlu0 %v2697, 127
        %v2702 = vpop.permute.xlu0 %2701
        %2703 = vrot.lane.b32.xlu0 %v2698, 127
        %v2704 = vpop.permute.xlu0 %2703
        %v2707 = vadd.f32 %v2611, %v2702
        %v2708 = vadd.f32 %v2612, %v2704
        %s2709 = sld [smem:[#allocation2 + $0xdf]]
        %v2710 = vstv %s2709
        %v2711 = vmul.f32 %v2710, %v2425
        %v2712 = vmul.f32 %v2710, %v2426
        %2715 = vrot.lane.b32.xlu0 %v2711, 127
        %v2716 = vpop.permute.xlu0 %2715
        %2717 = vrot.lane.b32.xlu0 %v2712, 127
        %v2718 = vpop.permute.xlu0 %2717
        %v2721 = vadd.f32 %v2617, %v2716
        %v2722 = vadd.f32 %v2618, %v2718
        %s2723 = sld [smem:[#allocation2 + $0x103]]
        %v2724 = vstv %s2723
        %v2725 = vmul.f32 %v2724, %v2425
        %v2726 = vmul.f32 %v2724, %v2426
        %2729 = vrot.lane.b32.xlu0 %v2725, 127
        %v2730 = vpop.permute.xlu0 %2729
        %2731 = vrot.lane.b32.xlu0 %v2726, 127
        %v2732 = vpop.permute.xlu0 %2731
        %v2735 = vadd.f32 %v2623, %v2730
        %v2736 = vadd.f32 %v2624, %v2732
        %s2737 = sld [smem:[#allocation2 + $0x10]]
        %v2738 = vstv %s2737
        %v2739 = vmul.f32 %v2738, %v2427
        %v2740 = vmul.f32 %v2738, %v2428
        %2743 = vrot.lane.b32.xlu0 %v2739, 127
        %v2744 = vpop.permute.xlu0 %2743
        %2745 = vrot.lane.b32.xlu0 %v2740, 127
        %v2746 = vpop.permute.xlu0 %2745
        %v2749 = vadd.f32 %v2637, %v2744
        %v2750 = vadd.f32 %v2638, %v2746
        %s2751 = sld [smem:[#allocation2 + $0x34]]
        %v2752 = vstv %s2751
        %v2753 = vmul.f32 %v2752, %v2427
        %v2754 = vmul.f32 %v2752, %v2428
        %2757 = vrot.lane.b32.xlu0 %v2753, 127
        %v2758 = vpop.permute.xlu0 %2757
        %2759 = vrot.lane.b32.xlu0 %v2754, 127
        %v2760 = vpop.permute.xlu0 %2759
        %v2763 = vadd.f32 %v2651, %v2758
        %v2764 = vadd.f32 %v2652, %v2760
        %s2765 = sld [smem:[#allocation2 + $0x58]]
        %v2766 = vstv %s2765
        %v2767 = vmul.f32 %v2766, %v2427
        %v2768 = vmul.f32 %v2766, %v2428
        %2771 = vrot.lane.b32.xlu0 %v2767, 127
        %v2772 = vpop.permute.xlu0 %2771
        %2773 = vrot.lane.b32.xlu0 %v2768, 127
        %v2774 = vpop.permute.xlu0 %2773
        %v2777 = vadd.f32 %v2665, %v2772
        %v2778 = vadd.f32 %v2666, %v2774
        %s2779 = sld [smem:[#allocation2 + $0x7c]]
        %v2780 = vstv %s2779
        %v2781 = vmul.f32 %v2780, %v2427
        %v2782 = vmul.f32 %v2780, %v2428
        %2785 = vrot.lane.b32.xlu0 %v2781, 127
        %v2786 = vpop.permute.xlu0 %2785
        %2787 = vrot.lane.b32.xlu0 %v2782, 127
        %v2788 = vpop.permute.xlu0 %2787
        %v2791 = vadd.f32 %v2679, %v2786
        %v2792 = vadd.f32 %v2680, %v2788
        %s2793 = sld [smem:[#allocation2 + $0xa0]]
        %v2794 = vstv %s2793
        %v2795 = vmul.f32 %v2794, %v2427
        %v2796 = vmul.f32 %v2794, %v2428
        %2799 = vrot.lane.b32.xlu0 %v2795, 127
        %v2800 = vpop.permute.xlu0 %2799
        %2801 = vrot.lane.b32.xlu0 %v2796, 127
        %v2802 = vpop.permute.xlu0 %2801
        %v2805 = vadd.f32 %v2693, %v2800
        %v2806 = vadd.f32 %v2694, %v2802
        %s2807 = sld [smem:[#allocation2 + $0xc4]]
        %v2808 = vstv %s2807
        %v2809 = vmul.f32 %v2808, %v2427
        %v2810 = vmul.f32 %v2808, %v2428
        %2813 = vrot.lane.b32.xlu0 %v2809, 127
        %v2814 = vpop.permute.xlu0 %2813
        %2815 = vrot.lane.b32.xlu0 %v2810, 127
        %v2816 = vpop.permute.xlu0 %2815
        %v2819 = vadd.f32 %v2707, %v2814
        %v2820 = vadd.f32 %v2708, %v2816
        %s2821 = sld [smem:[#allocation2 + $0xe8]]
        %v2822 = vstv %s2821
        %v2823 = vmul.f32 %v2822, %v2427
        %v2824 = vmul.f32 %v2822, %v2428
        %2827 = vrot.lane.b32.xlu0 %v2823, 127
        %v2828 = vpop.permute.xlu0 %2827
        %2829 = vrot.lane.b32.xlu0 %v2824, 127
        %v2830 = vpop.permute.xlu0 %2829
        %v2833 = vadd.f32 %v2721, %v2828
        %v2834 = vadd.f32 %v2722, %v2830
        %s2835 = sld [smem:[#allocation2 + $0x10c]]
        %v2836 = vstv %s2835
        %v2837 = vmul.f32 %v2836, %v2427
        %v2838 = vmul.f32 %v2836, %v2428
        %2841 = vrot.lane.b32.xlu0 %v2837, 127
        %v2842 = vpop.permute.xlu0 %2841
        %2843 = vrot.lane.b32.xlu0 %v2838, 127
        %v2844 = vpop.permute.xlu0 %2843
        %v2847 = vadd.f32 %v2735, %v2842
        %v2848 = vadd.f32 %v2736, %v2844
        %s2849 = sld [smem:[#allocation2 + $0x19]]
        %v2850 = vstv %s2849
        %v2851 = vmul.f32 %v2850, %v2429
        %v2852 = vmul.f32 %v2850, %v2430
        %2855 = vrot.lane.b32.xlu0 %v2851, 127
        %v2856 = vpop.permute.xlu0 %2855
        %2857 = vrot.lane.b32.xlu0 %v2852, 127
        %v2858 = vpop.permute.xlu0 %2857
        %v2861 = vadd.f32 %v2749, %v2856
        %v2862 = vadd.f32 %v2750, %v2858
        %s2863 = sld [smem:[#allocation2 + $0x3d]]
        %v2864 = vstv %s2863
        %v2865 = vmul.f32 %v2864, %v2429
        %v2866 = vmul.f32 %v2864, %v2430
        %2869 = vrot.lane.b32.xlu0 %v2865, 127
        %v2870 = vpop.permute.xlu0 %2869
        %2871 = vrot.lane.b32.xlu0 %v2866, 127
        %v2872 = vpop.permute.xlu0 %2871
        %v2875 = vadd.f32 %v2763, %v2870
        %v2876 = vadd.f32 %v2764, %v2872
        %s2877 = sld [smem:[#allocation2 + $0x61]]
        %v2878 = vstv %s2877
        %v2879 = vmul.f32 %v2878, %v2429
        %v2880 = vmul.f32 %v2878, %v2430
        %2883 = vrot.lane.b32.xlu0 %v2879, 127
        %v2884 = vpop.permute.xlu0 %2883
        %2885 = vrot.lane.b32.xlu0 %v2880, 127
        %v2886 = vpop.permute.xlu0 %2885
        %v2889 = vadd.f32 %v2777, %v2884
        %v2890 = vadd.f32 %v2778, %v2886
        %s2891 = sld [smem:[#allocation2 + $0x85]]
        %v2892 = vstv %s2891
        %v2893 = vmul.f32 %v2892, %v2429
        %v2894 = vmul.f32 %v2892, %v2430
        %2897 = vrot.lane.b32.xlu0 %v2893, 127
        %v2898 = vpop.permute.xlu0 %2897
        %2899 = vrot.lane.b32.xlu0 %v2894, 127
        %v2900 = vpop.permute.xlu0 %2899
        %v2903 = vadd.f32 %v2791, %v2898
        %v2904 = vadd.f32 %v2792, %v2900
        %s2905 = sld [smem:[#allocation2 + $0xa9]]
        %v2906 = vstv %s2905
        %v2907 = vmul.f32 %v2906, %v2429
        %v2908 = vmul.f32 %v2906, %v2430
        %2911 = vrot.lane.b32.xlu0 %v2907, 127
        %v2912 = vpop.permute.xlu0 %2911
        %2913 = vrot.lane.b32.xlu0 %v2908, 127
        %v2914 = vpop.permute.xlu0 %2913
        %v2917 = vadd.f32 %v2805, %v2912
        %v2918 = vadd.f32 %v2806, %v2914
        %s2919 = sld [smem:[#allocation2 + $0xcd]]
        %v2920 = vstv %s2919
        %v2921 = vmul.f32 %v2920, %v2429
        %v2922 = vmul.f32 %v2920, %v2430
        %2925 = vrot.lane.b32.xlu0 %v2921, 127
        %v2926 = vpop.permute.xlu0 %2925
        %2927 = vrot.lane.b32.xlu0 %v2922, 127
        %v2928 = vpop.permute.xlu0 %2927
        %v2931 = vadd.f32 %v2819, %v2926
        %v2932 = vadd.f32 %v2820, %v2928
        %s2933 = sld [smem:[#allocation2 + $0xf1]]
        %v2934 = vstv %s2933
        %v2935 = vmul.f32 %v2934, %v2429
        %v2936 = vmul.f32 %v2934, %v2430
        %2939 = vrot.lane.b32.xlu0 %v2935, 127
        %v2940 = vpop.permute.xlu0 %2939
        %2941 = vrot.lane.b32.xlu0 %v2936, 127
        %v2942 = vpop.permute.xlu0 %2941
        %v2945 = vadd.f32 %v2833, %v2940
        %v2946 = vadd.f32 %v2834, %v2942
        %s2947 = sld [smem:[#allocation2 + $0x115]]
        %v2948 = vstv %s2947
        %v2949 = vmul.f32 %v2948, %v2429
        %v2950 = vmul.f32 %v2948, %v2430
        %2953 = vrot.lane.b32.xlu0 %v2949, 127
        %v2954 = vpop.permute.xlu0 %2953
        %2955 = vrot.lane.b32.xlu0 %v2950, 127
        %v2956 = vpop.permute.xlu0 %2955
        %v2959 = vadd.f32 %v2847, %v2954
        %v2960 = vadd.f32 %v2848, %v2956
        %s2961 = sld [smem:[#allocation2 + $0x22]]
        %v2962 = vstv %s2961
        %v2963 = vmul.f32 %v2962, %v2431
        %v2964 = vmul.f32 %v2962, %v2432
        %2967 = vrot.lane.b32.xlu0 %v2963, 127
        %v2968 = vpop.permute.xlu0 %2967
        %2969 = vrot.lane.b32.xlu0 %v2964, 127
        %v2970 = vpop.permute.xlu0 %2969
        %v2973 = vadd.f32 %v2861, %v2968
        %v2974 = vadd.f32 %v2862, %v2970
        %s2975 = sld [smem:[#allocation2 + $0x46]]
        %v2976 = vstv %s2975
        %v2977 = vmul.f32 %v2976, %v2431
        %v2978 = vmul.f32 %v2976, %v2432
        %2981 = vrot.lane.b32.xlu0 %v2977, 127
        %v2982 = vpop.permute.xlu0 %2981
        %2983 = vrot.lane.b32.xlu0 %v2978, 127
        %v2984 = vpop.permute.xlu0 %2983
        %v2987 = vadd.f32 %v2875, %v2982
        %v2988 = vadd.f32 %v2876, %v2984
        %s2989 = sld [smem:[#allocation2 + $0x6a]]
        %v2990 = vstv %s2989
        %v2991 = vmul.f32 %v2990, %v2431
        %v2992 = vmul.f32 %v2990, %v2432
        %2995 = vrot.lane.b32.xlu0 %v2991, 127
        %v2996 = vpop.permute.xlu0 %2995
        %2997 = vrot.lane.b32.xlu0 %v2992, 127
        %v2998 = vpop.permute.xlu0 %2997
        %v3001 = vadd.f32 %v2889, %v2996
        %v3002 = vadd.f32 %v2890, %v2998
        %s3003 = sld [smem:[#allocation2 + $0x8e]]
        %v3004 = vstv %s3003
        %v3005 = vmul.f32 %v3004, %v2431
        %v3006 = vmul.f32 %v3004, %v2432
        %3009 = vrot.lane.b32.xlu0 %v3005, 127
        %v3010 = vpop.permute.xlu0 %3009
        %3011 = vrot.lane.b32.xlu0 %v3006, 127
        %v3012 = vpop.permute.xlu0 %3011
        %v3015 = vadd.f32 %v2903, %v3010
        %v3016 = vadd.f32 %v2904, %v3012
        %s3017 = sld [smem:[#allocation2 + $0xb2]]
        %v3018 = vstv %s3017
        %v3019 = vmul.f32 %v3018, %v2431
        %v3020 = vmul.f32 %v3018, %v2432
        %3023 = vrot.lane.b32.xlu0 %v3019, 127
        %v3024 = vpop.permute.xlu0 %3023
        %3025 = vrot.lane.b32.xlu0 %v3020, 127
        %v3026 = vpop.permute.xlu0 %3025
        %v3029 = vadd.f32 %v2917, %v3024
        %v3030 = vadd.f32 %v2918, %v3026
        %s3031 = sld [smem:[#allocation2 + $0xd6]]
        %v3032 = vstv %s3031
        %v3033 = vmul.f32 %v3032, %v2431
        %v3034 = vmul.f32 %v3032, %v2432
        %3037 = vrot.lane.b32.xlu0 %v3033, 127
        %v3038 = vpop.permute.xlu0 %3037
        %3039 = vrot.lane.b32.xlu0 %v3034, 127
        %v3040 = vpop.permute.xlu0 %3039
        %v3043 = vadd.f32 %v2931, %v3038
        %v3044 = vadd.f32 %v2932, %v3040
        %s3045 = sld [smem:[#allocation2 + $0xfa]]
        %v3046 = vstv %s3045
        %v3047 = vmul.f32 %v3046, %v2431
        %v3048 = vmul.f32 %v3046, %v2432
        %3051 = vrot.lane.b32.xlu0 %v3047, 127
        %v3052 = vpop.permute.xlu0 %3051
        %3053 = vrot.lane.b32.xlu0 %v3048, 127
        %v3054 = vpop.permute.xlu0 %3053
        %v3057 = vadd.f32 %v2945, %v3052
        %v3058 = vadd.f32 %v2946, %v3054
        %s3059 = sld [smem:[#allocation2 + $0x11e]]
        %v3060 = vstv %s3059
        %v3061 = vmul.f32 %v3060, %v2431
        %v3062 = vmul.f32 %v3060, %v2432
        %3065 = vrot.lane.b32.xlu0 %v3061, 127
        %v3066 = vpop.permute.xlu0 %3065
        %3067 = vrot.lane.b32.xlu0 %v3062, 127
        %v3068 = vpop.permute.xlu0 %3067
        %v3071 = vadd.f32 %v2959, %v3066
        %v3072 = vadd.f32 %v2960, %v3068
        %s3073 = sld [smem:[#allocation2 + $0x8]]
        %v3074 = vstv %s3073
        %v3075 = vmul.f32 %v3074, %v2425
        %v3076 = vmul.f32 %v3074, %v2426
        %3079 = vrot.lane.b32.xlu0 %v3075, 126
        %v3080 = vpop.permute.xlu0 %3079
        %3081 = vrot.lane.b32.xlu0 %v3076, 126
        %v3082 = vpop.permute.xlu0 %3081
        %v3085 = vadd.f32 %v2973, %v3080
        %v3086 = vadd.f32 %v2974, %v3082
        %s3087 = sld [smem:[#allocation2 + $0x2c]]
        %v3088 = vstv %s3087
        %v3089 = vmul.f32 %v3088, %v2425
        %v3090 = vmul.f32 %v3088, %v2426
        %3093 = vrot.lane.b32.xlu0 %v3089, 126
        %v3094 = vpop.permute.xlu0 %3093
        %3095 = vrot.lane.b32.xlu0 %v3090, 126
        %v3096 = vpop.permute.xlu0 %3095
        %v3099 = vadd.f32 %v2987, %v3094
        %v3100 = vadd.f32 %v2988, %v3096
        %s3101 = sld [smem:[#allocation2 + $0x50]]
        %v3102 = vstv %s3101
        %v3103 = vmul.f32 %v3102, %v2425
        %v3104 = vmul.f32 %v3102, %v2426
        %3107 = vrot.lane.b32.xlu0 %v3103, 126
        %v3108 = vpop.permute.xlu0 %3107
        %3109 = vrot.lane.b32.xlu0 %v3104, 126
        %v3110 = vpop.permute.xlu0 %3109
        %v3113 = vadd.f32 %v3001, %v3108
        %v3114 = vadd.f32 %v3002, %v3110
        %s3115 = sld [smem:[#allocation2 + $0x74]]
        %v3116 = vstv %s3115
        %v3117 = vmul.f32 %v3116, %v2425
        %v3118 = vmul.f32 %v3116, %v2426
        %3121 = vrot.lane.b32.xlu0 %v3117, 126
        %v3122 = vpop.permute.xlu0 %3121
        %3123 = vrot.lane.b32.xlu0 %v3118, 126
        %v3124 = vpop.permute.xlu0 %3123
        %v3127 = vadd.f32 %v3015, %v3122
        %v3128 = vadd.f32 %v3016, %v3124
        %s3129 = sld [smem:[#allocation2 + $0x98]]
        %v3130 = vstv %s3129
        %v3131 = vmul.f32 %v3130, %v2425
        %v3132 = vmul.f32 %v3130, %v2426
        %3135 = vrot.lane.b32.xlu0 %v3131, 126
        %v3136 = vpop.permute.xlu0 %3135
        %3137 = vrot.lane.b32.xlu0 %v3132, 126
        %v3138 = vpop.permute.xlu0 %3137
        %v3141 = vadd.f32 %v3029, %v3136
        %v3142 = vadd.f32 %v3030, %v3138
        %s3143 = sld [smem:[#allocation2 + $0xbc]]
        %v3144 = vstv %s3143
        %v3145 = vmul.f32 %v3144, %v2425
        %v3146 = vmul.f32 %v3144, %v2426
        %3149 = vrot.lane.b32.xlu0 %v3145, 126
        %v3150 = vpop.permute.xlu0 %3149
        %3151 = vrot.lane.b32.xlu0 %v3146, 126
        %v3152 = vpop.permute.xlu0 %3151
        %v3155 = vadd.f32 %v3043, %v3150
        %v3156 = vadd.f32 %v3044, %v3152
        %s3157 = sld [smem:[#allocation2 + $0xe0]]
        %v3158 = vstv %s3157
        %v3159 = vmul.f32 %v3158, %v2425
        %v3160 = vmul.f32 %v3158, %v2426
        %3163 = vrot.lane.b32.xlu0 %v3159, 126
        %v3164 = vpop.permute.xlu0 %3163
        %3165 = vrot.lane.b32.xlu0 %v3160, 126
        %v3166 = vpop.permute.xlu0 %3165
        %v3169 = vadd.f32 %v3057, %v3164
        %v3170 = vadd.f32 %v3058, %v3166
        %s3171 = sld [smem:[#allocation2 + $0x104]]
        %v3172 = vstv %s3171
        %v3173 = vmul.f32 %v3172, %v2425
        %v3174 = vmul.f32 %v3172, %v2426
        %3177 = vrot.lane.b32.xlu0 %v3173, 126
        %v3178 = vpop.permute.xlu0 %3177
        %3179 = vrot.lane.b32.xlu0 %v3174, 126
        %v3180 = vpop.permute.xlu0 %3179
        %v3183 = vadd.f32 %v3071, %v3178
        %v3184 = vadd.f32 %v3072, %v3180
        %s3185 = sld [smem:[#allocation2 + $0x11]]
        %v3186 = vstv %s3185
        %v3187 = vmul.f32 %v3186, %v2427
        %v3188 = vmul.f32 %v3186, %v2428
        %3191 = vrot.lane.b32.xlu0 %v3187, 126
        %v3192 = vpop.permute.xlu0 %3191
        %3193 = vrot.lane.b32.xlu0 %v3188, 126
        %v3194 = vpop.permute.xlu0 %3193
        %v3197 = vadd.f32 %v3085, %v3192
        %v3198 = vadd.f32 %v3086, %v3194
        %s3199 = sld [smem:[#allocation2 + $0x35]]
        %v3200 = vstv %s3199
        %v3201 = vmul.f32 %v3200, %v2427
        %v3202 = vmul.f32 %v3200, %v2428
        %3205 = vrot.lane.b32.xlu0 %v3201, 126
        %v3206 = vpop.permute.xlu0 %3205
        %3207 = vrot.lane.b32.xlu0 %v3202, 126
        %v3208 = vpop.permute.xlu0 %3207
        %v3211 = vadd.f32 %v3099, %v3206
        %v3212 = vadd.f32 %v3100, %v3208
        %s3213 = sld [smem:[#allocation2 + $0x59]]
        %v3214 = vstv %s3213
        %v3215 = vmul.f32 %v3214, %v2427
        %v3216 = vmul.f32 %v3214, %v2428
        %3219 = vrot.lane.b32.xlu0 %v3215, 126
        %v3220 = vpop.permute.xlu0 %3219
        %3221 = vrot.lane.b32.xlu0 %v3216, 126
        %v3222 = vpop.permute.xlu0 %3221
        %v3225 = vadd.f32 %v3113, %v3220
        %v3226 = vadd.f32 %v3114, %v3222
        %s3227 = sld [smem:[#allocation2 + $0x7d]]
        %v3228 = vstv %s3227
        %v3229 = vmul.f32 %v3228, %v2427
        %v3230 = vmul.f32 %v3228, %v2428
        %3233 = vrot.lane.b32.xlu0 %v3229, 126
        %v3234 = vpop.permute.xlu0 %3233
        %3235 = vrot.lane.b32.xlu0 %v3230, 126
        %v3236 = vpop.permute.xlu0 %3235
        %v3239 = vadd.f32 %v3127, %v3234
        %v3240 = vadd.f32 %v3128, %v3236
        %s3241 = sld [smem:[#allocation2 + $0xa1]]
        %v3242 = vstv %s3241
        %v3243 = vmul.f32 %v3242, %v2427
        %v3244 = vmul.f32 %v3242, %v2428
        %3247 = vrot.lane.b32.xlu0 %v3243, 126
        %v3248 = vpop.permute.xlu0 %3247
        %3249 = vrot.lane.b32.xlu0 %v3244, 126
        %v3250 = vpop.permute.xlu0 %3249
        %v3253 = vadd.f32 %v3141, %v3248
        %v3254 = vadd.f32 %v3142, %v3250
        %s3255 = sld [smem:[#allocation2 + $0xc5]]
        %v3256 = vstv %s3255
        %v3257 = vmul.f32 %v3256, %v2427
        %v3258 = vmul.f32 %v3256, %v2428
        %3261 = vrot.lane.b32.xlu0 %v3257, 126
        %v3262 = vpop.permute.xlu0 %3261
        %3263 = vrot.lane.b32.xlu0 %v3258, 126
        %v3264 = vpop.permute.xlu0 %3263
        %v3267 = vadd.f32 %v3155, %v3262
        %v3268 = vadd.f32 %v3156, %v3264
        %s3269 = sld [smem:[#allocation2 + $0xe9]]
        %v3270 = vstv %s3269
        %v3271 = vmul.f32 %v3270, %v2427
        %v3272 = vmul.f32 %v3270, %v2428
        %3275 = vrot.lane.b32.xlu0 %v3271, 126
        %v3276 = vpop.permute.xlu0 %3275
        %3277 = vrot.lane.b32.xlu0 %v3272, 126
        %v3278 = vpop.permute.xlu0 %3277
        %v3281 = vadd.f32 %v3169, %v3276
        %v3282 = vadd.f32 %v3170, %v3278
        %s3283 = sld [smem:[#allocation2 + $0x10d]]
        %v3284 = vstv %s3283
        %v3285 = vmul.f32 %v3284, %v2427
        %v3286 = vmul.f32 %v3284, %v2428
        %3289 = vrot.lane.b32.xlu0 %v3285, 126
        %v3290 = vpop.permute.xlu0 %3289
        %3291 = vrot.lane.b32.xlu0 %v3286, 126
        %v3292 = vpop.permute.xlu0 %3291
        %v3295 = vadd.f32 %v3183, %v3290
        %v3296 = vadd.f32 %v3184, %v3292
        %s3297 = sld [smem:[#allocation2 + $0x1a]]
        %v3298 = vstv %s3297
        %v3299 = vmul.f32 %v3298, %v2429
        %v3300 = vmul.f32 %v3298, %v2430
        %3303 = vrot.lane.b32.xlu0 %v3299, 126
        %v3304 = vpop.permute.xlu0 %3303
        %3305 = vrot.lane.b32.xlu0 %v3300, 126
        %v3306 = vpop.permute.xlu0 %3305
        %v3309 = vadd.f32 %v3197, %v3304
        %v3310 = vadd.f32 %v3198, %v3306
        %s3311 = sld [smem:[#allocation2 + $0x3e]]
        %v3312 = vstv %s3311
        %v3313 = vmul.f32 %v3312, %v2429
        %v3314 = vmul.f32 %v3312, %v2430
        %3317 = vrot.lane.b32.xlu0 %v3313, 126
        %v3318 = vpop.permute.xlu0 %3317
        %3319 = vrot.lane.b32.xlu0 %v3314, 126
        %v3320 = vpop.permute.xlu0 %3319
        %v3323 = vadd.f32 %v3211, %v3318
        %v3324 = vadd.f32 %v3212, %v3320
        %s3325 = sld [smem:[#allocation2 + $0x62]]
        %v3326 = vstv %s3325
        %v3327 = vmul.f32 %v3326, %v2429
        %v3328 = vmul.f32 %v3326, %v2430
        %3331 = vrot.lane.b32.xlu0 %v3327, 126
        %v3332 = vpop.permute.xlu0 %3331
        %3333 = vrot.lane.b32.xlu0 %v3328, 126
        %v3334 = vpop.permute.xlu0 %3333
        %v3337 = vadd.f32 %v3225, %v3332
        %v3338 = vadd.f32 %v3226, %v3334
        %s3339 = sld [smem:[#allocation2 + $0x86]]
        %v3340 = vstv %s3339
        %v3341 = vmul.f32 %v3340, %v2429
        %v3342 = vmul.f32 %v3340, %v2430
        %3345 = vrot.lane.b32.xlu0 %v3341, 126
        %v3346 = vpop.permute.xlu0 %3345
        %3347 = vrot.lane.b32.xlu0 %v3342, 126
        %v3348 = vpop.permute.xlu0 %3347
        %v3351 = vadd.f32 %v3239, %v3346
        %v3352 = vadd.f32 %v3240, %v3348
        %s3353 = sld [smem:[#allocation2 + $0xaa]]
        %v3354 = vstv %s3353
        %v3355 = vmul.f32 %v3354, %v2429
        %v3356 = vmul.f32 %v3354, %v2430
        %3359 = vrot.lane.b32.xlu0 %v3355, 126
        %v3360 = vpop.permute.xlu0 %3359
        %3361 = vrot.lane.b32.xlu0 %v3356, 126
        %v3362 = vpop.permute.xlu0 %3361
        %v3365 = vadd.f32 %v3253, %v3360
        %v3366 = vadd.f32 %v3254, %v3362
        %s3367 = sld [smem:[#allocation2 + $0xce]]
        %v3368 = vstv %s3367
        %v3369 = vmul.f32 %v3368, %v2429
        %v3370 = vmul.f32 %v3368, %v2430
        %3373 = vrot.lane.b32.xlu0 %v3369, 126
        %v3374 = vpop.permute.xlu0 %3373
        %3375 = vrot.lane.b32.xlu0 %v3370, 126
        %v3376 = vpop.permute.xlu0 %3375
        %v3379 = vadd.f32 %v3267, %v3374
        %v3380 = vadd.f32 %v3268, %v3376
        %s3381 = sld [smem:[#allocation2 + $0xf2]]
        %v3382 = vstv %s3381
        %v3383 = vmul.f32 %v3382, %v2429
        %v3384 = vmul.f32 %v3382, %v2430
        %3387 = vrot.lane.b32.xlu0 %v3383, 126
        %v3388 = vpop.permute.xlu0 %3387
        %3389 = vrot.lane.b32.xlu0 %v3384, 126
        %v3390 = vpop.permute.xlu0 %3389
        %v3393 = vadd.f32 %v3281, %v3388
        %v3394 = vadd.f32 %v3282, %v3390
        %s3395 = sld [smem:[#allocation2 + $0x116]]
        %v3396 = vstv %s3395
        %v3397 = vmul.f32 %v3396, %v2429
        %v3398 = vmul.f32 %v3396, %v2430
        %3401 = vrot.lane.b32.xlu0 %v3397, 126
        %v3402 = vpop.permute.xlu0 %3401
        %3403 = vrot.lane.b32.xlu0 %v3398, 126
        %v3404 = vpop.permute.xlu0 %3403
        %v3407 = vadd.f32 %v3295, %v3402
        %v3408 = vadd.f32 %v3296, %v3404
        %s3409 = sld [smem:[#allocation2 + $0x23]]
        %v3410 = vstv %s3409
        %v3411 = vmul.f32 %v3410, %v2431
        %v3412 = vmul.f32 %v3410, %v2432
        %3415 = vrot.lane.b32.xlu0 %v3411, 126
        %v3416 = vpop.permute.xlu0 %3415
        %3417 = vrot.lane.b32.xlu0 %v3412, 126
        %v3418 = vpop.permute.xlu0 %3417
        %v3421 = vadd.f32 %v3309, %v3416
        %v3422 = vadd.f32 %v3310, %v3418
        %s3423 = sld [smem:[#allocation2 + $0x47]]
        %v3424 = vstv %s3423
        %v3425 = vmul.f32 %v3424, %v2431
        %v3426 = vmul.f32 %v3424, %v2432
        %3429 = vrot.lane.b32.xlu0 %v3425, 126
        %v3430 = vpop.permute.xlu0 %3429
        %3431 = vrot.lane.b32.xlu0 %v3426, 126
        %v3432 = vpop.permute.xlu0 %3431
        %v3435 = vadd.f32 %v3323, %v3430
        %v3436 = vadd.f32 %v3324, %v3432
        %s3437 = sld [smem:[#allocation2 + $0x6b]]
        %v3438 = vstv %s3437
        %v3439 = vmul.f32 %v3438, %v2431
        %v3440 = vmul.f32 %v3438, %v2432
        %3443 = vrot.lane.b32.xlu0 %v3439, 126
        %v3444 = vpop.permute.xlu0 %3443
        %3445 = vrot.lane.b32.xlu0 %v3440, 126
        %v3446 = vpop.permute.xlu0 %3445
        %v3449 = vadd.f32 %v3337, %v3444
        %v3450 = vadd.f32 %v3338, %v3446
        %s3451 = sld [smem:[#allocation2 + $0x8f]]
        %v3452 = vstv %s3451
        %v3453 = vmul.f32 %v3452, %v2431
        %v3454 = vmul.f32 %v3452, %v2432
        %3457 = vrot.lane.b32.xlu0 %v3453, 126
        %v3458 = vpop.permute.xlu0 %3457
        %3459 = vrot.lane.b32.xlu0 %v3454, 126
        %v3460 = vpop.permute.xlu0 %3459
        %v3463 = vadd.f32 %v3351, %v3458
        %v3464 = vadd.f32 %v3352, %v3460
        %s3465 = sld [smem:[#allocation2 + $0xb3]]
        %v3466 = vstv %s3465
        %v3467 = vmul.f32 %v3466, %v2431
        %v3468 = vmul.f32 %v3466, %v2432
        %3471 = vrot.lane.b32.xlu0 %v3467, 126
        %v3472 = vpop.permute.xlu0 %3471
        %3473 = vrot.lane.b32.xlu0 %v3468, 126
        %v3474 = vpop.permute.xlu0 %3473
        %v3477 = vadd.f32 %v3365, %v3472
        %v3478 = vadd.f32 %v3366, %v3474
        %s3479 = sld [smem:[#allocation2 + $0xd7]]
        %v3480 = vstv %s3479
        %v3481 = vmul.f32 %v3480, %v2431
        %v3482 = vmul.f32 %v3480, %v2432
        %3485 = vrot.lane.b32.xlu0 %v3481, 126
        %v3486 = vpop.permute.xlu0 %3485
        %3487 = vrot.lane.b32.xlu0 %v3482, 126
        %v3488 = vpop.permute.xlu0 %3487
        %v3491 = vadd.f32 %v3379, %v3486
        %v3492 = vadd.f32 %v3380, %v3488
        %s3493 = sld [smem:[#allocation2 + $0xfb]]
        %v3494 = vstv %s3493
        %v3495 = vmul.f32 %v3494, %v2431
        %v3496 = vmul.f32 %v3494, %v2432
        %3499 = vrot.lane.b32.xlu0 %v3495, 126
        %v3500 = vpop.permute.xlu0 %3499
        %3501 = vrot.lane.b32.xlu0 %v3496, 126
        %v3502 = vpop.permute.xlu0 %3501
        %v3505 = vadd.f32 %v3393, %v3500
        %v3506 = vadd.f32 %v3394, %v3502
        %s3507 = sld [smem:[#allocation2 + $0x11f]]
        %v3508 = vstv %s3507
        %v3509 = vmul.f32 %v3508, %v2431
        %v3510 = vmul.f32 %v3508, %v2432
        %3513 = vrot.lane.b32.xlu0 %v3509, 126
        %v3514 = vpop.permute.xlu0 %3513
        %3515 = vrot.lane.b32.xlu0 %v3510, 126
        %v3516 = vpop.permute.xlu0 %3515
        %v3519 = vadd.f32 %v3407, %v3514
        %v3520 = vadd.f32 %v3408, %v3516
        %vm3521 = vcmask 130048
        %3522 = vst.msk [vmem:[%s204] sm:$0xff] %vm3521, %v3421
        %3523 = vst.msk [vmem:[%s204 + $0x8] sm:$0xff] %vm3521, %v3422
        %s3524 = scalar_lea.vmem %s204, 16 [#allocation7]
        %3525 = vst.msk [vmem:[%s3524] sm:$0xff] %vm3521, %v3435
        %3526 = vst.msk [vmem:[%s3524 + $0x8] sm:$0xff] %vm3521, %v3436
        %s3527 = scalar_lea.vmem %s204, 32 [#allocation7]
        %3528 = vst.msk [vmem:[%s3527] sm:$0xff] %vm3521, %v3449
        %3529 = vst.msk [vmem:[%s3527 + $0x8] sm:$0xff] %vm3521, %v3450
        %s3530 = scalar_lea.vmem %s204, 48 [#allocation7]
        %3531 = vst.msk [vmem:[%s3530] sm:$0xff] %vm3521, %v3463
        %3532 = vst.msk [vmem:[%s3530 + $0x8] sm:$0xff] %vm3521, %v3464
        %s3533 = scalar_lea.vmem %s204, 64 [#allocation7]
        %3534 = vst.msk [vmem:[%s3533] sm:$0xff] %vm3521, %v3477
        %3535 = vst.msk [vmem:[%s3533 + $0x8] sm:$0xff] %vm3521, %v3478
        %s3536 = scalar_lea.vmem %s204, 80 [#allocation7]
        %3537 = vst.msk [vmem:[%s3536] sm:$0xff] %vm3521, %v3491
        %3538 = vst.msk [vmem:[%s3536 + $0x8] sm:$0xff] %vm3521, %v3492
        %s3539 = scalar_lea.vmem %s204, 96 [#allocation7]
        %3540 = vst.msk [vmem:[%s3539] sm:$0xff] %vm3521, %v3505
        %3541 = vst.msk [vmem:[%s3539 + $0x8] sm:$0xff] %vm3521, %v3506
        %s3542 = scalar_lea.vmem %s204, 112 [#allocation7]
        %3543 = vst.msk [vmem:[%s3542] sm:$0xff] %vm3521, %v3519
        %3544 = vst.msk [vmem:[%s3542 + $0x8] sm:$0xff] %vm3521, %v3520
        %s3545 = sand.u32 %s109, 1
        %s3546 = scalar_lea.sflag [#allocation3], %s3545
        %s3547 = sand.u32 %s109, 1
        %s3548 = smul.addr %s3547, 128
        %s3549 = scalar_lea.vmem [#allocation7], %s3548
        // Predicated region
        $region41: #{convolution2d_forward.1} parent=31 // pred_check
          %p3550 = pneg %p119
        $region42: #{convolution2d_forward.1} parent=31 // pred_check_branch
          %3552 = sbr.rel (%p3550) target = $region44
        $region43: #{convolution2d_forward.1} parent=31 // pred_region
          %s3553 = smul.u32 2, %s24
          %s3555 = ssub.s32 2048, 2048
          %3556 = vsyncadd %s3546, %s3555
          %s3557 = smul.addr %s23, 16
          %s3558 = sadd.s32 %s3553, %s3557
          %s3559 = smul.addr %s3558, 128
          %s3560 = scalar_lea.hbm %s3, %s3559
          %s3561 = sshll.u32 %s3549, 4
          %s3562 = int_to_ptr.vmem [resolvable:$true] %s3561
          %3567 = dma.vmem_to_hbm [thread:$0]  %s3562, 2048, %s3560, %s3546, 128, 128, 8
        $region44: #{convolution2d_forward.1} parent=31 // pred_fallthru
          _
      $region32: #{convolution2d_forward.1} parent=5 // pred_fallthru
        _
      %p3568 = scmp.le.s32.totalorder 2, %s14
      // Predicated region
      $region45: #{convolution2d_forward.1} parent=5 // pred_check
        %p3569 = pneg %p3568
      $region46: #{convolution2d_forward.1} parent=5 // pred_check_branch
        %3571 = sbr.rel (%p3569) target = $region48
      $region47: #{convolution2d_forward.1} parent=5 // pred_region
        %s3572 = ssub.s32 %s14, 2
        // Predicated region
        $region49: #{convolution2d_forward.1} parent=47 // pred_check
          %p3573 = pneg %p125
        $region50: #{convolution2d_forward.1} parent=47 // pred_check_branch
          %3575 = sbr.rel (%p3573) target = $region52
        $region51: #{convolution2d_forward.1} parent=47 // pred_region
          %s3576 = sand.u32 %s110, 1
          %s3577 = scalar_lea.sflag [#allocation3], %s3576
          %s3578 = sand.u32 %s110, 1
          %s3579 = smul.addr %s3578, 128
          %s3580 = scalar_lea.vmem [#allocation7], %s3579
          %3581 = dma.done %s3577, 2048
        $region52: #{convolution2d_forward.1} parent=47 // pred_fallthru
          _
      $region48: #{convolution2d_forward.1} parent=5 // pred_fallthru
        _
    $region6: #{convolution2d_forward.1} parent=1 // loop_footer
      %s18 = sadd.s32 1, %s14
    $region7: #{convolution2d_forward.1} parent=1 // loop_footer_branch
      %13 = sbr.rel target = $region3
    $region8: #{convolution2d_forward.1} parent=1 // loop_exit
      _
    %3582 = vsyncpa [#allocation3], 1
    %s3583 = scalar_lea.sflag [#allocation3], 1
    %3584 = vsyncpa %s3583, 1
    %3585 = vsyncpa [#allocation4], 1
    %s3586 = scalar_lea.sflag [#allocation4], 1
    %3587 = vsyncpa %s3586, 1
    %3588 = vsyncpa [#allocation6], 1

</llo_original>
